<compile_context>
chip_gen: v7x
topology: tpu7x:2x2x1
jax: 0.10.0
libtpu: 0.0.40
codegen_flags: <defaults>
</compile_context>

<pallas_src>
import jax
import jax.numpy as jnp
from jax.experimental import pallas as pl
from jax.experimental.pallas import tpu as pltpu


# ----------------------- Kernel A: conv1 + pool + ReLU -----------------------


def _conv1_pool_relu_kernel(cand_ref, w_ref, b_ref, o_ref):
    # cand_ref: (4, K, M)  4 pool-window candidates of the transposed im2col
    #           (K = Cin*KH*KW = 25 on sublanes, M = B*12*12 on lanes)
    # w_ref:    (Cout, K)     b_ref: (Cout, 1)     o_ref: (Cout, M)
    d0 = jnp.dot(w_ref[...], cand_ref[0], preferred_element_type=jnp.float32)
    d1 = jnp.dot(w_ref[...], cand_ref[1], preferred_element_type=jnp.float32)
    d2 = jnp.dot(w_ref[...], cand_ref[2], preferred_element_type=jnp.float32)
    d3 = jnp.dot(w_ref[...], cand_ref[3], preferred_element_type=jnp.float32)
    # max_pool commutes with the per-channel bias add and with ReLU.
    m = jnp.maximum(jnp.maximum(d0, d1), jnp.maximum(d2, d3))
    o_ref[...] = jnp.maximum(m + b_ref[...], 0.0)


def conv1_pool_relu(cand1, w1, b1):
    four, K, M = cand1.shape
    Cout = w1.shape[0]
    flops = 2 * four * Cout * K * M
    bytes_acc = 4 * (cand1.size + w1.size + b1.size + Cout * M)
    return pl.pallas_call(
        _conv1_pool_relu_kernel,
        out_shape=jax.ShapeDtypeStruct((Cout, M), jnp.float32),
        grid=(1,),
        in_specs=[
            pl.BlockSpec((four, K, M), lambda i: (0, 0, 0)),
            pl.BlockSpec((Cout, K), lambda i: (0, 0)),
            pl.BlockSpec((Cout, 1), lambda i: (0, 0)),
        ],
        out_specs=pl.BlockSpec((Cout, M), lambda i: (0, 0)),
        compiler_params=pltpu.CompilerParams(
            dimension_semantics=("arbitrary",)),
        cost_estimate=pl.CostEstimate(
            flops=flops, transcendentals=0, bytes_accessed=bytes_acc),
    )(cand1, w1, b1)


# ------------- Kernel B: conv2 + pool + ReLU + fc1 + fc2 + fc3 ---------------


def _conv2_fc_kernel(cand_ref, w2t_ref, b2_ref, fc1_wr_ref, fc1_b_ref,
                     fc2_wt_ref, fc2_b_ref, fc3_wt_ref, fc3_b_ref,
                     pooled_ref, ch_ref, out_ref):
    # conv2 + 2x2 max-pool + ReLU via 4 pool-window candidate GEMMs.
    # cand_ref: (4, 16*B, 250) rows ordered (pool_pos, batch); w2t_ref: (250, 20).
    d0 = jnp.dot(cand_ref[0], w2t_ref[...], preferred_element_type=jnp.float32)
    d1 = jnp.dot(cand_ref[1], w2t_ref[...], preferred_element_type=jnp.float32)
    d2 = jnp.dot(cand_ref[2], w2t_ref[...], preferred_element_type=jnp.float32)
    d3 = jnp.dot(cand_ref[3], w2t_ref[...], preferred_element_type=jnp.float32)
    m = jnp.maximum(jnp.maximum(d0, d1), jnp.maximum(d2, d3))
    pooled_ref[...] = jnp.maximum(m + b2_ref[...], 0.0)      # (16*B, 20)

    nb = pooled_ref.shape[0] // 16                           # batch size

    # fc1: contract over (channel, pool_pos) as 16 per-position block dots,
    # keeping everything VMEM resident (no in-kernel reshape / transpose).
    acc = jnp.dot(pooled_ref[0:nb, :], fc1_wr_ref[0],
                  preferred_element_type=jnp.float32)
    for p in range(1, 16):
        acc = acc + jnp.dot(pooled_ref[p * nb:(p + 1) * nb, :], fc1_wr_ref[p],
                            preferred_element_type=jnp.float32)
    ch1 = jnp.maximum(acc + fc1_b_ref[...], 0.0)             # (B, 256)

    ch = jnp.dot(ch1, fc2_wt_ref[...],
                 preferred_element_type=jnp.float32) + fc2_b_ref[...]   # (B, 128)
    ch_ref[...] = ch
    out_ref[...] = jnp.dot(ch, fc3_wt_ref[...],
                           preferred_element_type=jnp.float32) + fc3_b_ref[...]


def conv2_fc_block(cand2, prep):
    four, R, K2 = cand2.shape                                # (4, 16*B, 250)
    nb = R // 16
    Cout = prep["w2t"].shape[1]
    flops = 2 * (four * R * K2 * Cout + 16 * nb * Cout * 256
                 + nb * 256 * 128 + nb * 128 * 128)
    bytes_acc = 4 * (cand2.size + prep["w2t"].size + prep["fc1_wr"].size
                     + prep["fc2_wt"].size + prep["fc3_wt"].size
                     + R * Cout + 2 * nb * 128)
    return pl.pallas_call(
        _conv2_fc_kernel,
        out_shape=(
            jax.ShapeDtypeStruct((R, Cout), jnp.float32),    # pooled conv2 (h source)
            jax.ShapeDtypeStruct((nb, 128), jnp.float32),    # ch (fc2 output)
            jax.ShapeDtypeStruct((nb, 128), jnp.float32),    # fc3 output, lane-padded
        ),
        grid=(1,),
        in_specs=[
            pl.BlockSpec((four, R, K2), lambda i: (0, 0, 0)),    # cand2
            pl.BlockSpec((K2, Cout), lambda i: (0, 0)),          # w2t
            pl.BlockSpec((1, Cout), lambda i: (0, 0)),           # b2
            pl.BlockSpec((16, Cout, 256), lambda i: (0, 0, 0)),  # fc1_wr
            pl.BlockSpec((1, 256), lambda i: (0, 0)),            # fc1_b
            pl.BlockSpec((256, 128), lambda i: (0, 0)),          # fc2_wt
            pl.BlockSpec((1, 128), lambda i: (0, 0)),            # fc2_b
            pl.BlockSpec((128, 128), lambda i: (0, 0)),          # fc3_wt (padded)
            pl.BlockSpec((1, 128), lambda i: (0, 0)),            # fc3_b (padded)
        ],
        out_specs=(
            pl.BlockSpec((R, Cout), lambda i: (0, 0)),
            pl.BlockSpec((nb, 128), lambda i: (0, 0)),
            pl.BlockSpec((nb, 128), lambda i: (0, 0)),
        ),
        compiler_params=pltpu.CompilerParams(
            dimension_semantics=("arbitrary",)),
        cost_estimate=pl.CostEstimate(
            flops=flops, transcendentals=0, bytes_accessed=bytes_acc),
    )(cand2, prep["w2t"], prep["b2"], prep["fc1_wr"], prep["fc1_b"],
      prep["fc2_wt"], prep["fc2_b"], prep["fc3_wt"], prep["fc3_b"])


# ------------------------------ model params --------------------------------


def init_params(key):
    ks = jax.random.split(key, 10)

    def uni(k, shape, fan_in):
        bound = 1.0 / jnp.sqrt(jnp.float32(fan_in))
        return jax.random.uniform(k, shape, jnp.float32, -bound, bound)

    return {
        "conv1_w": uni(ks[0], (10, 1, 5, 5), 1 * 5 * 5),
        "conv1_b": uni(ks[1], (10,), 1 * 5 * 5),
        "conv2_w": uni(ks[2], (20, 10, 5, 5), 10 * 5 * 5),
        "conv2_b": uni(ks[3], (20,), 10 * 5 * 5),
        "fc1_w": uni(ks[4], (256, 320), 320),
        "fc1_b": uni(ks[5], (256,), 320),
        "fc2_w": uni(ks[6], (128, 256), 256),
        "fc2_b": uni(ks[7], (128,), 256),
        "fc3_w": uni(ks[8], (10, 128), 128),
        "fc3_b": uni(ks[9], (10,), 128),
    }


def prepare_params(params):
    """One-time re-layout of torch-format weights into kernel-friendly form
    (pre-transposed / pre-reshaped / pre-padded) — no per-forward transposes."""
    # fc1_wr[p, c, n] = fc1_w[n, c*16 + p]  (p = pooled spatial pos, c = channel)
    fc1_wr = params["fc1_w"].reshape(256, 20, 16).transpose(2, 1, 0)   # (16, 20, 256)
    fc3_wt = jnp.zeros((128, 128), jnp.float32).at[:, :10].set(params["fc3_w"].T)
    fc3_b = jnp.zeros((1, 128), jnp.float32).at[0, :10].set(params["fc3_b"])
    return {
        "w1": params["conv1_w"].reshape(10, 25),
        "b1": params["conv1_b"].reshape(10, 1),
        "w2t": params["conv2_w"].reshape(20, 250).T,
        "b2": params["conv2_b"].reshape(1, 20),
        "fc1_wr": fc1_wr,
        "fc1_b": params["fc1_b"].reshape(1, 256),
        "fc2_wt": params["fc2_w"].T,
        "fc2_b": params["fc2_b"].reshape(1, 128),
        "fc3_wt": fc3_wt,
        "fc3_b": fc3_b,
    }


# ------------------------------- forward -------------------------------------


def cnn_mnist_forward(prep, x):
    # x: (B, 1, 28, 28) NCHW, float32
    B = x.shape[0]
    x2 = x[:, 0]                                                       # (B, 28, 28)

    # conv1 im2col, transposed (taps on sublanes, B*Ho*Wo on lanes), split into
    # the four 2x2 pool-window candidates so the pool fuses into the GEMM.
    taps1 = jnp.stack([x2[:, ki:ki + 24, kj:kj + 24]
                       for ki in range(5) for kj in range(5)], axis=0)  # (25,B,24,24)
    cand1 = jnp.stack([taps1[:, :, di::2, dj::2].reshape(25, B * 144)
                       for di in (0, 1) for dj in (0, 1)])              # (4,25,B*144)
    pooled1_t = conv1_pool_relu(cand1, prep["w1"], prep["b1"])          # (10, B*144)
    pooled1 = pooled1_t.reshape(10, B, 12, 12).transpose(1, 0, 2, 3)    # (B,10,12,12)

    # conv2 im2col; K order = (cin, kh, kw) to match torch's weight flatten,
    # rows ordered (pool_pos, batch); again split into the 4 pool candidates.
    taps2 = jnp.stack([pooled1[:, :, ki:ki + 8, kj:kj + 8]
                       for ki in range(5) for kj in range(5)], axis=2)  # (B,10,25,8,8)
    cand2 = jnp.stack([
        taps2[:, :, :, di::2, dj::2].transpose(3, 4, 0, 1, 2).reshape(16 * B, 250)
        for di in (0, 1) for dj in (0, 1)])                             # (4,16B,250)

    pooled2, ch, x_pad = conv2_fc_block(cand2, prep)
    # pooled2 rows are (pool_pos, batch); convert to torch's (C, H, W) flatten.
    h = pooled2.reshape(16, B, 20).transpose(1, 2, 0).reshape(B, 320)
    x_out = x_pad[:, :10]
    return ch, h, x_out


# --------------------------------- main ---------------------------------------


if __name__ == "__main__":
    key = jax.random.PRNGKey(0)
    k_param, k_x = jax.random.split(key)
    params = init_params(k_param)
    prep = prepare_params(params)          # one-time weight re-layout (outside jit)
    # fc1 expects 320 = 20*4*4 -> 28x28 single-channel inputs; batch of 2.
    x = jax.random.normal(k_x, (2, 1, 28, 28), dtype=jnp.float32)

    fwd = jax.jit(cnn_mnist_forward)
    ch, h, x_out = fwd(prep, x)
    jax.block_until_ready((ch, h, x_out))

    assert ch.shape == (2, 128)
    assert h.shape == (2, 320)
    assert x_out.shape == (2, 10)
    assert bool(jnp.all(jnp.isfinite(ch))) and bool(jnp.all(jnp.isfinite(x_out)))
    print("KERNEL_OK")
</pallas_src>

<mosaic_0001>
module attributes {stable_mosaic.version = 11 : i64} {
  func.func @_conv1_pool_relu_kernel(%arg0: i32, %arg1: memref<4x25x288xf32, #tpu.memory_space<vmem>>, %arg2: memref<10x25xf32, #tpu.memory_space<vmem>>, %arg3: memref<10x1xf32, #tpu.memory_space<vmem>>, %arg4: memref<10x288xf32, #tpu.memory_space<vmem>>) attributes {dimension_semantics = [#tpu.dimension_semantics<arbitrary>], iteration_bounds = array<i64: 1>, scalar_prefetch = 0 : i64, scratch_operands = 0 : i64, tpu.core_type = #tpu.core_type<tc>, window_params = [{pipeline_mode = #tpu.pipeline_mode<synchronous>, transform_indices = @transform_0, window_bounds = array<i64: 4, 25, 288>}, {pipeline_mode = #tpu.pipeline_mode<synchronous>, transform_indices = @transform_1, window_bounds = array<i64: 10, 25>}, {pipeline_mode = #tpu.pipeline_mode<synchronous>, transform_indices = @transform_2, window_bounds = array<i64: 10, 1>}, {pipeline_mode = #tpu.pipeline_mode<synchronous>, transform_indices = @transform_3, window_bounds = array<i64: 10, 288>}]} {
    %c0 = arith.constant 0 : index
    %c0_0 = arith.constant 0 : index
    %0 = vector.load %arg2[%c0, %c0_0] : memref<10x25xf32, #tpu.memory_space<vmem>>, vector<10x25xf32>
    %c0_1 = arith.constant 0 : index
    %c0_2 = arith.constant 0 : index
    %c0_3 = arith.constant 0 : index
    %1 = vector.load %arg1[%c0_1, %c0_2, %c0_3] : memref<4x25x288xf32, #tpu.memory_space<vmem>>, vector<1x25x288xf32>
    %2 = vector.shape_cast %1 : vector<1x25x288xf32> to vector<25x288xf32>
    %cst = arith.constant dense<0.000000e+00> : vector<10x288xf32>
    %3 = tpu.matmul %0, %2, %cst {dimension_numbers = #tpu.dot_dimension_numbers<[1], [0], [0], [1], [0, 0, 1, 1], [], []>} : vector<10x25xf32>, vector<25x288xf32>, vector<10x288xf32> -> vector<10x288xf32>
    %c0_4 = arith.constant 0 : index
    %c0_5 = arith.constant 0 : index
    %4 = vector.load %arg2[%c0_4, %c0_5] : memref<10x25xf32, #tpu.memory_space<vmem>>, vector<10x25xf32>
    %c1 = arith.constant 1 : index
    %c0_6 = arith.constant 0 : index
    %c0_7 = arith.constant 0 : index
    %5 = vector.load %arg1[%c1, %c0_6, %c0_7] : memref<4x25x288xf32, #tpu.memory_space<vmem>>, vector<1x25x288xf32>
    %6 = vector.shape_cast %5 : vector<1x25x288xf32> to vector<25x288xf32>
    %cst_8 = arith.constant dense<0.000000e+00> : vector<10x288xf32>
    %7 = tpu.matmul %4, %6, %cst_8 {dimension_numbers = #tpu.dot_dimension_numbers<[1], [0], [0], [1], [0, 0, 1, 1], [], []>} : vector<10x25xf32>, vector<25x288xf32>, vector<10x288xf32> -> vector<10x288xf32>
    %c0_9 = arith.constant 0 : index
    %c0_10 = arith.constant 0 : index
    %8 = vector.load %arg2[%c0_9, %c0_10] : memref<10x25xf32, #tpu.memory_space<vmem>>, vector<10x25xf32>
    %c2 = arith.constant 2 : index
    %c0_11 = arith.constant 0 : index
    %c0_12 = arith.constant 0 : index
    %9 = vector.load %arg1[%c2, %c0_11, %c0_12] : memref<4x25x288xf32, #tpu.memory_space<vmem>>, vector<1x25x288xf32>
    %10 = vector.shape_cast %9 : vector<1x25x288xf32> to vector<25x288xf32>
    %cst_13 = arith.constant dense<0.000000e+00> : vector<10x288xf32>
    %11 = tpu.matmul %8, %10, %cst_13 {dimension_numbers = #tpu.dot_dimension_numbers<[1], [0], [0], [1], [0, 0, 1, 1], [], []>} : vector<10x25xf32>, vector<25x288xf32>, vector<10x288xf32> -> vector<10x288xf32>
    %c0_14 = arith.constant 0 : index
    %c0_15 = arith.constant 0 : index
    %12 = vector.load %arg2[%c0_14, %c0_15] : memref<10x25xf32, #tpu.memory_space<vmem>>, vector<10x25xf32>
    %c3 = arith.constant 3 : index
    %c0_16 = arith.constant 0 : index
    %c0_17 = arith.constant 0 : index
    %13 = vector.load %arg1[%c3, %c0_16, %c0_17] : memref<4x25x288xf32, #tpu.memory_space<vmem>>, vector<1x25x288xf32>
    %14 = vector.shape_cast %13 : vector<1x25x288xf32> to vector<25x288xf32>
    %cst_18 = arith.constant dense<0.000000e+00> : vector<10x288xf32>
    %15 = tpu.matmul %12, %14, %cst_18 {dimension_numbers = #tpu.dot_dimension_numbers<[1], [0], [0], [1], [0, 0, 1, 1], [], []>} : vector<10x25xf32>, vector<25x288xf32>, vector<10x288xf32> -> vector<10x288xf32>
    %16 = arith.maximumf %3, %7 : vector<10x288xf32>
    %17 = arith.maximumf %11, %15 : vector<10x288xf32>
    %18 = arith.maximumf %16, %17 : vector<10x288xf32>
    %c0_19 = arith.constant 0 : index
    %c0_20 = arith.constant 0 : index
    %19 = vector.load %arg3[%c0_19, %c0_20] : memref<10x1xf32, #tpu.memory_space<vmem>>, vector<10x1xf32>
    %20 = vector.broadcast %19 : vector<10x1xf32> to vector<10x288xf32>
    %21 = arith.addf %18, %20 : vector<10x288xf32>
    %cst_21 = arith.constant 0.000000e+00 : f32
    %22 = vector.broadcast %cst_21 : f32 to vector<10x288xf32>
    %23 = arith.maximumf %21, %22 : vector<10x288xf32>
    %c0_22 = arith.constant 0 : index
    %c0_23 = arith.constant 0 : index
    %24 = vector.load %arg4[%c0_22, %c0_23] : memref<10x288xf32, #tpu.memory_space<vmem>>, vector<10x288xf32>
    tpu.vector_store %arg4[%c0_22, %c0_23], %23 {strides = array<i32>} : memref<10x288xf32, #tpu.memory_space<vmem>>, vector<10x288xf32>,
    return
  }
  func.func @transform_0(%arg0: i32) -> (i32, i32, i32) {
    %c0_i32 = arith.constant 0 : i32
    %c0_i32_0 = arith.constant 0 : i32
    %c0_i32_1 = arith.constant 0 : i32
    %c0_i32_2 = arith.constant 0 : i32
    return %c0_i32, %c0_i32_0, %c0_i32_1 : i32, i32, i32
  }
  func.func @transform_1(%arg0: i32) -> (i32, i32) {
    %c0_i32 = arith.constant 0 : i32
    %c0_i32_0 = arith.constant 0 : i32
    %c0_i32_1 = arith.constant 0 : i32
    return %c0_i32, %c0_i32_0 : i32, i32
  }
  func.func @transform_2(%arg0: i32) -> (i32, i32) {
    %c0_i32 = arith.constant 0 : i32
    %c0_i32_0 = arith.constant 0 : i32
    %c0_i32_1 = arith.constant 0 : i32
    return %c0_i32, %c0_i32_0 : i32, i32
  }
  func.func @transform_3(%arg0: i32) -> (i32, i32) {
    %c0_i32 = arith.constant 0 : i32
    %c0_i32_0 = arith.constant 0 : i32
    %c0_i32_1 = arith.constant 0 : i32
    return %c0_i32, %c0_i32_0 : i32, i32
  }
}

module attributes {stable_mosaic.version = 11 : i64} {
  func.func @_conv2_fc_kernel(%arg0: i32, %arg1: memref<4x32x250xf32, #tpu.memory_space<vmem>>, %arg2: memref<250x20xf32, #tpu.memory_space<vmem>>, %arg3: memref<1x20xf32, #tpu.memory_space<vmem>>, %arg4: memref<16x20x256xf32, #tpu.memory_space<vmem>>, %arg5: memref<1x256xf32, #tpu.memory_space<vmem>>, %arg6: memref<256x128xf32, #tpu.memory_space<vmem>>, %arg7: memref<1x128xf32, #tpu.memory_space<vmem>>, %arg8: memref<128x128xf32, #tpu.memory_space<vmem>>, %arg9: memref<1x128xf32, #tpu.memory_space<vmem>>, %arg10: memref<32x20xf32, #tpu.memory_space<vmem>>, %arg11: memref<2x128xf32, #tpu.memory_space<vmem>>, %arg12: memref<2x128xf32, #tpu.memory_space<vmem>>) attributes {dimension_semantics = [#tpu.dimension_semantics<arbitrary>], iteration_bounds = array<i64: 1>, scalar_prefetch = 0 : i64, scratch_operands = 0 : i64, tpu.core_type = #tpu.core_type<tc>, window_params = [{pipeline_mode = #tpu.pipeline_mode<synchronous>, transform_indices = @transform_0, window_bounds = array<i64: 4, 32, 250>}, {pipeline_mode = #tpu.pipeline_mode<synchronous>, transform_indices = @transform_1, window_bounds = array<i64: 250, 20>}, {pipeline_mode = #tpu.pipeline_mode<synchronous>, transform_indices = @transform_2, window_bounds = array<i64: 1, 20>}, {pipeline_mode = #tpu.pipeline_mode<synchronous>, transform_indices = @transform_3, window_bounds = array<i64: 16, 20, 256>}, {pipeline_mode = #tpu.pipeline_mode<synchronous>, transform_indices = @transform_4, window_bounds = array<i64: 1, 256>}, {pipeline_mode = #tpu.pipeline_mode<synchronous>, transform_indices = @transform_5, window_bounds = array<i64: 256, 128>}, {pipeline_mode = #tpu.pipeline_mode<synchronous>, transform_indices = @transform_6, window_bounds = array<i64: 1, 128>}, {pipeline_mode = #tpu.pipeline_mode<synchronous>, transform_indices = @transform_7, window_bounds = array<i64: 128, 128>}, {pipeline_mode = #tpu.pipeline_mode<synchronous>, transform_indices = @transform_8, window_bounds = array<i64: 1, 128>}, {pipeline_mode = #tpu.pipeline_mode<synchronous>, transform_indices = @transform_9, window_bounds = array<i64: 32, 20>}, {pipeline_mode = #tpu.pipeline_mode<synchronous>, transform_indices = @transform_10, window_bounds = array<i64: 2, 128>}, {pipeline_mode = #tpu.pipeline_mode<synchronous>, transform_indices = @transform_11, window_bounds = array<i64: 2, 128>}]} {
    %c0 = arith.constant 0 : index
    %c0_0 = arith.constant 0 : index
    %c0_1 = arith.constant 0 : index
    %0 = vector.load %arg1[%c0, %c0_0, %c0_1] : memref<4x32x250xf32, #tpu.memory_space<vmem>>, vector<1x32x250xf32>
    %1 = vector.shape_cast %0 : vector<1x32x250xf32> to vector<32x250xf32>
    %c0_2 = arith.constant 0 : index
    %c0_3 = arith.constant 0 : index
    %2 = vector.load %arg2[%c0_2, %c0_3] : memref<250x20xf32, #tpu.memory_space<vmem>>, vector<250x20xf32>
    %cst = arith.constant dense<0.000000e+00> : vector<32x20xf32>
    %3 = tpu.matmul %1, %2, %cst {dimension_numbers = #tpu.dot_dimension_numbers<[1], [0], [0], [1], [0, 0, 1, 1], [], []>} : vector<32x250xf32>, vector<250x20xf32>, vector<32x20xf32> -> vector<32x20xf32>
    %c1 = arith.constant 1 : index
    %c0_4 = arith.constant 0 : index
    %c0_5 = arith.constant 0 : index
    %4 = vector.load %arg1[%c1, %c0_4, %c0_5] : memref<4x32x250xf32, #tpu.memory_space<vmem>>, vector<1x32x250xf32>
    %5 = vector.shape_cast %4 : vector<1x32x250xf32> to vector<32x250xf32>
    %c0_6 = arith.constant 0 : index
    %c0_7 = arith.constant 0 : index
    %6 = vector.load %arg2[%c0_6, %c0_7] : memref<250x20xf32, #tpu.memory_space<vmem>>, vector<250x20xf32>
    %cst_8 = arith.constant dense<0.000000e+00> : vector<32x20xf32>
    %7 = tpu.matmul %5, %6, %cst_8 {dimension_numbers = #tpu.dot_dimension_numbers<[1], [0], [0], [1], [0, 0, 1, 1], [], []>} : vector<32x250xf32>, vector<250x20xf32>, vector<32x20xf32> -> vector<32x20xf32>
    %c2 = arith.constant 2 : index
    %c0_9 = arith.constant 0 : index
    %c0_10 = arith.constant 0 : index
    %8 = vector.load %arg1[%c2, %c0_9, %c0_10] : memref<4x32x250xf32, #tpu.memory_space<vmem>>, vector<1x32x250xf32>
    %9 = vector.shape_cast %8 : vector<1x32x250xf32> to vector<32x250xf32>
    %c0_11 = arith.constant 0 : index
    %c0_12 = arith.constant 0 : index
    %10 = vector.load %arg2[%c0_11, %c0_12] : memref<250x20xf32, #tpu.memory_space<vmem>>, vector<250x20xf32>
    %cst_13 = arith.constant dense<0.000000e+00> : vector<32x20xf32>
    %11 = tpu.matmul %9, %10, %cst_13 {dimension_numbers = #tpu.dot_dimension_numbers<[1], [0], [0], [1], [0, 0, 1, 1], [], []>} : vector<32x250xf32>, vector<250x20xf32>, vector<32x20xf32> -> vector<32x20xf32>
    %c3 = arith.constant 3 : index
    %c0_14 = arith.constant 0 : index
    %c0_15 = arith.constant 0 : index
    %12 = vector.load %arg1[%c3, %c0_14, %c0_15] : memref<4x32x250xf32, #tpu.memory_space<vmem>>, vector<1x32x250xf32>
    %13 = vector.shape_cast %12 : vector<1x32x250xf32> to vector<32x250xf32>
    %c0_16 = arith.constant 0 : index
    %c0_17 = arith.constant 0 : index
    %14 = vector.load %arg2[%c0_16, %c0_17] : memref<250x20xf32, #tpu.memory_space<vmem>>, vector<250x20xf32>
    %cst_18 = arith.constant dense<0.000000e+00> : vector<32x20xf32>
    %15 = tpu.matmul %13, %14, %cst_18 {dimension_numbers = #tpu.dot_dimension_numbers<[1], [0], [0], [1], [0, 0, 1, 1], [], []>} : vector<32x250xf32>, vector<250x20xf32>, vector<32x20xf32> -> vector<32x20xf32>
    %16 = arith.maximumf %3, %7 : vector<32x20xf32>
    %17 = arith.maximumf %11, %15 : vector<32x20xf32>
    %18 = arith.maximumf %16, %17 : vector<32x20xf32>
    %c0_19 = arith.constant 0 : index
    %c0_20 = arith.constant 0 : index
    %19 = vector.load %arg3[%c0_19, %c0_20] : memref<1x20xf32, #tpu.memory_space<vmem>>, vector<1x20xf32>
    %20 = vector.broadcast %19 : vector<1x20xf32> to vector<32x20xf32>
    %21 = arith.addf %18, %20 : vector<32x20xf32>
    %cst_21 = arith.constant 0.000000e+00 : f32
    %22 = vector.broadcast %cst_21 : f32 to vector<32x20xf32>
    %23 = arith.maximumf %21, %22 : vector<32x20xf32>
    %c0_22 = arith.constant 0 : index
    %c0_23 = arith.constant 0 : index
    %24 = vector.load %arg10[%c0_22, %c0_23] : memref<32x20xf32, #tpu.memory_space<vmem>>, vector<32x20xf32>
    tpu.vector_store %arg10[%c0_22, %c0_23], %23 {strides = array<i32>} : memref<32x20xf32, #tpu.memory_space<vmem>>, vector<32x20xf32>,
    %c0_24 = arith.constant 0 : index
    %c0_25 = arith.constant 0 : index
    %25 = vector.load %arg10[%c0_24, %c0_25] : memref<32x20xf32, #tpu.memory_space<vmem>>, vector<2x20xf32>
    %c0_26 = arith.constant 0 : index
    %c0_27 = arith.constant 0 : index
    %c0_28 = arith.constant 0 : index
    %26 = vector.load %arg4[%c0_26, %c0_27, %c0_28] : memref<16x20x256xf32, #tpu.memory_space<vmem>>, vector<1x20x256xf32>
    %27 = vector.shape_cast %26 : vector<1x20x256xf32> to vector<20x256xf32>
    %cst_29 = arith.constant dense<0.000000e+00> : vector<2x256xf32>
    %28 = tpu.matmul %25, %27, %cst_29 {dimension_numbers = #tpu.dot_dimension_numbers<[1], [0], [0], [1], [0, 0, 1, 1], [], []>} : vector<2x20xf32>, vector<20x256xf32>, vector<2x256xf32> -> vector<2x256xf32>
    %c2_30 = arith.constant 2 : index
    %c0_31 = arith.constant 0 : index
    %29 = vector.load %arg10[%c2_30, %c0_31] : memref<32x20xf32, #tpu.memory_space<vmem>>, vector<2x20xf32>
    %c1_32 = arith.constant 1 : index
    %c0_33 = arith.constant 0 : index
    %c0_34 = arith.constant 0 : index
    %30 = vector.load %arg4[%c1_32, %c0_33, %c0_34] : memref<16x20x256xf32, #tpu.memory_space<vmem>>, vector<1x20x256xf32>
    %31 = vector.shape_cast %30 : vector<1x20x256xf32> to vector<20x256xf32>
    %cst_35 = arith.constant dense<0.000000e+00> : vector<2x256xf32>
    %32 = tpu.matmul %29, %31, %cst_35 {dimension_numbers = #tpu.dot_dimension_numbers<[1], [0], [0], [1], [0, 0, 1, 1], [], []>} : vector<2x20xf32>, vector<20x256xf32>, vector<2x256xf32> -> vector<2x256xf32>
    %33 = arith.addf %28, %32 : vector<2x256xf32>
    %c4 = arith.constant 4 : index
    %c0_36 = arith.constant 0 : index
    %34 = vector.load %arg10[%c4, %c0_36] : memref<32x20xf32, #tpu.memory_space<vmem>>, vector<2x20xf32>
    %c2_37 = arith.constant 2 : index
    %c0_38 = arith.constant 0 : index
    %c0_39 = arith.constant 0 : index
    %35 = vector.load %arg4[%c2_37, %c0_38, %c0_39] : memref<16x20x256xf32, #tpu.memory_space<vmem>>, vector<1x20x256xf32>
    %36 = vector.shape_cast %35 : vector<1x20x256xf32> to vector<20x256xf32>
    %cst_40 = arith.constant dense<0.000000e+00> : vector<2x256xf32>
    %37 = tpu.matmul %34, %36, %cst_40 {dimension_numbers = #tpu.dot_dimension_numbers<[1], [0], [0], [1], [0, 0, 1, 1], [], []>} : vector<2x20xf32>, vector<20x256xf32>, vector<2x256xf32> -> vector<2x256xf32>
    %38 = arith.addf %33, %37 : vector<2x256xf32>
    %c6 = arith.constant 6 : index
    %c0_41 = arith.constant 0 : index
    %39 = vector.load %arg10[%c6, %c0_41] : memref<32x20xf32, #tpu.memory_space<vmem>>, vector<2x20xf32>
    %c3_42 = arith.constant 3 : index
    %c0_43 = arith.constant 0 : index
    %c0_44 = arith.constant 0 : index
    %40 = vector.load %arg4[%c3_42, %c0_43, %c0_44] : memref<16x20x256xf32, #tpu.memory_space<vmem>>, vector<1x20x256xf32>
    %41 = vector.shape_cast %40 : vector<1x20x256xf32> to vector<20x256xf32>
    %cst_45 = arith.constant dense<0.000000e+00> : vector<2x256xf32>
    %42 = tpu.matmul %39, %41, %cst_45 {dimension_numbers = #tpu.dot_dimension_numbers<[1], [0], [0], [1], [0, 0, 1, 1], [], []>} : vector<2x20xf32>, vector<20x256xf32>, vector<2x256xf32> -> vector<2x256xf32>
    %43 = arith.addf %38, %42 : vector<2x256xf32>
    %c8 = arith.constant 8 : index
    %c0_46 = arith.constant 0 : index
    %44 = vector.load %arg10[%c8, %c0_46] : memref<32x20xf32, #tpu.memory_space<vmem>>, vector<2x20xf32>
    %c4_47 = arith.constant 4 : index
    %c0_48 = arith.constant 0 : index
    %c0_49 = arith.constant 0 : index
    %45 = vector.load %arg4[%c4_47, %c0_48, %c0_49] : memref<16x20x256xf32, #tpu.memory_space<vmem>>, vector<1x20x256xf32>
    %46 = vector.shape_cast %45 : vector<1x20x256xf32> to vector<20x256xf32>
    %cst_50 = arith.constant dense<0.000000e+00> : vector<2x256xf32>
    %47 = tpu.matmul %44, %46, %cst_50 {dimension_numbers = #tpu.dot_dimension_numbers<[1], [0], [0], [1], [0, 0, 1, 1], [], []>} : vector<2x20xf32>, vector<20x256xf32>, vector<2x256xf32> -> vector<2x256xf32>
    %48 = arith.addf %43, %47 : vector<2x256xf32>
    %c10 = arith.constant 10 : index
    %c0_51 = arith.constant 0 : index
    %49 = vector.load %arg10[%c10, %c0_51] : memref<32x20xf32, #tpu.memory_space<vmem>>, vector<2x20xf32>
    %c5 = arith.constant 5 : index
    %c0_52 = arith.constant 0 : index
    %c0_53 = arith.constant 0 : index
    %50 = vector.load %arg4[%c5, %c0_52, %c0_53] : memref<16x20x256xf32, #tpu.memory_space<vmem>>, vector<1x20x256xf32>
    %51 = vector.shape_cast %50 : vector<1x20x256xf32> to vector<20x256xf32>
    %cst_54 = arith.constant dense<0.000000e+00> : vector<2x256xf32>
    %52 = tpu.matmul %49, %51, %cst_54 {dimension_numbers = #tpu.dot_dimension_numbers<[1], [0], [0], [1], [0, 0, 1, 1], [], []>} : vector<2x20xf32>, vector<20x256xf32>, vector<2x256xf32> -> vector<2x256xf32>
    %53 = arith.addf %48, %52 : vector<2x256xf32>
    %c12 = arith.constant 12 : index
    %c0_55 = arith.constant 0 : index
    %54 = vector.load %arg10[%c12, %c0_55] : memref<32x20xf32, #tpu.memory_space<vmem>>, vector<2x20xf32>
    %c6_56 = arith.constant 6 : index
    %c0_57 = arith.constant 0 : index
    %c0_58 = arith.constant 0 : index
    %55 = vector.load %arg4[%c6_56, %c0_57, %c0_58] : memref<16x20x256xf32, #tpu.memory_space<vmem>>, vector<1x20x256xf32>
    %56 = vector.shape_cast %55 : vector<1x20x256xf32> to vector<20x256xf32>
    %cst_59 = arith.constant dense<0.000000e+00> : vector<2x256xf32>
    %57 = tpu.matmul %54, %56, %cst_59 {dimension_numbers = #tpu.dot_dimension_numbers<[1], [0], [0], [1], [0, 0, 1, 1], [], []>} : vector<2x20xf32>, vector<20x256xf32>, vector<2x256xf32> -> vector<2x256xf32>
    %58 = arith.addf %53, %57 : vector<2x256xf32>
    %c14 = arith.constant 14 : index
    %c0_60 = arith.constant 0 : index
    %59 = vector.load %arg10[%c14, %c0_60] : memref<32x20xf32, #tpu.memory_space<vmem>>, vector<2x20xf32>
    %c7 = arith.constant 7 : index
    %c0_61 = arith.constant 0 : index
    %c0_62 = arith.constant 0 : index
    %60 = vector.load %arg4[%c7, %c0_61, %c0_62] : memref<16x20x256xf32, #tpu.memory_space<vmem>>, vector<1x20x256xf32>
    %61 = vector.shape_cast %60 : vector<1x20x256xf32> to vector<20x256xf32>
    %cst_63 = arith.constant dense<0.000000e+00> : vector<2x256xf32>
    %62 = tpu.matmul %59, %61, %cst_63 {dimension_numbers = #tpu.dot_dimension_numbers<[1], [0], [0], [1], [0, 0, 1, 1], [], []>} : vector<2x20xf32>, vector<20x256xf32>, vector<2x256xf32> -> vector<2x256xf32>
    %63 = arith.addf %58, %62 : vector<2x256xf32>
    %c16 = arith.constant 16 : index
    %c0_64 = arith.constant 0 : index
    %64 = vector.load %arg10[%c16, %c0_64] : memref<32x20xf32, #tpu.memory_space<vmem>>, vector<2x20xf32>
    %c8_65 = arith.constant 8 : index
    %c0_66 = arith.constant 0 : index
    %c0_67 = arith.constant 0 : index
    %65 = vector.load %arg4[%c8_65, %c0_66, %c0_67] : memref<16x20x256xf32, #tpu.memory_space<vmem>>, vector<1x20x256xf32>
    %66 = vector.shape_cast %65 : vector<1x20x256xf32> to vector<20x256xf32>
    %cst_68 = arith.constant dense<0.000000e+00> : vector<2x256xf32>
    %67 = tpu.matmul %64, %66, %cst_68 {dimension_numbers = #tpu.dot_dimension_numbers<[1], [0], [0], [1], [0, 0, 1, 1], [], []>} : vector<2x20xf32>, vector<20x256xf32>, vector<2x256xf32> -> vector<2x256xf32>
    %68 = arith.addf %63, %67 : vector<2x256xf32>
    %c18 = arith.constant 18 : index
    %c0_69 = arith.constant 0 : index
    %69 = vector.load %arg10[%c18, %c0_69] : memref<32x20xf32, #tpu.memory_space<vmem>>, vector<2x20xf32>
    %c9 = arith.constant 9 : index
    %c0_70 = arith.constant 0 : index
    %c0_71 = arith.constant 0 : index
    %70 = vector.load %arg4[%c9, %c0_70, %c0_71] : memref<16x20x256xf32, #tpu.memory_space<vmem>>, vector<1x20x256xf32>
    %71 = vector.shape_cast %70 : vector<1x20x256xf32> to vector<20x256xf32>
    %cst_72 = arith.constant dense<0.000000e+00> : vector<2x256xf32>
    %72 = tpu.matmul %69, %71, %cst_72 {dimension_numbers = #tpu.dot_dimension_numbers<[1], [0], [0], [1], [0, 0, 1, 1], [], []>} : vector<2x20xf32>, vector<20x256xf32>, vector<2x256xf32> -> vector<2x256xf32>
    %73 = arith.addf %68, %72 : vector<2x256xf32>
    %c20 = arith.constant 20 : index
    %c0_73 = arith.constant 0 : index
    %74 = vector.load %arg10[%c20, %c0_73] : memref<32x20xf32, #tpu.memory_space<vmem>>, vector<2x20xf32>
    %c10_74 = arith.constant 10 : index
    %c0_75 = arith.constant 0 : index
    %c0_76 = arith.constant 0 : index
    %75 = vector.load %arg4[%c10_74, %c0_75, %c0_76] : memref<16x20x256xf32, #tpu.memory_space<vmem>>, vector<1x20x256xf32>
    %76 = vector.shape_cast %75 : vector<1x20x256xf32> to vector<20x256xf32>
    %cst_77 = arith.constant dense<0.000000e+00> : vector<2x256xf32>
    %77 = tpu.matmul %74, %76, %cst_77 {dimension_numbers = #tpu.dot_dimension_numbers<[1], [0], [0], [1], [0, 0, 1, 1], [], []>} : vector<2x20xf32>, vector<20x256xf32>, vector<2x256xf32> -> vector<2x256xf32>
    %78 = arith.addf %73, %77 : vector<2x256xf32>
    %c22 = arith.constant 22 : index
    %c0_78 = arith.constant 0 : index
    %79 = vector.load %arg10[%c22, %c0_78] : memref<32x20xf32, #tpu.memory_space<vmem>>, vector<2x20xf32>
    %c11 = arith.constant 11 : index
    %c0_79 = arith.constant 0 : index
    %c0_80 = arith.constant 0 : index
    %80 = vector.load %arg4[%c11, %c0_79, %c0_80] : memref<16x20x256xf32, #tpu.memory_space<vmem>>, vector<1x20x256xf32>
    %81 = vector.shape_cast %80 : vector<1x20x256xf32> to vector<20x256xf32>
    %cst_81 = arith.constant dense<0.000000e+00> : vector<2x256xf32>
    %82 = tpu.matmul %79, %81, %cst_81 {dimension_numbers = #tpu.dot_dimension_numbers<[1], [0], [0], [1], [0, 0, 1, 1], [], []>} : vector<2x20xf32>, vector<20x256xf32>, vector<2x256xf32> -> vector<2x256xf32>
    %83 = arith.addf %78, %82 : vector<2x256xf32>
    %c24 = arith.constant 24 : index
    %c0_82 = arith.constant 0 : index
    %84 = vector.load %arg10[%c24, %c0_82] : memref<32x20xf32, #tpu.memory_space<vmem>>, vector<2x20xf32>
    %c12_83 = arith.constant 12 : index
    %c0_84 = arith.constant 0 : index
    %c0_85 = arith.constant 0 : index
    %85 = vector.load %arg4[%c12_83, %c0_84, %c0_85] : memref<16x20x256xf32, #tpu.memory_space<vmem>>, vector<1x20x256xf32>
    %86 = vector.shape_cast %85 : vector<1x20x256xf32> to vector<20x256xf32>
    %cst_86 = arith.constant dense<0.000000e+00> : vector<2x256xf32>
    %87 = tpu.matmul %84, %86, %cst_86 {dimension_numbers = #tpu.dot_dimension_numbers<[1], [0], [0], [1], [0, 0, 1, 1], [], []>} : vector<2x20xf32>, vector<20x256xf32>, vector<2x256xf32> -> vector<2x256xf32>
    %88 = arith.addf %83, %87 : vector<2x256xf32>
    %c26 = arith.constant 26 : index
    %c0_87 = arith.constant 0 : index
    %89 = vector.load %arg10[%c26, %c0_87] : memref<32x20xf32, #tpu.memory_space<vmem>>, vector<2x20xf32>
    %c13 = arith.constant 13 : index
    %c0_88 = arith.constant 0 : index
    %c0_89 = arith.constant 0 : index
    %90 = vector.load %arg4[%c13, %c0_88, %c0_89] : memref<16x20x256xf32, #tpu.memory_space<vmem>>, vector<1x20x256xf32>
    %91 = vector.shape_cast %90 : vector<1x20x256xf32> to vector<20x256xf32>
    %cst_90 = arith.constant dense<0.000000e+00> : vector<2x256xf32>
    %92 = tpu.matmul %89, %91, %cst_90 {dimension_numbers = #tpu.dot_dimension_numbers<[1], [0], [0], [1], [0, 0, 1, 1], [], []>} : vector<2x20xf32>, vector<20x256xf32>, vector<2x256xf32> -> vector<2x256xf32>
    %93 = arith.addf %88, %92 : vector<2x256xf32>
    %c28 = arith.constant 28 : index
    %c0_91 = arith.constant 0 : index
    %94 = vector.load %arg10[%c28, %c0_91] : memref<32x20xf32, #tpu.memory_space<vmem>>, vector<2x20xf32>
    %c14_92 = arith.constant 14 : index
    %c0_93 = arith.constant 0 : index
    %c0_94 = arith.constant 0 : index
    %95 = vector.load %arg4[%c14_92, %c0_93, %c0_94] : memref<16x20x256xf32, #tpu.memory_space<vmem>>, vector<1x20x256xf32>
    %96 = vector.shape_cast %95 : vector<1x20x256xf32> to vector<20x256xf32>
    %cst_95 = arith.constant dense<0.000000e+00> : vector<2x256xf32>
    %97 = tpu.matmul %94, %96, %cst_95 {dimension_numbers = #tpu.dot_dimension_numbers<[1], [0], [0], [1], [0, 0, 1, 1], [], []>} : vector<2x20xf32>, vector<20x256xf32>, vector<2x256xf32> -> vector<2x256xf32>
    %98 = arith.addf %93, %97 : vector<2x256xf32>
    %c30 = arith.constant 30 : index
    %c0_96 = arith.constant 0 : index
    %99 = vector.load %arg10[%c30, %c0_96] : memref<32x20xf32, #tpu.memory_space<vmem>>, vector<2x20xf32>
    %c15 = arith.constant 15 : index
    %c0_97 = arith.constant 0 : index
    %c0_98 = arith.constant 0 : index
    %100 = vector.load %arg4[%c15, %c0_97, %c0_98] : memref<16x20x256xf32, #tpu.memory_space<vmem>>, vector<1x20x256xf32>
    %101 = vector.shape_cast %100 : vector<1x20x256xf32> to vector<20x256xf32>
    %cst_99 = arith.constant dense<0.000000e+00> : vector<2x256xf32>
    %102 = tpu.matmul %99, %101, %cst_99 {dimension_numbers = #tpu.dot_dimension_numbers<[1], [0], [0], [1], [0, 0, 1, 1], [], []>} : vector<2x20xf32>, vector<20x256xf32>, vector<2x256xf32> -> vector<2x256xf32>
    %103 = arith.addf %98, %102 : vector<2x256xf32>
    %c0_100 = arith.constant 0 : index
    %c0_101 = arith.constant 0 : index
    %104 = vector.load %arg5[%c0_100, %c0_101] : memref<1x256xf32, #tpu.memory_space<vmem>>, vector<1x256xf32>
    %105 = vector.broadcast %104 : vector<1x256xf32> to vector<2x256xf32>
    %106 = arith.addf %103, %105 : vector<2x256xf32>
    %cst_102 = arith.constant 0.000000e+00 : f32
    %107 = vector.broadcast %cst_102 : f32 to vector<2x256xf32>
    %108 = arith.maximumf %106, %107 : vector<2x256xf32>
    %c0_103 = arith.constant 0 : index
    %c0_104 = arith.constant 0 : index
    %109 = vector.load %arg6[%c0_103, %c0_104] : memref<256x128xf32, #tpu.memory_space<vmem>>, vector<256x128xf32>
    %cst_105 = arith.constant dense<0.000000e+00> : vector<2x128xf32>
    %110 = tpu.matmul %108, %109, %cst_105 {dimension_numbers = #tpu.dot_dimension_numbers<[1], [0], [0], [1], [0, 0, 1, 1], [], []>} : vector<2x256xf32>, vector<256x128xf32>, vector<2x128xf32> -> vector<2x128xf32>
    %c0_106 = arith.constant 0 : index
    %c0_107 = arith.constant 0 : index
    %111 = vector.load %arg7[%c0_106, %c0_107] : memref<1x128xf32, #tpu.memory_space<vmem>>, vector<1x128xf32>
    %112 = vector.broadcast %111 : vector<1x128xf32> to vector<2x128xf32>
    %113 = arith.addf %110, %112 : vector<2x128xf32>
    %c0_108 = arith.constant 0 : index
    %c0_109 = arith.constant 0 : index
    %114 = vector.load %arg11[%c0_108, %c0_109] : memref<2x128xf32, #tpu.memory_space<vmem>>, vector<2x128xf32>
    tpu.vector_store %arg11[%c0_108, %c0_109], %113 {strides = array<i32>} : memref<2x128xf32, #tpu.memory_space<vmem>>, vector<2x128xf32>,
    %c0_110 = arith.constant 0 : index
    %c0_111 = arith.constant 0 : index
    %115 = vector.load %arg8[%c0_110, %c0_111] : memref<128x128xf32, #tpu.memory_space<vmem>>, vector<128x128xf32>
    %cst_112 = arith.constant dense<0.000000e+00> : vector<2x128xf32>
    %116 = tpu.matmul %113, %115, %cst_112 {dimension_numbers = #tpu.dot_dimension_numbers<[1], [0], [0], [1], [0, 0, 1, 1], [], []>} : vector<2x128xf32>, vector<128x128xf32>, vector<2x128xf32> -> vector<2x128xf32>
    %c0_113 = arith.constant 0 : index
    %c0_114 = arith.constant 0 : index
    %117 = vector.load %arg9[%c0_113, %c0_114] : memref<1x128xf32, #tpu.memory_space<vmem>>, vector<1x128xf32>
    %118 = vector.broadcast %117 : vector<1x128xf32> to vector<2x128xf32>
    %119 = arith.addf %116, %118 : vector<2x128xf32>
    %c0_115 = arith.constant 0 : index
    %c0_116 = arith.constant 0 : index
    %120 = vector.load %arg12[%c0_115, %c0_116] : memref<2x128xf32, #tpu.memory_space<vmem>>, vector<2x128xf32>
    tpu.vector_store %arg12[%c0_115, %c0_116], %119 {strides = array<i32>} : memref<2x128xf32, #tpu.memory_space<vmem>>, vector<2x128xf32>,
    return
  }
  func.func @transform_0(%arg0: i32) -> (i32, i32, i32) {
    %c0_i32 = arith.constant 0 : i32
    %c0_i32_0 = arith.constant 0 : i32
    %c0_i32_1 = arith.constant 0 : i32
    %c0_i32_2 = arith.constant 0 : i32
    return %c0_i32, %c0_i32_0, %c0_i32_1 : i32, i32, i32
  }
  func.func @transform_1(%arg0: i32) -> (i32, i32) {
    %c0_i32 = arith.constant 0 : i32
    %c0_i32_0 = arith.constant 0 : i32
    %c0_i32_1 = arith.constant 0 : i32
    return %c0_i32, %c0_i32_0 : i32, i32
  }
  func.func @transform_2(%arg0: i32) -> (i32, i32) {
    %c0_i32 = arith.constant 0 : i32
    %c0_i32_0 = arith.constant 0 : i32
    %c0_i32_1 = arith.constant 0 : i32
    return %c0_i32, %c0_i32_0 : i32, i32
  }
  func.func @transform_3(%arg0: i32) -> (i32, i32, i32) {
    %c0_i32 = arith.constant 0 : i32
    %c0_i32_0 = arith.constant 0 : i32
    %c0_i32_1 = arith.constant 0 : i32
    %c0_i32_2 = arith.constant 0 : i32
    return %c0_i32, %c0_i32_0, %c0_i32_1 : i32, i32, i32
  }
  func.func @transform_4(%arg0: i32) -> (i32, i32) {
    %c0_i32 = arith.constant 0 : i32
    %c0_i32_0 = arith.constant 0 : i32
    %c0_i32_1 = arith.constant 0 : i32
    return %c0_i32, %c0_i32_0 : i32, i32
  }
  func.func @transform_5(%arg0: i32) -> (i32, i32) {
    %c0_i32 = arith.constant 0 : i32
    %c0_i32_0 = arith.constant 0 : i32
    %c0_i32_1 = arith.constant 0 : i32
    return %c0_i32, %c0_i32_0 : i32, i32
  }
  func.func @transform_6(%arg0: i32) -> (i32, i32) {
    %c0_i32 = arith.constant 0 : i32
    %c0_i32_0 = arith.constant 0 : i32
    %c0_i32_1 = arith.constant 0 : i32
    return %c0_i32, %c0_i32_0 : i32, i32
  }
  func.func @transform_7(%arg0: i32) -> (i32, i32) {
    %c0_i32 = arith.constant 0 : i32
    %c0_i32_0 = arith.constant 0 : i32
    %c0_i32_1 = arith.constant 0 : i32
    return %c0_i32, %c0_i32_0 : i32, i32
  }
  func.func @transform_8(%arg0: i32) -> (i32, i32) {
    %c0_i32 = arith.constant 0 : i32
    %c0_i32_0 = arith.constant 0 : i32
    %c0_i32_1 = arith.constant 0 : i32
    return %c0_i32, %c0_i32_0 : i32, i32
  }
  func.func @transform_9(%arg0: i32) -> (i32, i32) {
    %c0_i32 = arith.constant 0 : i32
    %c0_i32_0 = arith.constant 0 : i32
    %c0_i32_1 = arith.constant 0 : i32
    return %c0_i32, %c0_i32_0 : i32, i32
  }
  func.func @transform_10(%arg0: i32) -> (i32, i32) {
    %c0_i32 = arith.constant 0 : i32
    %c0_i32_0 = arith.constant 0 : i32
    %c0_i32_1 = arith.constant 0 : i32
    return %c0_i32, %c0_i32_0 : i32, i32
  }
  func.func @transform_11(%arg0: i32) -> (i32, i32) {
    %c0_i32 = arith.constant 0 : i32
    %c0_i32_0 = arith.constant 0 : i32
    %c0_i32_1 = arith.constant 0 : i32
    return %c0_i32, %c0_i32_0 : i32, i32
  }
}

</mosaic_0001>

<llo_original>
// kernel: cnn_mnist_forward.2
$region0: #{cnn_mnist_forward.2}
  #allocation0 [shape = 'u32[]', space=smem, size = 0x4, offset = 0x4, fixed_abs, tag = 'smem constant byte address 0x4 - core index']
  #allocation1 [shape = 'u32[144,128]{1,0:T(1,128)}', space=vmem, size = 0x12000, scoped, tag = 'internal scratch']
  %s0 = inlined_call_operand.vmem [shape: f32[4,25,288], index: 0, kind: input, shape index: {}]
  %s1 = inlined_call_operand.vmem [shape: f32[10,25], index: 1, kind: input, shape index: {}]
  %s2 = inlined_call_operand.vmem [shape: f32[10,1], index: 2, kind: input, shape index: {}]
  %s3 = inlined_call_operand.vmem [shape: f32[10,288], index: 3, kind: output, shape index: {}]
  %s4 = sld [smem:[#allocation0]]
  $region22: #{cnn_mnist_forward.2} parent=0
    _
  %s6 = ssub.s32 1, %s4
  %s7 = scalar_select 0, %s6, %s4
  // Predicated region
  $region2: #{cnn_mnist_forward.2} parent=0 // pred_check
    _
  $region3: #{cnn_mnist_forward.2} parent=0 // pred_check_branch
    %9 = sbr.rel (0) target = $region5
  $region4: #{cnn_mnist_forward.2} parent=0 // pred_region
    _
  $region5: #{cnn_mnist_forward.2} parent=0 // pred_fallthru
    _
  // Predicated region
  $region6: #{cnn_mnist_forward.2} parent=0 // pred_check
    _
  $region7: #{cnn_mnist_forward.2} parent=0 // pred_check_branch
    %11 = sbr.rel (0) target = $region9
  $region8: #{cnn_mnist_forward.2} parent=0 // pred_region
    _
  $region9: #{cnn_mnist_forward.2} parent=0 // pred_fallthru
    _
  // Predicated region
  $region10: #{cnn_mnist_forward.2} parent=0 // pred_check
    _
  $region11: #{cnn_mnist_forward.2} parent=0 // pred_check_branch
    %13 = sbr.rel (0) target = $region13
  $region12: #{cnn_mnist_forward.2} parent=0 // pred_region
    _
  $region13: #{cnn_mnist_forward.2} parent=0 // pred_fallthru
    _
  %v14 = vld [vmem:[%s1] sm:$0xff]
  %v15 = vld [vmem:[%s1 + $0x8] sm:$0x3]
  %v16 = vld [vmem:[%s0] sm:$0xff]
  %v17 = vld [vmem:[%s0 + $0x8] sm:$0xff]
  %v18 = vld [vmem:[%s0 + $0x10] sm:$0xff]
  %v19 = vld [vmem:[%s0 + $0x18] sm:$0xff]
  %v20 = vld [vmem:[%s0 + $0x20] sm:$0xff]
  %v21 = vld [vmem:[%s0 + $0x28] sm:$0xff]
  %v22 = vld [vmem:[%s0 + $0x30] sm:$0xff]
  %v23 = vld [vmem:[%s0 + $0x38] sm:$0xff]
  %v24 = vld [vmem:[%s0 + $0x40] sm:$0xff]
  %v25 = vld [vmem:[%s0 + $0x48] sm:$0x1]
  %v26 = vld [vmem:[%s0 + $0x50] sm:$0x1]
  %v27 = vld [vmem:[%s0 + $0x58] sm:$0x1]
  %vm28 = vcmask 203776
  %v30 = vsel %vm28, %v14, 0
  %v33 = vsel %vm28, %v15, 0
  %vm35 = vcmask 1040384
  %v37 = vsel %vm35, %v25, 0
  %v40 = vsel %vm35, %v26, 0
  %v43 = vsel %vm35, %v27, 0
  %45 = vmatprep.subr.mxu0 %v17
  %46 = vmatpush1.msra.mxu0 %v16
  %47 = vmatprep.subr.mxu0 %v20
  %48 = vmatpush1.msra.mxu0 %v19
  %49 = vmatprep.subr.mxu0 %v23
  %50 = vmatpush1.msra.mxu0 %v22
  %51 = vmatprep.subr.mxu0 %v40
  %52 = vmatpush1.msra.mxu0 %v37
  %53 = vmatprep.subr.mxu0 0.0
  %54 = vmatpush1.msra.mxu0 0.0
  %55 = vmatprep.subr.mxu0 0.0
  %56 = vmatpush1.msra.mxu0 0.0
  %57 = vmatprep.subr.mxu0 0.0
  %58 = vmatpush1.msra.mxu0 0.0
  %59 = vmatprep.subr.mxu0 0.0
  %60 = vmatpush1.msra.mxu0 0.0
  %61 = vmatprep.subr.mxu0 0.0
  %62 = vmatpush1.msra.mxu0 0.0
  %63 = vmatprep.subr.mxu0 0.0
  %64 = vmatpush1.msra.mxu0 0.0
  %65 = vmatprep.subr.mxu0 0.0
  %66 = vmatpush1.msra.mxu0 0.0
  %67 = vmatprep.subr.mxu0 0.0
  %68 = vmatpush1.msra.mxu0 0.0
  %69 = vmatprep.subr.mxu0 0.0
  %70 = vmatpush1.msra.mxu0 0.0
  %71 = vmatprep.subr.mxu0 0.0
  %72 = vmatpush1.msra.mxu0 0.0
  %73 = vmatprep.subr.mxu0 0.0
  %74 = vmatpush1.msra.mxu0 0.0
  %75 = vmatprep.subr.mxu0 0.0
  %76 = vmatpush1.msra.mxu0 0.0
  %77 = vmatprep.subr.mxu0 0.0
  %78 = vmatpush1.msra.mxu0 0.0
  %79 = vmatprep.subr.mxu0 0.0
  %80 = vmatpush1.msra.mxu0 0.0
  %81 = vmatprep.subr.mxu0 0.0
  %82 = vmatpush1.msra.mxu0 0.0
  %83 = vmatprep.subr.mxu0 0.0
  %84 = vmatpush1.msra.mxu0 0.0
  %85 = vmatprep.subr.mxu0 0.0
  %86 = vmatpush1.msra.mxu0 0.0
  %87 = vmatprep.subr.mxu0 0.0
  %88 = vmatpush1.msra.mxu0 0.0
  %89 = vmatprep.subr.mxu0 0.0
  %90 = vmatpush1.msra.mxu0 0.0
  %91 = vmatprep.subr.mxu0 0.0
  %92 = vmatpush1.msra.mxu0 0.0
  %93 = vmatprep.subr.mxu0 0.0
  %94 = vmatpush1.msra.mxu0 0.0
  %95 = vmatprep.subr.mxu0 0.0
  %96 = vmatpush1.msra.mxu0 0.0
  %97 = vmatprep.subr.mxu0 0.0
  %98 = vmatpush1.msra.mxu0 0.0
  %99 = vmatprep.subr.mxu0 0.0
  %100 = vmatpush1.msra.mxu0 0.0
  %101 = vmatprep.subr.mxu0 0.0
  %102 = vmatpush1.msra.mxu0 0.0
  %103 = vmatprep.subr.mxu0 0.0
  %104 = vmatpush1.msra.mxu0 0.0
  %105 = vmatprep.subr.mxu0 0.0
  %106 = vmatpush1.msra.mxu0 0.0
  %107 = vmatprep.subr.mxu0 0.0
  %108 = vmatpush1.msra.mxu0 0.0
  %109 = vmatprep.mubr.f32.mxu0 0.0
  %110 = vmatmul.mubr.f32.gmra.mrb[0].mxu0 %v30
  %v111 = vpop.f32.mrb[0].mxu0
  %v112 = vadd.f32 0.0, %v111
  %v113 = vpop.f32.mrb[0].mxu0
  %v114 = vadd.f32 0.0, %v113
  %115 = vmatprep.mubr.f32.mxu0 0.0
  %116 = vmatmul.mubr.f32.gmra.mrb[0].mxu0 %v33
  %v117 = vpop.f32.mrb[0].mxu0
  %v118 = vadd.f32 0.0, %v117
  %v119 = vpop.f32.mrb[0].mxu0
  %v120 = vadd.f32 0.0, %v119
  %121 = vdwg.mxu0
  %122 = vmatprep.subr.mxu0 0.0
  %123 = vmatpush1.msra.mxu0 %v18
  %124 = vmatprep.subr.mxu0 0.0
  %125 = vmatpush1.msra.mxu0 %v21
  %126 = vmatprep.subr.mxu0 0.0
  %127 = vmatpush1.msra.mxu0 %v24
  %128 = vmatprep.subr.mxu0 0.0
  %129 = vmatpush1.msra.mxu0 %v43
  %130 = vmatprep.subr.mxu0 0.0
  %131 = vmatpush1.msra.mxu0 0.0
  %132 = vmatprep.subr.mxu0 0.0
  %133 = vmatpush1.msra.mxu0 0.0
  %134 = vmatprep.subr.mxu0 0.0
  %135 = vmatpush1.msra.mxu0 0.0
  %136 = vmatprep.subr.mxu0 0.0
  %137 = vmatpush1.msra.mxu0 0.0
  %138 = vmatprep.subr.mxu0 0.0
  %139 = vmatpush1.msra.mxu0 0.0
  %140 = vmatprep.subr.mxu0 0.0
  %141 = vmatpush1.msra.mxu0 0.0
  %142 = vmatprep.subr.mxu0 0.0
  %143 = vmatpush1.msra.mxu0 0.0
  %144 = vmatprep.subr.mxu0 0.0
  %145 = vmatpush1.msra.mxu0 0.0
  %146 = vmatprep.subr.mxu0 0.0
  %147 = vmatpush1.msra.mxu0 0.0
  %148 = vmatprep.subr.mxu0 0.0
  %149 = vmatpush1.msra.mxu0 0.0
  %150 = vmatprep.subr.mxu0 0.0
  %151 = vmatpush1.msra.mxu0 0.0
  %152 = vmatprep.subr.mxu0 0.0
  %153 = vmatpush1.msra.mxu0 0.0
  %154 = vmatprep.subr.mxu0 0.0
  %155 = vmatpush1.msra.mxu0 0.0
  %156 = vmatprep.subr.mxu0 0.0
  %157 = vmatpush1.msra.mxu0 0.0
  %158 = vmatprep.subr.mxu0 0.0
  %159 = vmatpush1.msra.mxu0 0.0
  %160 = vmatprep.subr.mxu0 0.0
  %161 = vmatpush1.msra.mxu0 0.0
  %162 = vmatprep.subr.mxu0 0.0
  %163 = vmatpush1.msra.mxu0 0.0
  %164 = vmatprep.subr.mxu0 0.0
  %165 = vmatpush1.msra.mxu0 0.0
  %166 = vmatprep.subr.mxu0 0.0
  %167 = vmatpush1.msra.mxu0 0.0
  %168 = vmatprep.subr.mxu0 0.0
  %169 = vmatpush1.msra.mxu0 0.0
  %170 = vmatprep.subr.mxu0 0.0
  %171 = vmatpush1.msra.mxu0 0.0
  %172 = vmatprep.subr.mxu0 0.0
  %173 = vmatpush1.msra.mxu0 0.0
  %174 = vmatprep.subr.mxu0 0.0
  %175 = vmatpush1.msra.mxu0 0.0
  %176 = vmatprep.subr.mxu0 0.0
  %177 = vmatpush1.msra.mxu0 0.0
  %178 = vmatprep.subr.mxu0 0.0
  %179 = vmatpush1.msra.mxu0 0.0
  %180 = vmatprep.subr.mxu0 0.0
  %181 = vmatpush1.msra.mxu0 0.0
  %182 = vmatprep.subr.mxu0 0.0
  %183 = vmatpush1.msra.mxu0 0.0
  %184 = vmatprep.subr.mxu0 0.0
  %185 = vmatpush1.msra.mxu0 0.0
  %186 = vmatprep.mubr.f32.mxu0 0.0
  %187 = vmatmul.mubr.f32.gmra.mrb[0].mxu0 %v30
  %v188 = vpop.f32.mrb[0].mxu0
  %v189 = vadd.f32 0.0, %v188
  %v190 = vpop.f32.mrb[0].mxu0
  %191 = vmatprep.mubr.f32.mxu0 0.0
  %192 = vmatmul.mubr.f32.gmra.mrb[0].mxu0 %v33
  %v193 = vpop.f32.mrb[0].mxu0
  %v194 = vadd.f32 0.0, %v193
  %v195 = vpop.f32.mrb[0].mxu0
  %196 = vdwg.mxu0
  %s197 = scalar_lea.vmem %s0, 96
  %v198 = vld [vmem:[%s197] sm:$0xff]
  %v199 = vld [vmem:[%s197 + $0x8] sm:$0xff]
  %v200 = vld [vmem:[%s197 + $0x10] sm:$0xff]
  %v201 = vld [vmem:[%s197 + $0x18] sm:$0xff]
  %v202 = vld [vmem:[%s197 + $0x20] sm:$0xff]
  %v203 = vld [vmem:[%s197 + $0x28] sm:$0xff]
  %v204 = vld [vmem:[%s197 + $0x30] sm:$0xff]
  %v205 = vld [vmem:[%s197 + $0x38] sm:$0xff]
  %v206 = vld [vmem:[%s197 + $0x40] sm:$0xff]
  %v207 = vld [vmem:[%s197 + $0x48] sm:$0x1]
  %v208 = vld [vmem:[%s197 + $0x50] sm:$0x1]
  %v209 = vld [vmem:[%s197 + $0x58] sm:$0x1]
  %v211 = vsel %vm35, %v207, 0
  %v214 = vsel %vm35, %v208, 0
  %v217 = vsel %vm35, %v209, 0
  %219 = vmatprep.subr.mxu0 %v199
  %220 = vmatpush1.msra.mxu0 %v198
  %221 = vmatprep.subr.mxu0 %v202
  %222 = vmatpush1.msra.mxu0 %v201
  %223 = vmatprep.subr.mxu0 %v205
  %224 = vmatpush1.msra.mxu0 %v204
  %225 = vmatprep.subr.mxu0 %v214
  %226 = vmatpush1.msra.mxu0 %v211
  %227 = vmatprep.subr.mxu0 0.0
  %228 = vmatpush1.msra.mxu0 0.0
  %229 = vmatprep.subr.mxu0 0.0
  %230 = vmatpush1.msra.mxu0 0.0
  %231 = vmatprep.subr.mxu0 0.0
  %232 = vmatpush1.msra.mxu0 0.0
  %233 = vmatprep.subr.mxu0 0.0
  %234 = vmatpush1.msra.mxu0 0.0
  %235 = vmatprep.subr.mxu0 0.0
  %236 = vmatpush1.msra.mxu0 0.0
  %237 = vmatprep.subr.mxu0 0.0
  %238 = vmatpush1.msra.mxu0 0.0
  %239 = vmatprep.subr.mxu0 0.0
  %240 = vmatpush1.msra.mxu0 0.0
  %241 = vmatprep.subr.mxu0 0.0
  %242 = vmatpush1.msra.mxu0 0.0
  %243 = vmatprep.subr.mxu0 0.0
  %244 = vmatpush1.msra.mxu0 0.0
  %245 = vmatprep.subr.mxu0 0.0
  %246 = vmatpush1.msra.mxu0 0.0
  %247 = vmatprep.subr.mxu0 0.0
  %248 = vmatpush1.msra.mxu0 0.0
  %249 = vmatprep.subr.mxu0 0.0
  %250 = vmatpush1.msra.mxu0 0.0
  %251 = vmatprep.subr.mxu0 0.0
  %252 = vmatpush1.msra.mxu0 0.0
  %253 = vmatprep.subr.mxu0 0.0
  %254 = vmatpush1.msra.mxu0 0.0
  %255 = vmatprep.subr.mxu0 0.0
  %256 = vmatpush1.msra.mxu0 0.0
  %257 = vmatprep.subr.mxu0 0.0
  %258 = vmatpush1.msra.mxu0 0.0
  %259 = vmatprep.subr.mxu0 0.0
  %260 = vmatpush1.msra.mxu0 0.0
  %261 = vmatprep.subr.mxu0 0.0
  %262 = vmatpush1.msra.mxu0 0.0
  %263 = vmatprep.subr.mxu0 0.0
  %264 = vmatpush1.msra.mxu0 0.0
  %265 = vmatprep.subr.mxu0 0.0
  %266 = vmatpush1.msra.mxu0 0.0
  %267 = vmatprep.subr.mxu0 0.0
  %268 = vmatpush1.msra.mxu0 0.0
  %269 = vmatprep.subr.mxu0 0.0
  %270 = vmatpush1.msra.mxu0 0.0
  %271 = vmatprep.subr.mxu0 0.0
  %272 = vmatpush1.msra.mxu0 0.0
  %273 = vmatprep.subr.mxu0 0.0
  %274 = vmatpush1.msra.mxu0 0.0
  %275 = vmatprep.subr.mxu0 0.0
  %276 = vmatpush1.msra.mxu0 0.0
  %277 = vmatprep.subr.mxu0 0.0
  %278 = vmatpush1.msra.mxu0 0.0
  %279 = vmatprep.subr.mxu0 0.0
  %280 = vmatpush1.msra.mxu0 0.0
  %281 = vmatprep.subr.mxu0 0.0
  %282 = vmatpush1.msra.mxu0 0.0
  %283 = vmatprep.mubr.f32.mxu0 0.0
  %284 = vmatmul.mubr.f32.gmra.mrb[0].mxu0 %v30
  %v285 = vpop.f32.mrb[0].mxu0
  %v286 = vadd.f32 0.0, %v285
  %v287 = vpop.f32.mrb[0].mxu0
  %v288 = vadd.f32 0.0, %v287
  %289 = vmatprep.mubr.f32.mxu0 0.0
  %290 = vmatmul.mubr.f32.gmra.mrb[0].mxu0 %v33
  %v291 = vpop.f32.mrb[0].mxu0
  %v292 = vadd.f32 0.0, %v291
  %v293 = vpop.f32.mrb[0].mxu0
  %v294 = vadd.f32 0.0, %v293
  %295 = vdwg.mxu0
  %296 = vmatprep.subr.mxu0 0.0
  %297 = vmatpush1.msra.mxu0 %v200
  %298 = vmatprep.subr.mxu0 0.0
  %299 = vmatpush1.msra.mxu0 %v203
  %300 = vmatprep.subr.mxu0 0.0
  %301 = vmatpush1.msra.mxu0 %v206
  %302 = vmatprep.subr.mxu0 0.0
  %303 = vmatpush1.msra.mxu0 %v217
  %304 = vmatprep.subr.mxu0 0.0
  %305 = vmatpush1.msra.mxu0 0.0
  %306 = vmatprep.subr.mxu0 0.0
  %307 = vmatpush1.msra.mxu0 0.0
  %308 = vmatprep.subr.mxu0 0.0
  %309 = vmatpush1.msra.mxu0 0.0
  %310 = vmatprep.subr.mxu0 0.0
  %311 = vmatpush1.msra.mxu0 0.0
  %312 = vmatprep.subr.mxu0 0.0
  %313 = vmatpush1.msra.mxu0 0.0
  %314 = vmatprep.subr.mxu0 0.0
  %315 = vmatpush1.msra.mxu0 0.0
  %316 = vmatprep.subr.mxu0 0.0
  %317 = vmatpush1.msra.mxu0 0.0
  %318 = vmatprep.subr.mxu0 0.0
  %319 = vmatpush1.msra.mxu0 0.0
  %320 = vmatprep.subr.mxu0 0.0
  %321 = vmatpush1.msra.mxu0 0.0
  %322 = vmatprep.subr.mxu0 0.0
  %323 = vmatpush1.msra.mxu0 0.0
  %324 = vmatprep.subr.mxu0 0.0
  %325 = vmatpush1.msra.mxu0 0.0
  %326 = vmatprep.subr.mxu0 0.0
  %327 = vmatpush1.msra.mxu0 0.0
  %328 = vmatprep.subr.mxu0 0.0
  %329 = vmatpush1.msra.mxu0 0.0
  %330 = vmatprep.subr.mxu0 0.0
  %331 = vmatpush1.msra.mxu0 0.0
  %332 = vmatprep.subr.mxu0 0.0
  %333 = vmatpush1.msra.mxu0 0.0
  %334 = vmatprep.subr.mxu0 0.0
  %335 = vmatpush1.msra.mxu0 0.0
  %336 = vmatprep.subr.mxu0 0.0
  %337 = vmatpush1.msra.mxu0 0.0
  %338 = vmatprep.subr.mxu0 0.0
  %339 = vmatpush1.msra.mxu0 0.0
  %340 = vmatprep.subr.mxu0 0.0
  %341 = vmatpush1.msra.mxu0 0.0
  %342 = vmatprep.subr.mxu0 0.0
  %343 = vmatpush1.msra.mxu0 0.0
  %344 = vmatprep.subr.mxu0 0.0
  %345 = vmatpush1.msra.mxu0 0.0
  %346 = vmatprep.subr.mxu0 0.0
  %347 = vmatpush1.msra.mxu0 0.0
  %348 = vmatprep.subr.mxu0 0.0
  %349 = vmatpush1.msra.mxu0 0.0
  %350 = vmatprep.subr.mxu0 0.0
  %351 = vmatpush1.msra.mxu0 0.0
  %352 = vmatprep.subr.mxu0 0.0
  %353 = vmatpush1.msra.mxu0 0.0
  %354 = vmatprep.subr.mxu0 0.0
  %355 = vmatpush1.msra.mxu0 0.0
  %356 = vmatprep.subr.mxu0 0.0
  %357 = vmatpush1.msra.mxu0 0.0
  %358 = vmatprep.subr.mxu0 0.0
  %359 = vmatpush1.msra.mxu0 0.0
  %360 = vmatprep.mubr.f32.mxu0 0.0
  %361 = vmatmul.mubr.f32.gmra.mrb[0].mxu0 %v30
  %v362 = vpop.f32.mrb[0].mxu0
  %v363 = vadd.f32 0.0, %v362
  %v364 = vpop.f32.mrb[0].mxu0
  %365 = vmatprep.mubr.f32.mxu0 0.0
  %366 = vmatmul.mubr.f32.gmra.mrb[0].mxu0 %v33
  %v367 = vpop.f32.mrb[0].mxu0
  %v368 = vadd.f32 0.0, %v367
  %v369 = vpop.f32.mrb[0].mxu0
  %370 = vdwg.mxu0
  %s371 = scalar_lea.vmem %s0, 192
  %v372 = vld [vmem:[%s371] sm:$0xff]
  %v373 = vld [vmem:[%s371 + $0x8] sm:$0xff]
  %v374 = vld [vmem:[%s371 + $0x10] sm:$0xff]
  %v375 = vld [vmem:[%s371 + $0x18] sm:$0xff]
  %v376 = vld [vmem:[%s371 + $0x20] sm:$0xff]
  %v377 = vld [vmem:[%s371 + $0x28] sm:$0xff]
  %v378 = vld [vmem:[%s371 + $0x30] sm:$0xff]
  %v379 = vld [vmem:[%s371 + $0x38] sm:$0xff]
  %v380 = vld [vmem:[%s371 + $0x40] sm:$0xff]
  %v381 = vld [vmem:[%s371 + $0x48] sm:$0x1]
  %v382 = vld [vmem:[%s371 + $0x50] sm:$0x1]
  %v383 = vld [vmem:[%s371 + $0x58] sm:$0x1]
  %v385 = vsel %vm35, %v381, 0
  %v388 = vsel %vm35, %v382, 0
  %v391 = vsel %vm35, %v383, 0
  %393 = vmatprep.subr.mxu0 %v373
  %394 = vmatpush1.msra.mxu0 %v372
  %395 = vmatprep.subr.mxu0 %v376
  %396 = vmatpush1.msra.mxu0 %v375
  %397 = vmatprep.subr.mxu0 %v379
  %398 = vmatpush1.msra.mxu0 %v378
  %399 = vmatprep.subr.mxu0 %v388
  %400 = vmatpush1.msra.mxu0 %v385
  %401 = vmatprep.subr.mxu0 0.0
  %402 = vmatpush1.msra.mxu0 0.0
  %403 = vmatprep.subr.mxu0 0.0
  %404 = vmatpush1.msra.mxu0 0.0
  %405 = vmatprep.subr.mxu0 0.0
  %406 = vmatpush1.msra.mxu0 0.0
  %407 = vmatprep.subr.mxu0 0.0
  %408 = vmatpush1.msra.mxu0 0.0
  %409 = vmatprep.subr.mxu0 0.0
  %410 = vmatpush1.msra.mxu0 0.0
  %411 = vmatprep.subr.mxu0 0.0
  %412 = vmatpush1.msra.mxu0 0.0
  %413 = vmatprep.subr.mxu0 0.0
  %414 = vmatpush1.msra.mxu0 0.0
  %415 = vmatprep.subr.mxu0 0.0
  %416 = vmatpush1.msra.mxu0 0.0
  %417 = vmatprep.subr.mxu0 0.0
  %418 = vmatpush1.msra.mxu0 0.0
  %419 = vmatprep.subr.mxu0 0.0
  %420 = vmatpush1.msra.mxu0 0.0
  %421 = vmatprep.subr.mxu0 0.0
  %422 = vmatpush1.msra.mxu0 0.0
  %423 = vmatprep.subr.mxu0 0.0
  %424 = vmatpush1.msra.mxu0 0.0
  %425 = vmatprep.subr.mxu0 0.0
  %426 = vmatpush1.msra.mxu0 0.0
  %427 = vmatprep.subr.mxu0 0.0
  %428 = vmatpush1.msra.mxu0 0.0
  %429 = vmatprep.subr.mxu0 0.0
  %430 = vmatpush1.msra.mxu0 0.0
  %431 = vmatprep.subr.mxu0 0.0
  %432 = vmatpush1.msra.mxu0 0.0
  %433 = vmatprep.subr.mxu0 0.0
  %434 = vmatpush1.msra.mxu0 0.0
  %435 = vmatprep.subr.mxu0 0.0
  %436 = vmatpush1.msra.mxu0 0.0
  %437 = vmatprep.subr.mxu0 0.0
  %438 = vmatpush1.msra.mxu0 0.0
  %439 = vmatprep.subr.mxu0 0.0
  %440 = vmatpush1.msra.mxu0 0.0
  %441 = vmatprep.subr.mxu0 0.0
  %442 = vmatpush1.msra.mxu0 0.0
  %443 = vmatprep.subr.mxu0 0.0
  %444 = vmatpush1.msra.mxu0 0.0
  %445 = vmatprep.subr.mxu0 0.0
  %446 = vmatpush1.msra.mxu0 0.0
  %447 = vmatprep.subr.mxu0 0.0
  %448 = vmatpush1.msra.mxu0 0.0
  %449 = vmatprep.subr.mxu0 0.0
  %450 = vmatpush1.msra.mxu0 0.0
  %451 = vmatprep.subr.mxu0 0.0
  %452 = vmatpush1.msra.mxu0 0.0
  %453 = vmatprep.subr.mxu0 0.0
  %454 = vmatpush1.msra.mxu0 0.0
  %455 = vmatprep.subr.mxu0 0.0
  %456 = vmatpush1.msra.mxu0 0.0
  %457 = vmatprep.mubr.f32.mxu0 0.0
  %458 = vmatmul.mubr.f32.gmra.mrb[0].mxu0 %v30
  %v459 = vpop.f32.mrb[0].mxu0
  %v460 = vadd.f32 0.0, %v459
  %v461 = vpop.f32.mrb[0].mxu0
  %v462 = vadd.f32 0.0, %v461
  %463 = vmatprep.mubr.f32.mxu0 0.0
  %464 = vmatmul.mubr.f32.gmra.mrb[0].mxu0 %v33
  %v465 = vpop.f32.mrb[0].mxu0
  %v466 = vadd.f32 0.0, %v465
  %v467 = vpop.f32.mrb[0].mxu0
  %v468 = vadd.f32 0.0, %v467
  %469 = vdwg.mxu0
  %470 = vmatprep.subr.mxu0 0.0
  %471 = vmatpush1.msra.mxu0 %v374
  %472 = vmatprep.subr.mxu0 0.0
  %473 = vmatpush1.msra.mxu0 %v377
  %474 = vmatprep.subr.mxu0 0.0
  %475 = vmatpush1.msra.mxu0 %v380
  %476 = vmatprep.subr.mxu0 0.0
  %477 = vmatpush1.msra.mxu0 %v391
  %478 = vmatprep.subr.mxu0 0.0
  %479 = vmatpush1.msra.mxu0 0.0
  %480 = vmatprep.subr.mxu0 0.0
  %481 = vmatpush1.msra.mxu0 0.0
  %482 = vmatprep.subr.mxu0 0.0
  %483 = vmatpush1.msra.mxu0 0.0
  %484 = vmatprep.subr.mxu0 0.0
  %485 = vmatpush1.msra.mxu0 0.0
  %486 = vmatprep.subr.mxu0 0.0
  %487 = vmatpush1.msra.mxu0 0.0
  %488 = vmatprep.subr.mxu0 0.0
  %489 = vmatpush1.msra.mxu0 0.0
  %490 = vmatprep.subr.mxu0 0.0
  %491 = vmatpush1.msra.mxu0 0.0
  %492 = vmatprep.subr.mxu0 0.0
  %493 = vmatpush1.msra.mxu0 0.0
  %494 = vmatprep.subr.mxu0 0.0
  %495 = vmatpush1.msra.mxu0 0.0
  %496 = vmatprep.subr.mxu0 0.0
  %497 = vmatpush1.msra.mxu0 0.0
  %498 = vmatprep.subr.mxu0 0.0
  %499 = vmatpush1.msra.mxu0 0.0
  %500 = vmatprep.subr.mxu0 0.0
  %501 = vmatpush1.msra.mxu0 0.0
  %502 = vmatprep.subr.mxu0 0.0
  %503 = vmatpush1.msra.mxu0 0.0
  %504 = vmatprep.subr.mxu0 0.0
  %505 = vmatpush1.msra.mxu0 0.0
  %506 = vmatprep.subr.mxu0 0.0
  %507 = vmatpush1.msra.mxu0 0.0
  %508 = vmatprep.subr.mxu0 0.0
  %509 = vmatpush1.msra.mxu0 0.0
  %510 = vmatprep.subr.mxu0 0.0
  %511 = vmatpush1.msra.mxu0 0.0
  %512 = vmatprep.subr.mxu0 0.0
  %513 = vmatpush1.msra.mxu0 0.0
  %514 = vmatprep.subr.mxu0 0.0
  %515 = vmatpush1.msra.mxu0 0.0
  %516 = vmatprep.subr.mxu0 0.0
  %517 = vmatpush1.msra.mxu0 0.0
  %518 = vmatprep.subr.mxu0 0.0
  %519 = vmatpush1.msra.mxu0 0.0
  %520 = vmatprep.subr.mxu0 0.0
  %521 = vmatpush1.msra.mxu0 0.0
  %522 = vmatprep.subr.mxu0 0.0
  %523 = vmatpush1.msra.mxu0 0.0
  %524 = vmatprep.subr.mxu0 0.0
  %525 = vmatpush1.msra.mxu0 0.0
  %526 = vmatprep.subr.mxu0 0.0
  %527 = vmatpush1.msra.mxu0 0.0
  %528 = vmatprep.subr.mxu0 0.0
  %529 = vmatpush1.msra.mxu0 0.0
  %530 = vmatprep.subr.mxu0 0.0
  %531 = vmatpush1.msra.mxu0 0.0
  %532 = vmatprep.subr.mxu0 0.0
  %533 = vmatpush1.msra.mxu0 0.0
  %534 = vmatprep.mubr.f32.mxu0 0.0
  %535 = vmatmul.mubr.f32.gmra.mrb[0].mxu0 %v30
  %v536 = vpop.f32.mrb[0].mxu0
  %v537 = vadd.f32 0.0, %v536
  %v538 = vpop.f32.mrb[0].mxu0
  %539 = vmatprep.mubr.f32.mxu0 0.0
  %540 = vmatmul.mubr.f32.gmra.mrb[0].mxu0 %v33
  %v541 = vpop.f32.mrb[0].mxu0
  %v542 = vadd.f32 0.0, %v541
  %v543 = vpop.f32.mrb[0].mxu0
  %544 = vdwg.mxu0
  %s545 = scalar_lea.vmem %s0, 288
  %v546 = vld [vmem:[%s545] sm:$0xff]
  %v547 = vld [vmem:[%s545 + $0x8] sm:$0xff]
  %v548 = vld [vmem:[%s545 + $0x10] sm:$0xff]
  %v549 = vld [vmem:[%s545 + $0x18] sm:$0xff]
  %v550 = vld [vmem:[%s545 + $0x20] sm:$0xff]
  %v551 = vld [vmem:[%s545 + $0x28] sm:$0xff]
  %v552 = vld [vmem:[%s545 + $0x30] sm:$0xff]
  %v553 = vld [vmem:[%s545 + $0x38] sm:$0xff]
  %v554 = vld [vmem:[%s545 + $0x40] sm:$0xff]
  %v555 = vld [vmem:[%s545 + $0x48] sm:$0x1]
  %v556 = vld [vmem:[%s545 + $0x50] sm:$0x1]
  %v557 = vld [vmem:[%s545 + $0x58] sm:$0x1]
  %v559 = vsel %vm35, %v555, 0
  %v562 = vsel %vm35, %v556, 0
  %v565 = vsel %vm35, %v557, 0
  %567 = vmatprep.subr.mxu0 %v547
  %568 = vmatpush1.msra.mxu0 %v546
  %569 = vmatprep.subr.mxu0 %v550
  %570 = vmatpush1.msra.mxu0 %v549
  %571 = vmatprep.subr.mxu0 %v553
  %572 = vmatpush1.msra.mxu0 %v552
  %573 = vmatprep.subr.mxu0 %v562
  %574 = vmatpush1.msra.mxu0 %v559
  %575 = vmatprep.subr.mxu0 0.0
  %576 = vmatpush1.msra.mxu0 0.0
  %577 = vmatprep.subr.mxu0 0.0
  %578 = vmatpush1.msra.mxu0 0.0
  %579 = vmatprep.subr.mxu0 0.0
  %580 = vmatpush1.msra.mxu0 0.0
  %581 = vmatprep.subr.mxu0 0.0
  %582 = vmatpush1.msra.mxu0 0.0
  %583 = vmatprep.subr.mxu0 0.0
  %584 = vmatpush1.msra.mxu0 0.0
  %585 = vmatprep.subr.mxu0 0.0
  %586 = vmatpush1.msra.mxu0 0.0
  %587 = vmatprep.subr.mxu0 0.0
  %588 = vmatpush1.msra.mxu0 0.0
  %589 = vmatprep.subr.mxu0 0.0
  %590 = vmatpush1.msra.mxu0 0.0
  %591 = vmatprep.subr.mxu0 0.0
  %592 = vmatpush1.msra.mxu0 0.0
  %593 = vmatprep.subr.mxu0 0.0
  %594 = vmatpush1.msra.mxu0 0.0
  %595 = vmatprep.subr.mxu0 0.0
  %596 = vmatpush1.msra.mxu0 0.0
  %597 = vmatprep.subr.mxu0 0.0
  %598 = vmatpush1.msra.mxu0 0.0
  %599 = vmatprep.subr.mxu0 0.0
  %600 = vmatpush1.msra.mxu0 0.0
  %601 = vmatprep.subr.mxu0 0.0
  %602 = vmatpush1.msra.mxu0 0.0
  %603 = vmatprep.subr.mxu0 0.0
  %604 = vmatpush1.msra.mxu0 0.0
  %605 = vmatprep.subr.mxu0 0.0
  %606 = vmatpush1.msra.mxu0 0.0
  %607 = vmatprep.subr.mxu0 0.0
  %608 = vmatpush1.msra.mxu0 0.0
  %609 = vmatprep.subr.mxu0 0.0
  %610 = vmatpush1.msra.mxu0 0.0
  %611 = vmatprep.subr.mxu0 0.0
  %612 = vmatpush1.msra.mxu0 0.0
  %613 = vmatprep.subr.mxu0 0.0
  %614 = vmatpush1.msra.mxu0 0.0
  %615 = vmatprep.subr.mxu0 0.0
  %616 = vmatpush1.msra.mxu0 0.0
  %617 = vmatprep.subr.mxu0 0.0
  %618 = vmatpush1.msra.mxu0 0.0
  %619 = vmatprep.subr.mxu0 0.0
  %620 = vmatpush1.msra.mxu0 0.0
  %621 = vmatprep.subr.mxu0 0.0
  %622 = vmatpush1.msra.mxu0 0.0
  %623 = vmatprep.subr.mxu0 0.0
  %624 = vmatpush1.msra.mxu0 0.0
  %625 = vmatprep.subr.mxu0 0.0
  %626 = vmatpush1.msra.mxu0 0.0
  %627 = vmatprep.subr.mxu0 0.0
  %628 = vmatpush1.msra.mxu0 0.0
  %629 = vmatprep.subr.mxu0 0.0
  %630 = vmatpush1.msra.mxu0 0.0
  %631 = vmatprep.mubr.f32.mxu0 0.0
  %632 = vmatmul.mubr.f32.gmra.mrb[0].mxu0 %v30
  %v633 = vpop.f32.mrb[0].mxu0
  %v634 = vadd.f32 0.0, %v633
  %v635 = vpop.f32.mrb[0].mxu0
  %v636 = vadd.f32 0.0, %v635
  %637 = vmatprep.mubr.f32.mxu0 0.0
  %638 = vmatmul.mubr.f32.gmra.mrb[0].mxu0 %v33
  %v639 = vpop.f32.mrb[0].mxu0
  %v640 = vadd.f32 0.0, %v639
  %v641 = vpop.f32.mrb[0].mxu0
  %v642 = vadd.f32 0.0, %v641
  %643 = vdwg.mxu0
  %644 = vmatprep.subr.mxu0 0.0
  %645 = vmatpush1.msra.mxu0 %v548
  %646 = vmatprep.subr.mxu0 0.0
  %647 = vmatpush1.msra.mxu0 %v551
  %648 = vmatprep.subr.mxu0 0.0
  %649 = vmatpush1.msra.mxu0 %v554
  %650 = vmatprep.subr.mxu0 0.0
  %651 = vmatpush1.msra.mxu0 %v565
  %652 = vmatprep.subr.mxu0 0.0
  %653 = vmatpush1.msra.mxu0 0.0
  %654 = vmatprep.subr.mxu0 0.0
  %655 = vmatpush1.msra.mxu0 0.0
  %656 = vmatprep.subr.mxu0 0.0
  %657 = vmatpush1.msra.mxu0 0.0
  %658 = vmatprep.subr.mxu0 0.0
  %659 = vmatpush1.msra.mxu0 0.0
  %660 = vmatprep.subr.mxu0 0.0
  %661 = vmatpush1.msra.mxu0 0.0
  %662 = vmatprep.subr.mxu0 0.0
  %663 = vmatpush1.msra.mxu0 0.0
  %664 = vmatprep.subr.mxu0 0.0
  %665 = vmatpush1.msra.mxu0 0.0
  %666 = vmatprep.subr.mxu0 0.0
  %667 = vmatpush1.msra.mxu0 0.0
  %668 = vmatprep.subr.mxu0 0.0
  %669 = vmatpush1.msra.mxu0 0.0
  %670 = vmatprep.subr.mxu0 0.0
  %671 = vmatpush1.msra.mxu0 0.0
  %672 = vmatprep.subr.mxu0 0.0
  %673 = vmatpush1.msra.mxu0 0.0
  %674 = vmatprep.subr.mxu0 0.0
  %675 = vmatpush1.msra.mxu0 0.0
  %676 = vmatprep.subr.mxu0 0.0
  %677 = vmatpush1.msra.mxu0 0.0
  %678 = vmatprep.subr.mxu0 0.0
  %679 = vmatpush1.msra.mxu0 0.0
  %680 = vmatprep.subr.mxu0 0.0
  %681 = vmatpush1.msra.mxu0 0.0
  %682 = vmatprep.subr.mxu0 0.0
  %683 = vmatpush1.msra.mxu0 0.0
  %684 = vmatprep.subr.mxu0 0.0
  %685 = vmatpush1.msra.mxu0 0.0
  %686 = vmatprep.subr.mxu0 0.0
  %687 = vmatpush1.msra.mxu0 0.0
  %688 = vmatprep.subr.mxu0 0.0
  %689 = vmatpush1.msra.mxu0 0.0
  %690 = vmatprep.subr.mxu0 0.0
  %691 = vmatpush1.msra.mxu0 0.0
  %692 = vmatprep.subr.mxu0 0.0
  %693 = vmatpush1.msra.mxu0 0.0
  %694 = vmatprep.subr.mxu0 0.0
  %695 = vmatpush1.msra.mxu0 0.0
  %696 = vmatprep.subr.mxu0 0.0
  %697 = vmatpush1.msra.mxu0 0.0
  %698 = vmatprep.subr.mxu0 0.0
  %699 = vmatpush1.msra.mxu0 0.0
  %700 = vmatprep.subr.mxu0 0.0
  %701 = vmatpush1.msra.mxu0 0.0
  %702 = vmatprep.subr.mxu0 0.0
  %703 = vmatpush1.msra.mxu0 0.0
  %704 = vmatprep.subr.mxu0 0.0
  %705 = vmatpush1.msra.mxu0 0.0
  %706 = vmatprep.subr.mxu0 0.0
  %707 = vmatpush1.msra.mxu0 0.0
  %708 = vmatprep.mubr.f32.mxu0 0.0
  %709 = vmatmul.mubr.f32.gmra.mrb[0].mxu0 %v30
  %v710 = vpop.f32.mrb[0].mxu0
  %v711 = vadd.f32 0.0, %v710
  %v712 = vpop.f32.mrb[0].mxu0
  %713 = vmatprep.mubr.f32.mxu0 0.0
  %714 = vmatmul.mubr.f32.gmra.mrb[0].mxu0 %v33
  %v715 = vpop.f32.mrb[0].mxu0
  %v716 = vadd.f32 0.0, %v715
  %v717 = vpop.f32.mrb[0].mxu0
  %718 = vdwg.mxu0
  %v719 = vmax.f32 %v112, %v286
  %v720 = vmax.f32 %v114, %v288
  %v721 = vmax.f32 %v189, %v363
  %v722 = vmax.f32 %v118, %v292
  %v723 = vmax.f32 %v120, %v294
  %v724 = vmax.f32 %v194, %v368
  %v725 = vmax.f32 %v460, %v634
  %v726 = vmax.f32 %v462, %v636
  %v727 = vmax.f32 %v537, %v711
  %v728 = vmax.f32 %v466, %v640
  %v729 = vmax.f32 %v468, %v642
  %v730 = vmax.f32 %v542, %v716
  %v731 = vmax.f32 %v719, %v725
  %v732 = vmax.f32 %v720, %v726
  %v733 = vmax.f32 %v721, %v727
  %v734 = vmax.f32 %v722, %v728
  %v735 = vmax.f32 %v723, %v729
  %v736 = vmax.f32 %v724, %v730
  %v737 = vld [vmem:[%s2] sm:$0xff]
  %v738 = vld [vmem:[%s2 + $0x8] sm:$0x3]
  %740 = vset.pattern.permute.xlu0 0
  %741 = vperm.xlu0 %740, %v737
  %v742 = vpop.permute.xlu0 %741
  %745 = vset.pattern.permute.xlu0 0
  %746 = vperm.xlu0 %745, %v738
  %v747 = vpop.permute.xlu0 %746
  %v749 = vadd.f32 %v731, %v742
  %v750 = vadd.f32 %v732, %v742
  %v751 = vadd.f32 %v733, %v742
  %v752 = vadd.f32 %v734, %v747
  %v753 = vadd.f32 %v735, %v747
  %v754 = vadd.f32 %v736, %v747
  %v755 = vmax.f32 %v749, 0.0
  %v756 = vmax.f32 %v750, 0.0
  %v757 = vmax.f32 %v751, 0.0
  %v758 = vmax.f32 %v752, 0.0
  %v759 = vmax.f32 %v753, 0.0
  %v760 = vmax.f32 %v754, 0.0
  %761 = vst [vmem:[%s3] sm:$0xff] %v755
  %762 = vst [vmem:[%s3 + $0x8] sm:$0xff] %v756
  %vm763 = vcmask 261120
  %764 = vst.msk [vmem:[%s3 + $0x10] sm:$0xff] %vm763, %v757
  %765 = vst [vmem:[%s3 + $0x18] sm:$0x3] %v758
  %766 = vst [vmem:[%s3 + $0x20] sm:$0x3] %v759
  %vm767 = vcmask 254976
  %768 = vst.msk [vmem:[%s3 + $0x28] sm:$0x3] %vm767, %v760
  // Predicated region
  $region14: #{cnn_mnist_forward.2} parent=0 // pred_check
    _
  $region15: #{cnn_mnist_forward.2} parent=0 // pred_check_branch
    %770 = sbr.rel (0) target = $region17
  $region16: #{cnn_mnist_forward.2} parent=0 // pred_region
    _
  $region17: #{cnn_mnist_forward.2} parent=0 // pred_fallthru
    _
  // Predicated region
  $region18: #{cnn_mnist_forward.2} parent=0 // pred_check
    _
  $region19: #{cnn_mnist_forward.2} parent=0 // pred_check_branch
    %772 = sbr.rel (0) target = $region21
  $region20: #{cnn_mnist_forward.2} parent=0 // pred_region
    _
  $region21: #{cnn_mnist_forward.2} parent=0 // pred_fallthru
    _

// kernel: cnn_mnist_forward.3
$region0: #{cnn_mnist_forward.3}
  #allocation0 [shape = 'u32[]', space=smem, size = 0x4, offset = 0x4, fixed_abs, tag = 'smem constant byte address 0x4 - core index']
  #allocation1 [shape = 'u32[144,128]{1,0:T(1,128)}', space=vmem, size = 0x12000, scoped, tag = 'internal scratch']
  %s0 = inlined_call_operand.vmem [shape: f32[4,32,250], index: 0, kind: input, shape index: {}]
  %s1 = inlined_call_operand.vmem [shape: f32[250,20], index: 1, kind: input, shape index: {}]
  %s2 = inlined_call_operand.vmem [shape: f32[1,20], index: 2, kind: input, shape index: {}]
  %s3 = inlined_call_operand.vmem [shape: f32[16,20,256], index: 3, kind: input, shape index: {}]
  %s4 = inlined_call_operand.vmem [shape: f32[1,256], index: 4, kind: input, shape index: {}]
  %s5 = inlined_call_operand.vmem [shape: f32[256,128], index: 5, kind: input, shape index: {}]
  %s6 = inlined_call_operand.vmem [shape: f32[1,128], index: 6, kind: input, shape index: {}]
  %s7 = inlined_call_operand.vmem [shape: f32[128,128], index: 7, kind: input, shape index: {}]
  %s8 = inlined_call_operand.vmem [shape: f32[1,128], index: 8, kind: input, shape index: {}]
  %s9 = inlined_call_operand.vmem [shape: f32[32,20], index: 9, kind: output, shape index: {0}]
  %s10 = inlined_call_operand.hbm [shape: f32[2,128], index: 10, kind: output, shape index: {1}]
  %s11 = inlined_call_operand.hbm [shape: f32[2,128], index: 11, kind: output, shape index: {2}]
  %12 = xla_tuple %s9, %s10, %s11
  %s13 = sld [smem:[#allocation0]]
  $region62: #{cnn_mnist_forward.3} parent=0
    _
  %s15 = ssub.s32 1, %s13
  %s16 = scalar_select 0, %s15, %s13
  $region1: #{cnn_mnist_forward.3} parent=0
    #allocation2 [shape = 'u8[1024]{0}', space=vmem, size = 0x400, scoped, tag = 'output window, operand 1, single buffered']
    #allocation3 [shape = 's32[1]{0}', space=sflag, size = 0x4, scoped, tag = 'scoped memory for cnn_mnist_forward.3']
    #allocation4 [shape = 'u8[1024]{0}', space=vmem, size = 0x400, scoped, tag = 'output window, operand 2, single buffered']
    #allocation5 [shape = 's32[1]{0}', space=sflag, size = 0x4, scoped, tag = 'scoped memory for cnn_mnist_forward.3']
    %17 = vsyncpa [#allocation3], 0
    %18 = vsyncpa [#allocation5], 0
    // Predicated region
    $region2: #{cnn_mnist_forward.3} parent=1 // pred_check
      _
    $region3: #{cnn_mnist_forward.3} parent=1 // pred_check_branch
      %20 = sbr.rel (0) target = $region5
    $region4: #{cnn_mnist_forward.3} parent=1 // pred_region
      _
    $region5: #{cnn_mnist_forward.3} parent=1 // pred_fallthru
      _
    // Predicated region
    $region6: #{cnn_mnist_forward.3} parent=1 // pred_check
      _
    $region7: #{cnn_mnist_forward.3} parent=1 // pred_check_branch
      %22 = sbr.rel (0) target = $region9
    $region8: #{cnn_mnist_forward.3} parent=1 // pred_region
      _
    $region9: #{cnn_mnist_forward.3} parent=1 // pred_fallthru
      _
    // Predicated region
    $region10: #{cnn_mnist_forward.3} parent=1 // pred_check
      _
    $region11: #{cnn_mnist_forward.3} parent=1 // pred_check_branch
      %24 = sbr.rel (0) target = $region13
    $region12: #{cnn_mnist_forward.3} parent=1 // pred_region
      _
    $region13: #{cnn_mnist_forward.3} parent=1 // pred_fallthru
      _
    // Predicated region
    $region14: #{cnn_mnist_forward.3} parent=1 // pred_check
      _
    $region15: #{cnn_mnist_forward.3} parent=1 // pred_check_branch
      %26 = sbr.rel (0) target = $region17
    $region16: #{cnn_mnist_forward.3} parent=1 // pred_region
      _
    $region17: #{cnn_mnist_forward.3} parent=1 // pred_fallthru
      _
    // Predicated region
    $region18: #{cnn_mnist_forward.3} parent=1 // pred_check
      _
    $region19: #{cnn_mnist_forward.3} parent=1 // pred_check_branch
      %28 = sbr.rel (0) target = $region21
    $region20: #{cnn_mnist_forward.3} parent=1 // pred_region
      _
    $region21: #{cnn_mnist_forward.3} parent=1 // pred_fallthru
      _
    // Predicated region
    $region22: #{cnn_mnist_forward.3} parent=1 // pred_check
      _
    $region23: #{cnn_mnist_forward.3} parent=1 // pred_check_branch
      %30 = sbr.rel (0) target = $region25
    $region24: #{cnn_mnist_forward.3} parent=1 // pred_region
      _
    $region25: #{cnn_mnist_forward.3} parent=1 // pred_fallthru
      _
    // Predicated region
    $region26: #{cnn_mnist_forward.3} parent=1 // pred_check
      _
    $region27: #{cnn_mnist_forward.3} parent=1 // pred_check_branch
      %32 = sbr.rel (0) target = $region29
    $region28: #{cnn_mnist_forward.3} parent=1 // pred_region
      _
    $region29: #{cnn_mnist_forward.3} parent=1 // pred_fallthru
      _
    // Predicated region
    $region30: #{cnn_mnist_forward.3} parent=1 // pred_check
      _
    $region31: #{cnn_mnist_forward.3} parent=1 // pred_check_branch
      %34 = sbr.rel (0) target = $region33
    $region32: #{cnn_mnist_forward.3} parent=1 // pred_region
      _
    $region33: #{cnn_mnist_forward.3} parent=1 // pred_fallthru
      _
    // Predicated region
    $region34: #{cnn_mnist_forward.3} parent=1 // pred_check
      _
    $region35: #{cnn_mnist_forward.3} parent=1 // pred_check_branch
      %36 = sbr.rel (0) target = $region37
    $region36: #{cnn_mnist_forward.3} parent=1 // pred_region
      _
    $region37: #{cnn_mnist_forward.3} parent=1 // pred_fallthru
      _
    %v37 = vld [vmem:[%s0] sm:$0xff]
    %v38 = vld [vmem:[%s0 + $0x8] sm:$0xff]
    %v39 = vld [vmem:[%s0 + $0x10] sm:$0xff]
    %v40 = vld [vmem:[%s0 + $0x18] sm:$0xff]
    %v41 = vld [vmem:[%s0 + $0x20] sm:$0xff]
    %v42 = vld [vmem:[%s0 + $0x28] sm:$0xff]
    %v43 = vld [vmem:[%s0 + $0x30] sm:$0xff]
    %v44 = vld [vmem:[%s0 + $0x38] sm:$0xff]
    %v45 = vld [vmem:[%s1] sm:$0xff]
    %v46 = vld [vmem:[%s1 + $0x8] sm:$0xff]
    %v47 = vld [vmem:[%s1 + $0x10] sm:$0xff]
    %v48 = vld [vmem:[%s1 + $0x18] sm:$0xff]
    %v49 = vld [vmem:[%s1 + $0x20] sm:$0xff]
    %v50 = vld [vmem:[%s1 + $0x28] sm:$0xff]
    %v51 = vld [vmem:[%s1 + $0x30] sm:$0xff]
    %v52 = vld [vmem:[%s1 + $0x38] sm:$0xff]
    %v53 = vld [vmem:[%s1 + $0x40] sm:$0xff]
    %v54 = vld [vmem:[%s1 + $0x48] sm:$0xff]
    %v55 = vld [vmem:[%s1 + $0x50] sm:$0xff]
    %v56 = vld [vmem:[%s1 + $0x58] sm:$0xff]
    %v57 = vld [vmem:[%s1 + $0x60] sm:$0xff]
    %v58 = vld [vmem:[%s1 + $0x68] sm:$0xff]
    %v59 = vld [vmem:[%s1 + $0x70] sm:$0xff]
    %v60 = vld [vmem:[%s1 + $0x78] sm:$0xff]
    %v61 = vld [vmem:[%s1 + $0x80] sm:$0xff]
    %v62 = vld [vmem:[%s1 + $0x88] sm:$0xff]
    %v63 = vld [vmem:[%s1 + $0x90] sm:$0xff]
    %v64 = vld [vmem:[%s1 + $0x98] sm:$0xff]
    %v65 = vld [vmem:[%s1 + $0xa0] sm:$0xff]
    %v66 = vld [vmem:[%s1 + $0xa8] sm:$0xff]
    %v67 = vld [vmem:[%s1 + $0xb0] sm:$0xff]
    %v68 = vld [vmem:[%s1 + $0xb8] sm:$0xff]
    %v69 = vld [vmem:[%s1 + $0xc0] sm:$0xff]
    %v70 = vld [vmem:[%s1 + $0xc8] sm:$0xff]
    %v71 = vld [vmem:[%s1 + $0xd0] sm:$0xff]
    %v72 = vld [vmem:[%s1 + $0xd8] sm:$0xff]
    %v73 = vld [vmem:[%s1 + $0xe0] sm:$0xff]
    %v74 = vld [vmem:[%s1 + $0xe8] sm:$0xff]
    %v75 = vld [vmem:[%s1 + $0xf0] sm:$0xff]
    %v76 = vld [vmem:[%s1 + $0xf8] sm:$0x3]
    %vm77 = vcmask 998400
    %v79 = vsel %vm77, %v38, 0
    %v82 = vsel %vm77, %v40, 0
    %v85 = vsel %vm77, %v42, 0
    %v88 = vsel %vm77, %v44, 0
    %vm90 = vcmask 1041408
    %v92 = vsel %vm90, %v76, 0
    %94 = vmatprep.subr.mxu0 0.0
    %95 = vmatpush1.msra.mxu0 %v45
    %96 = vmatprep.subr.mxu0 0.0
    %97 = vmatpush1.msra.mxu0 %v46
    %98 = vmatprep.subr.mxu0 0.0
    %99 = vmatpush1.msra.mxu0 %v47
    %100 = vmatprep.subr.mxu0 0.0
    %101 = vmatpush1.msra.mxu0 %v48
    %102 = vmatprep.subr.mxu0 0.0
    %103 = vmatpush1.msra.mxu0 %v49
    %104 = vmatprep.subr.mxu0 0.0
    %105 = vmatpush1.msra.mxu0 %v50
    %106 = vmatprep.subr.mxu0 0.0
    %107 = vmatpush1.msra.mxu0 %v51
    %108 = vmatprep.subr.mxu0 0.0
    %109 = vmatpush1.msra.mxu0 %v52
    %110 = vmatprep.subr.mxu0 0.0
    %111 = vmatpush1.msra.mxu0 %v53
    %112 = vmatprep.subr.mxu0 0.0
    %113 = vmatpush1.msra.mxu0 %v54
    %114 = vmatprep.subr.mxu0 0.0
    %115 = vmatpush1.msra.mxu0 %v55
    %116 = vmatprep.subr.mxu0 0.0
    %117 = vmatpush1.msra.mxu0 %v56
    %118 = vmatprep.subr.mxu0 0.0
    %119 = vmatpush1.msra.mxu0 %v57
    %120 = vmatprep.subr.mxu0 0.0
    %121 = vmatpush1.msra.mxu0 %v58
    %122 = vmatprep.subr.mxu0 0.0
    %123 = vmatpush1.msra.mxu0 %v59
    %124 = vmatprep.subr.mxu0 0.0
    %125 = vmatpush1.msra.mxu0 %v60
    %126 = vmatprep.subr.mxu0 0.0
    %127 = vmatpush1.msra.mxu0 %v61
    %128 = vmatprep.subr.mxu0 0.0
    %129 = vmatpush1.msra.mxu0 %v62
    %130 = vmatprep.subr.mxu0 0.0
    %131 = vmatpush1.msra.mxu0 %v63
    %132 = vmatprep.subr.mxu0 0.0
    %133 = vmatpush1.msra.mxu0 %v64
    %134 = vmatprep.subr.mxu0 0.0
    %135 = vmatpush1.msra.mxu0 %v65
    %136 = vmatprep.subr.mxu0 0.0
    %137 = vmatpush1.msra.mxu0 %v66
    %138 = vmatprep.subr.mxu0 0.0
    %139 = vmatpush1.msra.mxu0 %v67
    %140 = vmatprep.subr.mxu0 0.0
    %141 = vmatpush1.msra.mxu0 %v68
    %142 = vmatprep.subr.mxu0 0.0
    %143 = vmatpush1.msra.mxu0 %v69
    %144 = vmatprep.subr.mxu0 0.0
    %145 = vmatpush1.msra.mxu0 %v70
    %146 = vmatprep.subr.mxu0 0.0
    %147 = vmatpush1.msra.mxu0 %v71
    %148 = vmatprep.subr.mxu0 0.0
    %149 = vmatpush1.msra.mxu0 %v72
    %150 = vmatprep.subr.mxu0 0.0
    %151 = vmatpush1.msra.mxu0 %v73
    %152 = vmatprep.subr.mxu0 0.0
    %153 = vmatpush1.msra.mxu0 %v74
    %154 = vmatprep.subr.mxu0 0.0
    %155 = vmatpush1.msra.mxu0 %v75
    %156 = vmatprep.subr.mxu0 0.0
    %157 = vmatpush1.msra.mxu0 %v92
    %158 = vmatprep.mubr.f32.mxu0 %v79
    %159 = vmatmul.mubr.f32.gmra.mrb[0].mxu0 %v37
    %v160 = vpop.f32.mrb[0].mxu0
    %v161 = vadd.f32 0.0, %v160
    %v162 = vpop.f32.mrb[0].mxu0
    %163 = vmatprep.mubr.f32.mxu0 %v82
    %164 = vmatmul.mubr.f32.gmra.mrb[0].mxu0 %v39
    %v165 = vpop.f32.mrb[0].mxu0
    %v166 = vadd.f32 0.0, %v165
    %v167 = vpop.f32.mrb[0].mxu0
    %168 = vmatprep.mubr.f32.mxu0 %v85
    %169 = vmatmul.mubr.f32.gmra.mrb[0].mxu0 %v41
    %v170 = vpop.f32.mrb[0].mxu0
    %v171 = vadd.f32 0.0, %v170
    %v172 = vpop.f32.mrb[0].mxu0
    %173 = vmatprep.mubr.f32.mxu0 %v88
    %174 = vmatmul.mubr.f32.gmra.mrb[0].mxu0 %v43
    %v175 = vpop.f32.mrb[0].mxu0
    %v176 = vadd.f32 0.0, %v175
    %v177 = vpop.f32.mrb[0].mxu0
    %178 = vdwg.mxu0
    %s179 = scalar_lea.vmem %s0, 64
    %v180 = vld [vmem:[%s179] sm:$0xff]
    %v181 = vld [vmem:[%s179 + $0x8] sm:$0xff]
    %v182 = vld [vmem:[%s179 + $0x10] sm:$0xff]
    %v183 = vld [vmem:[%s179 + $0x18] sm:$0xff]
    %v184 = vld [vmem:[%s179 + $0x20] sm:$0xff]
    %v185 = vld [vmem:[%s179 + $0x28] sm:$0xff]
    %v186 = vld [vmem:[%s179 + $0x30] sm:$0xff]
    %v187 = vld [vmem:[%s179 + $0x38] sm:$0xff]
    %v189 = vsel %vm77, %v181, 0
    %v192 = vsel %vm77, %v183, 0
    %v195 = vsel %vm77, %v185, 0
    %v198 = vsel %vm77, %v187, 0
    %200 = vmatprep.subr.mxu0 0.0
    %201 = vmatpush1.msra.mxu0 %v45
    %202 = vmatprep.subr.mxu0 0.0
    %203 = vmatpush1.msra.mxu0 %v46
    %204 = vmatprep.subr.mxu0 0.0
    %205 = vmatpush1.msra.mxu0 %v47
    %206 = vmatprep.subr.mxu0 0.0
    %207 = vmatpush1.msra.mxu0 %v48
    %208 = vmatprep.subr.mxu0 0.0
    %209 = vmatpush1.msra.mxu0 %v49
    %210 = vmatprep.subr.mxu0 0.0
    %211 = vmatpush1.msra.mxu0 %v50
    %212 = vmatprep.subr.mxu0 0.0
    %213 = vmatpush1.msra.mxu0 %v51
    %214 = vmatprep.subr.mxu0 0.0
    %215 = vmatpush1.msra.mxu0 %v52
    %216 = vmatprep.subr.mxu0 0.0
    %217 = vmatpush1.msra.mxu0 %v53
    %218 = vmatprep.subr.mxu0 0.0
    %219 = vmatpush1.msra.mxu0 %v54
    %220 = vmatprep.subr.mxu0 0.0
    %221 = vmatpush1.msra.mxu0 %v55
    %222 = vmatprep.subr.mxu0 0.0
    %223 = vmatpush1.msra.mxu0 %v56
    %224 = vmatprep.subr.mxu0 0.0
    %225 = vmatpush1.msra.mxu0 %v57
    %226 = vmatprep.subr.mxu0 0.0
    %227 = vmatpush1.msra.mxu0 %v58
    %228 = vmatprep.subr.mxu0 0.0
    %229 = vmatpush1.msra.mxu0 %v59
    %230 = vmatprep.subr.mxu0 0.0
    %231 = vmatpush1.msra.mxu0 %v60
    %232 = vmatprep.subr.mxu0 0.0
    %233 = vmatpush1.msra.mxu0 %v61
    %234 = vmatprep.subr.mxu0 0.0
    %235 = vmatpush1.msra.mxu0 %v62
    %236 = vmatprep.subr.mxu0 0.0
    %237 = vmatpush1.msra.mxu0 %v63
    %238 = vmatprep.subr.mxu0 0.0
    %239 = vmatpush1.msra.mxu0 %v64
    %240 = vmatprep.subr.mxu0 0.0
    %241 = vmatpush1.msra.mxu0 %v65
    %242 = vmatprep.subr.mxu0 0.0
    %243 = vmatpush1.msra.mxu0 %v66
    %244 = vmatprep.subr.mxu0 0.0
    %245 = vmatpush1.msra.mxu0 %v67
    %246 = vmatprep.subr.mxu0 0.0
    %247 = vmatpush1.msra.mxu0 %v68
    %248 = vmatprep.subr.mxu0 0.0
    %249 = vmatpush1.msra.mxu0 %v69
    %250 = vmatprep.subr.mxu0 0.0
    %251 = vmatpush1.msra.mxu0 %v70
    %252 = vmatprep.subr.mxu0 0.0
    %253 = vmatpush1.msra.mxu0 %v71
    %254 = vmatprep.subr.mxu0 0.0
    %255 = vmatpush1.msra.mxu0 %v72
    %256 = vmatprep.subr.mxu0 0.0
    %257 = vmatpush1.msra.mxu0 %v73
    %258 = vmatprep.subr.mxu0 0.0
    %259 = vmatpush1.msra.mxu0 %v74
    %260 = vmatprep.subr.mxu0 0.0
    %261 = vmatpush1.msra.mxu0 %v75
    %262 = vmatprep.subr.mxu0 0.0
    %263 = vmatpush1.msra.mxu0 %v92
    %264 = vmatprep.mubr.f32.mxu0 %v189
    %265 = vmatmul.mubr.f32.gmra.mrb[0].mxu0 %v180
    %v266 = vpop.f32.mrb[0].mxu0
    %v267 = vadd.f32 0.0, %v266
    %v268 = vpop.f32.mrb[0].mxu0
    %269 = vmatprep.mubr.f32.mxu0 %v192
    %270 = vmatmul.mubr.f32.gmra.mrb[0].mxu0 %v182
    %v271 = vpop.f32.mrb[0].mxu0
    %v272 = vadd.f32 0.0, %v271
    %v273 = vpop.f32.mrb[0].mxu0
    %274 = vmatprep.mubr.f32.mxu0 %v195
    %275 = vmatmul.mubr.f32.gmra.mrb[0].mxu0 %v184
    %v276 = vpop.f32.mrb[0].mxu0
    %v277 = vadd.f32 0.0, %v276
    %v278 = vpop.f32.mrb[0].mxu0
    %279 = vmatprep.mubr.f32.mxu0 %v198
    %280 = vmatmul.mubr.f32.gmra.mrb[0].mxu0 %v186
    %v281 = vpop.f32.mrb[0].mxu0
    %v282 = vadd.f32 0.0, %v281
    %v283 = vpop.f32.mrb[0].mxu0
    %284 = vdwg.mxu0
    %s285 = scalar_lea.vmem %s0, 128
    %v286 = vld [vmem:[%s285] sm:$0xff]
    %v287 = vld [vmem:[%s285 + $0x8] sm:$0xff]
    %v288 = vld [vmem:[%s285 + $0x10] sm:$0xff]
    %v289 = vld [vmem:[%s285 + $0x18] sm:$0xff]
    %v290 = vld [vmem:[%s285 + $0x20] sm:$0xff]
    %v291 = vld [vmem:[%s285 + $0x28] sm:$0xff]
    %v292 = vld [vmem:[%s285 + $0x30] sm:$0xff]
    %v293 = vld [vmem:[%s285 + $0x38] sm:$0xff]
    %v295 = vsel %vm77, %v287, 0
    %v298 = vsel %vm77, %v289, 0
    %v301 = vsel %vm77, %v291, 0
    %v304 = vsel %vm77, %v293, 0
    %306 = vmatprep.subr.mxu0 0.0
    %307 = vmatpush1.msra.mxu0 %v45
    %308 = vmatprep.subr.mxu0 0.0
    %309 = vmatpush1.msra.mxu0 %v46
    %310 = vmatprep.subr.mxu0 0.0
    %311 = vmatpush1.msra.mxu0 %v47
    %312 = vmatprep.subr.mxu0 0.0
    %313 = vmatpush1.msra.mxu0 %v48
    %314 = vmatprep.subr.mxu0 0.0
    %315 = vmatpush1.msra.mxu0 %v49
    %316 = vmatprep.subr.mxu0 0.0
    %317 = vmatpush1.msra.mxu0 %v50
    %318 = vmatprep.subr.mxu0 0.0
    %319 = vmatpush1.msra.mxu0 %v51
    %320 = vmatprep.subr.mxu0 0.0
    %321 = vmatpush1.msra.mxu0 %v52
    %322 = vmatprep.subr.mxu0 0.0
    %323 = vmatpush1.msra.mxu0 %v53
    %324 = vmatprep.subr.mxu0 0.0
    %325 = vmatpush1.msra.mxu0 %v54
    %326 = vmatprep.subr.mxu0 0.0
    %327 = vmatpush1.msra.mxu0 %v55
    %328 = vmatprep.subr.mxu0 0.0
    %329 = vmatpush1.msra.mxu0 %v56
    %330 = vmatprep.subr.mxu0 0.0
    %331 = vmatpush1.msra.mxu0 %v57
    %332 = vmatprep.subr.mxu0 0.0
    %333 = vmatpush1.msra.mxu0 %v58
    %334 = vmatprep.subr.mxu0 0.0
    %335 = vmatpush1.msra.mxu0 %v59
    %336 = vmatprep.subr.mxu0 0.0
    %337 = vmatpush1.msra.mxu0 %v60
    %338 = vmatprep.subr.mxu0 0.0
    %339 = vmatpush1.msra.mxu0 %v61
    %340 = vmatprep.subr.mxu0 0.0
    %341 = vmatpush1.msra.mxu0 %v62
    %342 = vmatprep.subr.mxu0 0.0
    %343 = vmatpush1.msra.mxu0 %v63
    %344 = vmatprep.subr.mxu0 0.0
    %345 = vmatpush1.msra.mxu0 %v64
    %346 = vmatprep.subr.mxu0 0.0
    %347 = vmatpush1.msra.mxu0 %v65
    %348 = vmatprep.subr.mxu0 0.0
    %349 = vmatpush1.msra.mxu0 %v66
    %350 = vmatprep.subr.mxu0 0.0
    %351 = vmatpush1.msra.mxu0 %v67
    %352 = vmatprep.subr.mxu0 0.0
    %353 = vmatpush1.msra.mxu0 %v68
    %354 = vmatprep.subr.mxu0 0.0
    %355 = vmatpush1.msra.mxu0 %v69
    %356 = vmatprep.subr.mxu0 0.0
    %357 = vmatpush1.msra.mxu0 %v70
    %358 = vmatprep.subr.mxu0 0.0
    %359 = vmatpush1.msra.mxu0 %v71
    %360 = vmatprep.subr.mxu0 0.0
    %361 = vmatpush1.msra.mxu0 %v72
    %362 = vmatprep.subr.mxu0 0.0
    %363 = vmatpush1.msra.mxu0 %v73
    %364 = vmatprep.subr.mxu0 0.0
    %365 = vmatpush1.msra.mxu0 %v74
    %366 = vmatprep.subr.mxu0 0.0
    %367 = vmatpush1.msra.mxu0 %v75
    %368 = vmatprep.subr.mxu0 0.0
    %369 = vmatpush1.msra.mxu0 %v92
    %370 = vmatprep.mubr.f32.mxu0 %v295
    %371 = vmatmul.mubr.f32.gmra.mrb[0].mxu0 %v286
    %v372 = vpop.f32.mrb[0].mxu0
    %v373 = vadd.f32 0.0, %v372
    %v374 = vpop.f32.mrb[0].mxu0
    %375 = vmatprep.mubr.f32.mxu0 %v298
    %376 = vmatmul.mubr.f32.gmra.mrb[0].mxu0 %v288
    %v377 = vpop.f32.mrb[0].mxu0
    %v378 = vadd.f32 0.0, %v377
    %v379 = vpop.f32.mrb[0].mxu0
    %380 = vmatprep.mubr.f32.mxu0 %v301
    %381 = vmatmul.mubr.f32.gmra.mrb[0].mxu0 %v290
    %v382 = vpop.f32.mrb[0].mxu0
    %v383 = vadd.f32 0.0, %v382
    %v384 = vpop.f32.mrb[0].mxu0
    %385 = vmatprep.mubr.f32.mxu0 %v304
    %386 = vmatmul.mubr.f32.gmra.mrb[0].mxu0 %v292
    %v387 = vpop.f32.mrb[0].mxu0
    %v388 = vadd.f32 0.0, %v387
    %v389 = vpop.f32.mrb[0].mxu0
    %390 = vdwg.mxu0
    %s391 = scalar_lea.vmem %s0, 192
    %v392 = vld [vmem:[%s391] sm:$0xff]
    %v393 = vld [vmem:[%s391 + $0x8] sm:$0xff]
    %v394 = vld [vmem:[%s391 + $0x10] sm:$0xff]
    %v395 = vld [vmem:[%s391 + $0x18] sm:$0xff]
    %v396 = vld [vmem:[%s391 + $0x20] sm:$0xff]
    %v397 = vld [vmem:[%s391 + $0x28] sm:$0xff]
    %v398 = vld [vmem:[%s391 + $0x30] sm:$0xff]
    %v399 = vld [vmem:[%s391 + $0x38] sm:$0xff]
    %v401 = vsel %vm77, %v393, 0
    %v404 = vsel %vm77, %v395, 0
    %v407 = vsel %vm77, %v397, 0
    %v410 = vsel %vm77, %v399, 0
    %412 = vmatprep.subr.mxu0 0.0
    %413 = vmatpush1.msra.mxu0 %v45
    %414 = vmatprep.subr.mxu0 0.0
    %415 = vmatpush1.msra.mxu0 %v46
    %416 = vmatprep.subr.mxu0 0.0
    %417 = vmatpush1.msra.mxu0 %v47
    %418 = vmatprep.subr.mxu0 0.0
    %419 = vmatpush1.msra.mxu0 %v48
    %420 = vmatprep.subr.mxu0 0.0
    %421 = vmatpush1.msra.mxu0 %v49
    %422 = vmatprep.subr.mxu0 0.0
    %423 = vmatpush1.msra.mxu0 %v50
    %424 = vmatprep.subr.mxu0 0.0
    %425 = vmatpush1.msra.mxu0 %v51
    %426 = vmatprep.subr.mxu0 0.0
    %427 = vmatpush1.msra.mxu0 %v52
    %428 = vmatprep.subr.mxu0 0.0
    %429 = vmatpush1.msra.mxu0 %v53
    %430 = vmatprep.subr.mxu0 0.0
    %431 = vmatpush1.msra.mxu0 %v54
    %432 = vmatprep.subr.mxu0 0.0
    %433 = vmatpush1.msra.mxu0 %v55
    %434 = vmatprep.subr.mxu0 0.0
    %435 = vmatpush1.msra.mxu0 %v56
    %436 = vmatprep.subr.mxu0 0.0
    %437 = vmatpush1.msra.mxu0 %v57
    %438 = vmatprep.subr.mxu0 0.0
    %439 = vmatpush1.msra.mxu0 %v58
    %440 = vmatprep.subr.mxu0 0.0
    %441 = vmatpush1.msra.mxu0 %v59
    %442 = vmatprep.subr.mxu0 0.0
    %443 = vmatpush1.msra.mxu0 %v60
    %444 = vmatprep.subr.mxu0 0.0
    %445 = vmatpush1.msra.mxu0 %v61
    %446 = vmatprep.subr.mxu0 0.0
    %447 = vmatpush1.msra.mxu0 %v62
    %448 = vmatprep.subr.mxu0 0.0
    %449 = vmatpush1.msra.mxu0 %v63
    %450 = vmatprep.subr.mxu0 0.0
    %451 = vmatpush1.msra.mxu0 %v64
    %452 = vmatprep.subr.mxu0 0.0
    %453 = vmatpush1.msra.mxu0 %v65
    %454 = vmatprep.subr.mxu0 0.0
    %455 = vmatpush1.msra.mxu0 %v66
    %456 = vmatprep.subr.mxu0 0.0
    %457 = vmatpush1.msra.mxu0 %v67
    %458 = vmatprep.subr.mxu0 0.0
    %459 = vmatpush1.msra.mxu0 %v68
    %460 = vmatprep.subr.mxu0 0.0
    %461 = vmatpush1.msra.mxu0 %v69
    %462 = vmatprep.subr.mxu0 0.0
    %463 = vmatpush1.msra.mxu0 %v70
    %464 = vmatprep.subr.mxu0 0.0
    %465 = vmatpush1.msra.mxu0 %v71
    %466 = vmatprep.subr.mxu0 0.0
    %467 = vmatpush1.msra.mxu0 %v72
    %468 = vmatprep.subr.mxu0 0.0
    %469 = vmatpush1.msra.mxu0 %v73
    %470 = vmatprep.subr.mxu0 0.0
    %471 = vmatpush1.msra.mxu0 %v74
    %472 = vmatprep.subr.mxu0 0.0
    %473 = vmatpush1.msra.mxu0 %v75
    %474 = vmatprep.subr.mxu0 0.0
    %475 = vmatpush1.msra.mxu0 %v92
    %476 = vmatprep.mubr.f32.mxu0 %v401
    %477 = vmatmul.mubr.f32.gmra.mrb[0].mxu0 %v392
    %v478 = vpop.f32.mrb[0].mxu0
    %v479 = vadd.f32 0.0, %v478
    %v480 = vpop.f32.mrb[0].mxu0
    %481 = vmatprep.mubr.f32.mxu0 %v404
    %482 = vmatmul.mubr.f32.gmra.mrb[0].mxu0 %v394
    %v483 = vpop.f32.mrb[0].mxu0
    %v484 = vadd.f32 0.0, %v483
    %v485 = vpop.f32.mrb[0].mxu0
    %486 = vmatprep.mubr.f32.mxu0 %v407
    %487 = vmatmul.mubr.f32.gmra.mrb[0].mxu0 %v396
    %v488 = vpop.f32.mrb[0].mxu0
    %v489 = vadd.f32 0.0, %v488
    %v490 = vpop.f32.mrb[0].mxu0
    %491 = vmatprep.mubr.f32.mxu0 %v410
    %492 = vmatmul.mubr.f32.gmra.mrb[0].mxu0 %v398
    %v493 = vpop.f32.mrb[0].mxu0
    %v494 = vadd.f32 0.0, %v493
    %v495 = vpop.f32.mrb[0].mxu0
    %496 = vdwg.mxu0
    %v497 = vmax.f32 %v161, %v267
    %v498 = vmax.f32 %v166, %v272
    %v499 = vmax.f32 %v171, %v277
    %v500 = vmax.f32 %v176, %v282
    %v501 = vmax.f32 %v373, %v479
    %v502 = vmax.f32 %v378, %v484
    %v503 = vmax.f32 %v383, %v489
    %v504 = vmax.f32 %v388, %v494
    %v505 = vmax.f32 %v497, %v501
    %v506 = vmax.f32 %v498, %v502
    %v507 = vmax.f32 %v499, %v503
    %v508 = vmax.f32 %v500, %v504
    %v509 = vld [vmem:[%s2] sm:$0x1]
    %v511 = vlaneseq
    %v512 = vshrl.u32 %v511, 7
    %v513 = vsub.s32 0, %v512
    %v514 = vrot.slane %v509, %v513
    %v516 = vadd.f32 %v505, %v514
    %v517 = vadd.f32 %v506, %v514
    %v518 = vadd.f32 %v507, %v514
    %v519 = vadd.f32 %v508, %v514
    %v520 = vmax.f32 %v516, 0.0
    %v521 = vmax.f32 %v517, 0.0
    %v522 = vmax.f32 %v518, 0.0
    %v523 = vmax.f32 %v519, 0.0
    %vm524 = vcmask 162816
    %525 = vst.msk [vmem:[%s9] sm:$0xff] %vm524, %v520
    %526 = vst.msk [vmem:[%s9 + $0x8] sm:$0xff] %vm524, %v521
    %527 = vst.msk [vmem:[%s9 + $0x10] sm:$0xff] %vm524, %v522
    %528 = vst.msk [vmem:[%s9 + $0x18] sm:$0xff] %vm524, %v523
    %v529 = vld [vmem:[%s9] sm:$0x3]
    %v530 = vld [vmem:[%s3] sm:$0xff]
    %v531 = vld [vmem:[%s3 + $0x8] sm:$0xff]
    %v532 = vld [vmem:[%s3 + $0x10] sm:$0xff]
    %v533 = vld [vmem:[%s3 + $0x18] sm:$0xff]
    %v534 = vld [vmem:[%s3 + $0x20] sm:$0xf]
    %v535 = vld [vmem:[%s3 + $0x28] sm:$0xf]
    %v536 = vld [vmem:[%s9 + $0x2] sm:$0x3]
    %s537 = scalar_lea.vmem %s3, 48
    %v538 = vld [vmem:[%s537] sm:$0xff]
    %v539 = vld [vmem:[%s537 + $0x8] sm:$0xff]
    %v540 = vld [vmem:[%s537 + $0x10] sm:$0xff]
    %v541 = vld [vmem:[%s537 + $0x18] sm:$0xff]
    %v542 = vld [vmem:[%s537 + $0x20] sm:$0xf]
    %v543 = vld [vmem:[%s537 + $0x28] sm:$0xf]
    %v545 = vsel %vm524, %v536, 0
    %vm547 = vcmask 1043456
    %v549 = vsel %vm547, %v542, 0
    %v552 = vsel %vm547, %v543, 0
    %554 = vmatprep.subr.mxu0 %v539
    %555 = vmatpush1.msra.mxu0 %v538
    %556 = vmatprep.subr.mxu0 %v541
    %557 = vmatpush1.msra.mxu0 %v540
    %558 = vmatprep.subr.mxu0 %v552
    %559 = vmatpush1.msra.mxu0 %v549
    %560 = vmatprep.subr.mxu0 0.0
    %561 = vmatpush1.msra.mxu0 0.0
    %562 = vmatprep.subr.mxu0 0.0
    %563 = vmatpush1.msra.mxu0 0.0
    %564 = vmatprep.subr.mxu0 0.0
    %565 = vmatpush1.msra.mxu0 0.0
    %566 = vmatprep.subr.mxu0 0.0
    %567 = vmatpush1.msra.mxu0 0.0
    %568 = vmatprep.subr.mxu0 0.0
    %569 = vmatpush1.msra.mxu0 0.0
    %570 = vmatprep.subr.mxu0 0.0
    %571 = vmatpush1.msra.mxu0 0.0
    %572 = vmatprep.subr.mxu0 0.0
    %573 = vmatpush1.msra.mxu0 0.0
    %574 = vmatprep.subr.mxu0 0.0
    %575 = vmatpush1.msra.mxu0 0.0
    %576 = vmatprep.subr.mxu0 0.0
    %577 = vmatpush1.msra.mxu0 0.0
    %578 = vmatprep.subr.mxu0 0.0
    %579 = vmatpush1.msra.mxu0 0.0
    %580 = vmatprep.subr.mxu0 0.0
    %581 = vmatpush1.msra.mxu0 0.0
    %582 = vmatprep.subr.mxu0 0.0
    %583 = vmatpush1.msra.mxu0 0.0
    %584 = vmatprep.subr.mxu0 0.0
    %585 = vmatpush1.msra.mxu0 0.0
    %586 = vmatprep.subr.mxu0 0.0
    %587 = vmatpush1.msra.mxu0 0.0
    %588 = vmatprep.subr.mxu0 0.0
    %589 = vmatpush1.msra.mxu0 0.0
    %590 = vmatprep.subr.mxu0 0.0
    %591 = vmatpush1.msra.mxu0 0.0
    %592 = vmatprep.subr.mxu0 0.0
    %593 = vmatpush1.msra.mxu0 0.0
    %594 = vmatprep.subr.mxu0 0.0
    %595 = vmatpush1.msra.mxu0 0.0
    %596 = vmatprep.subr.mxu0 0.0
    %597 = vmatpush1.msra.mxu0 0.0
    %598 = vmatprep.subr.mxu0 0.0
    %599 = vmatpush1.msra.mxu0 0.0
    %600 = vmatprep.subr.mxu0 0.0
    %601 = vmatpush1.msra.mxu0 0.0
    %602 = vmatprep.subr.mxu0 0.0
    %603 = vmatpush1.msra.mxu0 0.0
    %604 = vmatprep.subr.mxu0 0.0
    %605 = vmatpush1.msra.mxu0 0.0
    %606 = vmatprep.subr.mxu0 0.0
    %607 = vmatpush1.msra.mxu0 0.0
    %608 = vmatprep.subr.mxu0 0.0
    %609 = vmatpush1.msra.mxu0 0.0
    %610 = vmatprep.subr.mxu0 0.0
    %611 = vmatpush1.msra.mxu0 0.0
    %612 = vmatprep.subr.mxu0 0.0
    %613 = vmatpush1.msra.mxu0 0.0
    %614 = vmatprep.subr.mxu0 0.0
    %615 = vmatpush1.msra.mxu0 0.0
    %616 = vmatprep.subr.mxu0 0.0
    %617 = vmatpush1.msra.mxu0 0.0
    %618 = vmatprep.mubr.f32.mxu0 0.0
    %619 = vmatmul.mubr.f32.gmra.mrb[0].mxu0 %v545
    %v620 = vpop.f32.mrb[0].mxu0
    %v621 = vadd.f32 0.0, %v620
    %v622 = vpop.f32.mrb[0].mxu0
    %v623 = vadd.f32 0.0, %v622
    %624 = vdwg.mxu0
    %v626 = vsel %vm524, %v529, 0
    %v629 = vsel %vm547, %v534, 0
    %v632 = vsel %vm547, %v535, 0
    %634 = vmatprep.subr.mxu0 %v531
    %635 = vmatpush1.msra.mxu0 %v530
    %636 = vmatprep.subr.mxu0 %v533
    %637 = vmatpush1.msra.mxu0 %v532
    %638 = vmatprep.subr.mxu0 %v632
    %639 = vmatpush1.msra.mxu0 %v629
    %640 = vmatprep.subr.mxu0 0.0
    %641 = vmatpush1.msra.mxu0 0.0
    %642 = vmatprep.subr.mxu0 0.0
    %643 = vmatpush1.msra.mxu0 0.0
    %644 = vmatprep.subr.mxu0 0.0
    %645 = vmatpush1.msra.mxu0 0.0
    %646 = vmatprep.subr.mxu0 0.0
    %647 = vmatpush1.msra.mxu0 0.0
    %648 = vmatprep.subr.mxu0 0.0
    %649 = vmatpush1.msra.mxu0 0.0
    %650 = vmatprep.subr.mxu0 0.0
    %651 = vmatpush1.msra.mxu0 0.0
    %652 = vmatprep.subr.mxu0 0.0
    %653 = vmatpush1.msra.mxu0 0.0
    %654 = vmatprep.subr.mxu0 0.0
    %655 = vmatpush1.msra.mxu0 0.0
    %656 = vmatprep.subr.mxu0 0.0
    %657 = vmatpush1.msra.mxu0 0.0
    %658 = vmatprep.subr.mxu0 0.0
    %659 = vmatpush1.msra.mxu0 0.0
    %660 = vmatprep.subr.mxu0 0.0
    %661 = vmatpush1.msra.mxu0 0.0
    %662 = vmatprep.subr.mxu0 0.0
    %663 = vmatpush1.msra.mxu0 0.0
    %664 = vmatprep.subr.mxu0 0.0
    %665 = vmatpush1.msra.mxu0 0.0
    %666 = vmatprep.subr.mxu0 0.0
    %667 = vmatpush1.msra.mxu0 0.0
    %668 = vmatprep.subr.mxu0 0.0
    %669 = vmatpush1.msra.mxu0 0.0
    %670 = vmatprep.subr.mxu0 0.0
    %671 = vmatpush1.msra.mxu0 0.0
    %672 = vmatprep.subr.mxu0 0.0
    %673 = vmatpush1.msra.mxu0 0.0
    %674 = vmatprep.subr.mxu0 0.0
    %675 = vmatpush1.msra.mxu0 0.0
    %676 = vmatprep.subr.mxu0 0.0
    %677 = vmatpush1.msra.mxu0 0.0
    %678 = vmatprep.subr.mxu0 0.0
    %679 = vmatpush1.msra.mxu0 0.0
    %680 = vmatprep.subr.mxu0 0.0
    %681 = vmatpush1.msra.mxu0 0.0
    %682 = vmatprep.subr.mxu0 0.0
    %683 = vmatpush1.msra.mxu0 0.0
    %684 = vmatprep.subr.mxu0 0.0
    %685 = vmatpush1.msra.mxu0 0.0
    %686 = vmatprep.subr.mxu0 0.0
    %687 = vmatpush1.msra.mxu0 0.0
    %688 = vmatprep.subr.mxu0 0.0
    %689 = vmatpush1.msra.mxu0 0.0
    %690 = vmatprep.subr.mxu0 0.0
    %691 = vmatpush1.msra.mxu0 0.0
    %692 = vmatprep.subr.mxu0 0.0
    %693 = vmatpush1.msra.mxu0 0.0
    %694 = vmatprep.subr.mxu0 0.0
    %695 = vmatpush1.msra.mxu0 0.0
    %696 = vmatprep.subr.mxu0 0.0
    %697 = vmatpush1.msra.mxu0 0.0
    %698 = vmatprep.mubr.f32.mxu0 0.0
    %699 = vmatmul.mubr.f32.gmra.mrb[0].mxu0 %v626
    %v700 = vpop.f32.mrb[0].mxu0
    %v701 = vadd.f32 %v621, %v700
    %v702 = vpop.f32.mrb[0].mxu0
    %v703 = vadd.f32 %v623, %v702
    %704 = vdwg.mxu0
    %v705 = vld [vmem:[%s9 + $0x4] sm:$0x3]
    %s706 = scalar_lea.vmem %s3, 96
    %v707 = vld [vmem:[%s706] sm:$0xff]
    %v708 = vld [vmem:[%s706 + $0x8] sm:$0xff]
    %v709 = vld [vmem:[%s706 + $0x10] sm:$0xff]
    %v710 = vld [vmem:[%s706 + $0x18] sm:$0xff]
    %v711 = vld [vmem:[%s706 + $0x20] sm:$0xf]
    %v712 = vld [vmem:[%s706 + $0x28] sm:$0xf]
    %v714 = vsel %vm524, %v705, 0
    %v717 = vsel %vm547, %v711, 0
    %v720 = vsel %vm547, %v712, 0
    %722 = vmatprep.subr.mxu0 %v708
    %723 = vmatpush1.msra.mxu0 %v707
    %724 = vmatprep.subr.mxu0 %v710
    %725 = vmatpush1.msra.mxu0 %v709
    %726 = vmatprep.subr.mxu0 %v720
    %727 = vmatpush1.msra.mxu0 %v717
    %728 = vmatprep.subr.mxu0 0.0
    %729 = vmatpush1.msra.mxu0 0.0
    %730 = vmatprep.subr.mxu0 0.0
    %731 = vmatpush1.msra.mxu0 0.0
    %732 = vmatprep.subr.mxu0 0.0
    %733 = vmatpush1.msra.mxu0 0.0
    %734 = vmatprep.subr.mxu0 0.0
    %735 = vmatpush1.msra.mxu0 0.0
    %736 = vmatprep.subr.mxu0 0.0
    %737 = vmatpush1.msra.mxu0 0.0
    %738 = vmatprep.subr.mxu0 0.0
    %739 = vmatpush1.msra.mxu0 0.0
    %740 = vmatprep.subr.mxu0 0.0
    %741 = vmatpush1.msra.mxu0 0.0
    %742 = vmatprep.subr.mxu0 0.0
    %743 = vmatpush1.msra.mxu0 0.0
    %744 = vmatprep.subr.mxu0 0.0
    %745 = vmatpush1.msra.mxu0 0.0
    %746 = vmatprep.subr.mxu0 0.0
    %747 = vmatpush1.msra.mxu0 0.0
    %748 = vmatprep.subr.mxu0 0.0
    %749 = vmatpush1.msra.mxu0 0.0
    %750 = vmatprep.subr.mxu0 0.0
    %751 = vmatpush1.msra.mxu0 0.0
    %752 = vmatprep.subr.mxu0 0.0
    %753 = vmatpush1.msra.mxu0 0.0
    %754 = vmatprep.subr.mxu0 0.0
    %755 = vmatpush1.msra.mxu0 0.0
    %756 = vmatprep.subr.mxu0 0.0
    %757 = vmatpush1.msra.mxu0 0.0
    %758 = vmatprep.subr.mxu0 0.0
    %759 = vmatpush1.msra.mxu0 0.0
    %760 = vmatprep.subr.mxu0 0.0
    %761 = vmatpush1.msra.mxu0 0.0
    %762 = vmatprep.subr.mxu0 0.0
    %763 = vmatpush1.msra.mxu0 0.0
    %764 = vmatprep.subr.mxu0 0.0
    %765 = vmatpush1.msra.mxu0 0.0
    %766 = vmatprep.subr.mxu0 0.0
    %767 = vmatpush1.msra.mxu0 0.0
    %768 = vmatprep.subr.mxu0 0.0
    %769 = vmatpush1.msra.mxu0 0.0
    %770 = vmatprep.subr.mxu0 0.0
    %771 = vmatpush1.msra.mxu0 0.0
    %772 = vmatprep.subr.mxu0 0.0
    %773 = vmatpush1.msra.mxu0 0.0
    %774 = vmatprep.subr.mxu0 0.0
    %775 = vmatpush1.msra.mxu0 0.0
    %776 = vmatprep.subr.mxu0 0.0
    %777 = vmatpush1.msra.mxu0 0.0
    %778 = vmatprep.subr.mxu0 0.0
    %779 = vmatpush1.msra.mxu0 0.0
    %780 = vmatprep.subr.mxu0 0.0
    %781 = vmatpush1.msra.mxu0 0.0
    %782 = vmatprep.subr.mxu0 0.0
    %783 = vmatpush1.msra.mxu0 0.0
    %784 = vmatprep.subr.mxu0 0.0
    %785 = vmatpush1.msra.mxu0 0.0
    %786 = vmatprep.mubr.f32.mxu0 0.0
    %787 = vmatmul.mubr.f32.gmra.mrb[0].mxu0 %v714
    %v788 = vpop.f32.mrb[0].mxu0
    %v789 = vadd.f32 0.0, %v788
    %v790 = vpop.f32.mrb[0].mxu0
    %v791 = vadd.f32 0.0, %v790
    %792 = vdwg.mxu0
    %v793 = vadd.f32 %v701, %v789
    %v794 = vadd.f32 %v703, %v791
    %v795 = vld [vmem:[%s9 + $0x6] sm:$0x3]
    %s796 = scalar_lea.vmem %s3, 144
    %v797 = vld [vmem:[%s796] sm:$0xff]
    %v798 = vld [vmem:[%s796 + $0x8] sm:$0xff]
    %v799 = vld [vmem:[%s796 + $0x10] sm:$0xff]
    %v800 = vld [vmem:[%s796 + $0x18] sm:$0xff]
    %v801 = vld [vmem:[%s796 + $0x20] sm:$0xf]
    %v802 = vld [vmem:[%s796 + $0x28] sm:$0xf]
    %v804 = vsel %vm524, %v795, 0
    %v807 = vsel %vm547, %v801, 0
    %v810 = vsel %vm547, %v802, 0
    %812 = vmatprep.subr.mxu0 %v798
    %813 = vmatpush1.msra.mxu0 %v797
    %814 = vmatprep.subr.mxu0 %v800
    %815 = vmatpush1.msra.mxu0 %v799
    %816 = vmatprep.subr.mxu0 %v810
    %817 = vmatpush1.msra.mxu0 %v807
    %818 = vmatprep.subr.mxu0 0.0
    %819 = vmatpush1.msra.mxu0 0.0
    %820 = vmatprep.subr.mxu0 0.0
    %821 = vmatpush1.msra.mxu0 0.0
    %822 = vmatprep.subr.mxu0 0.0
    %823 = vmatpush1.msra.mxu0 0.0
    %824 = vmatprep.subr.mxu0 0.0
    %825 = vmatpush1.msra.mxu0 0.0
    %826 = vmatprep.subr.mxu0 0.0
    %827 = vmatpush1.msra.mxu0 0.0
    %828 = vmatprep.subr.mxu0 0.0
    %829 = vmatpush1.msra.mxu0 0.0
    %830 = vmatprep.subr.mxu0 0.0
    %831 = vmatpush1.msra.mxu0 0.0
    %832 = vmatprep.subr.mxu0 0.0
    %833 = vmatpush1.msra.mxu0 0.0
    %834 = vmatprep.subr.mxu0 0.0
    %835 = vmatpush1.msra.mxu0 0.0
    %836 = vmatprep.subr.mxu0 0.0
    %837 = vmatpush1.msra.mxu0 0.0
    %838 = vmatprep.subr.mxu0 0.0
    %839 = vmatpush1.msra.mxu0 0.0
    %840 = vmatprep.subr.mxu0 0.0
    %841 = vmatpush1.msra.mxu0 0.0
    %842 = vmatprep.subr.mxu0 0.0
    %843 = vmatpush1.msra.mxu0 0.0
    %844 = vmatprep.subr.mxu0 0.0
    %845 = vmatpush1.msra.mxu0 0.0
    %846 = vmatprep.subr.mxu0 0.0
    %847 = vmatpush1.msra.mxu0 0.0
    %848 = vmatprep.subr.mxu0 0.0
    %849 = vmatpush1.msra.mxu0 0.0
    %850 = vmatprep.subr.mxu0 0.0
    %851 = vmatpush1.msra.mxu0 0.0
    %852 = vmatprep.subr.mxu0 0.0
    %853 = vmatpush1.msra.mxu0 0.0
    %854 = vmatprep.subr.mxu0 0.0
    %855 = vmatpush1.msra.mxu0 0.0
    %856 = vmatprep.subr.mxu0 0.0
    %857 = vmatpush1.msra.mxu0 0.0
    %858 = vmatprep.subr.mxu0 0.0
    %859 = vmatpush1.msra.mxu0 0.0
    %860 = vmatprep.subr.mxu0 0.0
    %861 = vmatpush1.msra.mxu0 0.0
    %862 = vmatprep.subr.mxu0 0.0
    %863 = vmatpush1.msra.mxu0 0.0
    %864 = vmatprep.subr.mxu0 0.0
    %865 = vmatpush1.msra.mxu0 0.0
    %866 = vmatprep.subr.mxu0 0.0
    %867 = vmatpush1.msra.mxu0 0.0
    %868 = vmatprep.subr.mxu0 0.0
    %869 = vmatpush1.msra.mxu0 0.0
    %870 = vmatprep.subr.mxu0 0.0
    %871 = vmatpush1.msra.mxu0 0.0
    %872 = vmatprep.subr.mxu0 0.0
    %873 = vmatpush1.msra.mxu0 0.0
    %874 = vmatprep.subr.mxu0 0.0
    %875 = vmatpush1.msra.mxu0 0.0
    %876 = vmatprep.mubr.f32.mxu0 0.0
    %877 = vmatmul.mubr.f32.gmra.mrb[0].mxu0 %v804
    %v878 = vpop.f32.mrb[0].mxu0
    %v879 = vadd.f32 0.0, %v878
    %v880 = vpop.f32.mrb[0].mxu0
    %v881 = vadd.f32 0.0, %v880
    %882 = vdwg.mxu0
    %v883 = vadd.f32 %v793, %v879
    %v884 = vadd.f32 %v794, %v881
    %v885 = vld [vmem:[%s9 + $0x8] sm:$0x3]
    %s886 = scalar_lea.vmem %s3, 192
    %v887 = vld [vmem:[%s886] sm:$0xff]
    %v888 = vld [vmem:[%s886 + $0x8] sm:$0xff]
    %v889 = vld [vmem:[%s886 + $0x10] sm:$0xff]
    %v890 = vld [vmem:[%s886 + $0x18] sm:$0xff]
    %v891 = vld [vmem:[%s886 + $0x20] sm:$0xf]
    %v892 = vld [vmem:[%s886 + $0x28] sm:$0xf]
    %v894 = vsel %vm524, %v885, 0
    %v897 = vsel %vm547, %v891, 0
    %v900 = vsel %vm547, %v892, 0
    %902 = vmatprep.subr.mxu0 %v888
    %903 = vmatpush1.msra.mxu0 %v887
    %904 = vmatprep.subr.mxu0 %v890
    %905 = vmatpush1.msra.mxu0 %v889
    %906 = vmatprep.subr.mxu0 %v900
    %907 = vmatpush1.msra.mxu0 %v897
    %908 = vmatprep.subr.mxu0 0.0
    %909 = vmatpush1.msra.mxu0 0.0
    %910 = vmatprep.subr.mxu0 0.0
    %911 = vmatpush1.msra.mxu0 0.0
    %912 = vmatprep.subr.mxu0 0.0
    %913 = vmatpush1.msra.mxu0 0.0
    %914 = vmatprep.subr.mxu0 0.0
    %915 = vmatpush1.msra.mxu0 0.0
    %916 = vmatprep.subr.mxu0 0.0
    %917 = vmatpush1.msra.mxu0 0.0
    %918 = vmatprep.subr.mxu0 0.0
    %919 = vmatpush1.msra.mxu0 0.0
    %920 = vmatprep.subr.mxu0 0.0
    %921 = vmatpush1.msra.mxu0 0.0
    %922 = vmatprep.subr.mxu0 0.0
    %923 = vmatpush1.msra.mxu0 0.0
    %924 = vmatprep.subr.mxu0 0.0
    %925 = vmatpush1.msra.mxu0 0.0
    %926 = vmatprep.subr.mxu0 0.0
    %927 = vmatpush1.msra.mxu0 0.0
    %928 = vmatprep.subr.mxu0 0.0
    %929 = vmatpush1.msra.mxu0 0.0
    %930 = vmatprep.subr.mxu0 0.0
    %931 = vmatpush1.msra.mxu0 0.0
    %932 = vmatprep.subr.mxu0 0.0
    %933 = vmatpush1.msra.mxu0 0.0
    %934 = vmatprep.subr.mxu0 0.0
    %935 = vmatpush1.msra.mxu0 0.0
    %936 = vmatprep.subr.mxu0 0.0
    %937 = vmatpush1.msra.mxu0 0.0
    %938 = vmatprep.subr.mxu0 0.0
    %939 = vmatpush1.msra.mxu0 0.0
    %940 = vmatprep.subr.mxu0 0.0
    %941 = vmatpush1.msra.mxu0 0.0
    %942 = vmatprep.subr.mxu0 0.0
    %943 = vmatpush1.msra.mxu0 0.0
    %944 = vmatprep.subr.mxu0 0.0
    %945 = vmatpush1.msra.mxu0 0.0
    %946 = vmatprep.subr.mxu0 0.0
    %947 = vmatpush1.msra.mxu0 0.0
    %948 = vmatprep.subr.mxu0 0.0
    %949 = vmatpush1.msra.mxu0 0.0
    %950 = vmatprep.subr.mxu0 0.0
    %951 = vmatpush1.msra.mxu0 0.0
    %952 = vmatprep.subr.mxu0 0.0
    %953 = vmatpush1.msra.mxu0 0.0
    %954 = vmatprep.subr.mxu0 0.0
    %955 = vmatpush1.msra.mxu0 0.0
    %956 = vmatprep.subr.mxu0 0.0
    %957 = vmatpush1.msra.mxu0 0.0
    %958 = vmatprep.subr.mxu0 0.0
    %959 = vmatpush1.msra.mxu0 0.0
    %960 = vmatprep.subr.mxu0 0.0
    %961 = vmatpush1.msra.mxu0 0.0
    %962 = vmatprep.subr.mxu0 0.0
    %963 = vmatpush1.msra.mxu0 0.0
    %964 = vmatprep.subr.mxu0 0.0
    %965 = vmatpush1.msra.mxu0 0.0
    %966 = vmatprep.mubr.f32.mxu0 0.0
    %967 = vmatmul.mubr.f32.gmra.mrb[0].mxu0 %v894
    %v968 = vpop.f32.mrb[0].mxu0
    %v969 = vadd.f32 0.0, %v968
    %v970 = vpop.f32.mrb[0].mxu0
    %v971 = vadd.f32 0.0, %v970
    %972 = vdwg.mxu0
    %v973 = vadd.f32 %v883, %v969
    %v974 = vadd.f32 %v884, %v971
    %v975 = vld [vmem:[%s9 + $0xa] sm:$0x3]
    %s976 = scalar_lea.vmem %s3, 240
    %v977 = vld [vmem:[%s976] sm:$0xff]
    %v978 = vld [vmem:[%s976 + $0x8] sm:$0xff]
    %v979 = vld [vmem:[%s976 + $0x10] sm:$0xff]
    %v980 = vld [vmem:[%s976 + $0x18] sm:$0xff]
    %v981 = vld [vmem:[%s976 + $0x20] sm:$0xf]
    %v982 = vld [vmem:[%s976 + $0x28] sm:$0xf]
    %v984 = vsel %vm524, %v975, 0
    %v987 = vsel %vm547, %v981, 0
    %v990 = vsel %vm547, %v982, 0
    %992 = vmatprep.subr.mxu0 %v978
    %993 = vmatpush1.msra.mxu0 %v977
    %994 = vmatprep.subr.mxu0 %v980
    %995 = vmatpush1.msra.mxu0 %v979
    %996 = vmatprep.subr.mxu0 %v990
    %997 = vmatpush1.msra.mxu0 %v987
    %998 = vmatprep.subr.mxu0 0.0
    %999 = vmatpush1.msra.mxu0 0.0
    %1000 = vmatprep.subr.mxu0 0.0
    %1001 = vmatpush1.msra.mxu0 0.0
    %1002 = vmatprep.subr.mxu0 0.0
    %1003 = vmatpush1.msra.mxu0 0.0
    %1004 = vmatprep.subr.mxu0 0.0
    %1005 = vmatpush1.msra.mxu0 0.0
    %1006 = vmatprep.subr.mxu0 0.0
    %1007 = vmatpush1.msra.mxu0 0.0
    %1008 = vmatprep.subr.mxu0 0.0
    %1009 = vmatpush1.msra.mxu0 0.0
    %1010 = vmatprep.subr.mxu0 0.0
    %1011 = vmatpush1.msra.mxu0 0.0
    %1012 = vmatprep.subr.mxu0 0.0
    %1013 = vmatpush1.msra.mxu0 0.0
    %1014 = vmatprep.subr.mxu0 0.0
    %1015 = vmatpush1.msra.mxu0 0.0
    %1016 = vmatprep.subr.mxu0 0.0
    %1017 = vmatpush1.msra.mxu0 0.0
    %1018 = vmatprep.subr.mxu0 0.0
    %1019 = vmatpush1.msra.mxu0 0.0
    %1020 = vmatprep.subr.mxu0 0.0
    %1021 = vmatpush1.msra.mxu0 0.0
    %1022 = vmatprep.subr.mxu0 0.0
    %1023 = vmatpush1.msra.mxu0 0.0
    %1024 = vmatprep.subr.mxu0 0.0
    %1025 = vmatpush1.msra.mxu0 0.0
    %1026 = vmatprep.subr.mxu0 0.0
    %1027 = vmatpush1.msra.mxu0 0.0
    %1028 = vmatprep.subr.mxu0 0.0
    %1029 = vmatpush1.msra.mxu0 0.0
    %1030 = vmatprep.subr.mxu0 0.0
    %1031 = vmatpush1.msra.mxu0 0.0
    %1032 = vmatprep.subr.mxu0 0.0
    %1033 = vmatpush1.msra.mxu0 0.0
    %1034 = vmatprep.subr.mxu0 0.0
    %1035 = vmatpush1.msra.mxu0 0.0
    %1036 = vmatprep.subr.mxu0 0.0
    %1037 = vmatpush1.msra.mxu0 0.0
    %1038 = vmatprep.subr.mxu0 0.0
    %1039 = vmatpush1.msra.mxu0 0.0
    %1040 = vmatprep.subr.mxu0 0.0
    %1041 = vmatpush1.msra.mxu0 0.0
    %1042 = vmatprep.subr.mxu0 0.0
    %1043 = vmatpush1.msra.mxu0 0.0
    %1044 = vmatprep.subr.mxu0 0.0
    %1045 = vmatpush1.msra.mxu0 0.0
    %1046 = vmatprep.subr.mxu0 0.0
    %1047 = vmatpush1.msra.mxu0 0.0
    %1048 = vmatprep.subr.mxu0 0.0
    %1049 = vmatpush1.msra.mxu0 0.0
    %1050 = vmatprep.subr.mxu0 0.0
    %1051 = vmatpush1.msra.mxu0 0.0
    %1052 = vmatprep.subr.mxu0 0.0
    %1053 = vmatpush1.msra.mxu0 0.0
    %1054 = vmatprep.subr.mxu0 0.0
    %1055 = vmatpush1.msra.mxu0 0.0
    %1056 = vmatprep.mubr.f32.mxu0 0.0
    %1057 = vmatmul.mubr.f32.gmra.mrb[0].mxu0 %v984
    %v1058 = vpop.f32.mrb[0].mxu0
    %v1059 = vadd.f32 0.0, %v1058
    %v1060 = vpop.f32.mrb[0].mxu0
    %v1061 = vadd.f32 0.0, %v1060
    %1062 = vdwg.mxu0
    %v1063 = vadd.f32 %v973, %v1059
    %v1064 = vadd.f32 %v974, %v1061
    %v1065 = vld [vmem:[%s9 + $0xc] sm:$0x3]
    %s1066 = scalar_lea.vmem %s3, 288
    %v1067 = vld [vmem:[%s1066] sm:$0xff]
    %v1068 = vld [vmem:[%s1066 + $0x8] sm:$0xff]
    %v1069 = vld [vmem:[%s1066 + $0x10] sm:$0xff]
    %v1070 = vld [vmem:[%s1066 + $0x18] sm:$0xff]
    %v1071 = vld [vmem:[%s1066 + $0x20] sm:$0xf]
    %v1072 = vld [vmem:[%s1066 + $0x28] sm:$0xf]
    %v1074 = vsel %vm524, %v1065, 0
    %v1077 = vsel %vm547, %v1071, 0
    %v1080 = vsel %vm547, %v1072, 0
    %1082 = vmatprep.subr.mxu0 %v1068
    %1083 = vmatpush1.msra.mxu0 %v1067
    %1084 = vmatprep.subr.mxu0 %v1070
    %1085 = vmatpush1.msra.mxu0 %v1069
    %1086 = vmatprep.subr.mxu0 %v1080
    %1087 = vmatpush1.msra.mxu0 %v1077
    %1088 = vmatprep.subr.mxu0 0.0
    %1089 = vmatpush1.msra.mxu0 0.0
    %1090 = vmatprep.subr.mxu0 0.0
    %1091 = vmatpush1.msra.mxu0 0.0
    %1092 = vmatprep.subr.mxu0 0.0
    %1093 = vmatpush1.msra.mxu0 0.0
    %1094 = vmatprep.subr.mxu0 0.0
    %1095 = vmatpush1.msra.mxu0 0.0
    %1096 = vmatprep.subr.mxu0 0.0
    %1097 = vmatpush1.msra.mxu0 0.0
    %1098 = vmatprep.subr.mxu0 0.0
    %1099 = vmatpush1.msra.mxu0 0.0
    %1100 = vmatprep.subr.mxu0 0.0
    %1101 = vmatpush1.msra.mxu0 0.0
    %1102 = vmatprep.subr.mxu0 0.0
    %1103 = vmatpush1.msra.mxu0 0.0
    %1104 = vmatprep.subr.mxu0 0.0
    %1105 = vmatpush1.msra.mxu0 0.0
    %1106 = vmatprep.subr.mxu0 0.0
    %1107 = vmatpush1.msra.mxu0 0.0
    %1108 = vmatprep.subr.mxu0 0.0
    %1109 = vmatpush1.msra.mxu0 0.0
    %1110 = vmatprep.subr.mxu0 0.0
    %1111 = vmatpush1.msra.mxu0 0.0
    %1112 = vmatprep.subr.mxu0 0.0
    %1113 = vmatpush1.msra.mxu0 0.0
    %1114 = vmatprep.subr.mxu0 0.0
    %1115 = vmatpush1.msra.mxu0 0.0
    %1116 = vmatprep.subr.mxu0 0.0
    %1117 = vmatpush1.msra.mxu0 0.0
    %1118 = vmatprep.subr.mxu0 0.0
    %1119 = vmatpush1.msra.mxu0 0.0
    %1120 = vmatprep.subr.mxu0 0.0
    %1121 = vmatpush1.msra.mxu0 0.0
    %1122 = vmatprep.subr.mxu0 0.0
    %1123 = vmatpush1.msra.mxu0 0.0
    %1124 = vmatprep.subr.mxu0 0.0
    %1125 = vmatpush1.msra.mxu0 0.0
    %1126 = vmatprep.subr.mxu0 0.0
    %1127 = vmatpush1.msra.mxu0 0.0
    %1128 = vmatprep.subr.mxu0 0.0
    %1129 = vmatpush1.msra.mxu0 0.0
    %1130 = vmatprep.subr.mxu0 0.0
    %1131 = vmatpush1.msra.mxu0 0.0
    %1132 = vmatprep.subr.mxu0 0.0
    %1133 = vmatpush1.msra.mxu0 0.0
    %1134 = vmatprep.subr.mxu0 0.0
    %1135 = vmatpush1.msra.mxu0 0.0
    %1136 = vmatprep.subr.mxu0 0.0
    %1137 = vmatpush1.msra.mxu0 0.0
    %1138 = vmatprep.subr.mxu0 0.0
    %1139 = vmatpush1.msra.mxu0 0.0
    %1140 = vmatprep.subr.mxu0 0.0
    %1141 = vmatpush1.msra.mxu0 0.0
    %1142 = vmatprep.subr.mxu0 0.0
    %1143 = vmatpush1.msra.mxu0 0.0
    %1144 = vmatprep.subr.mxu0 0.0
    %1145 = vmatpush1.msra.mxu0 0.0
    %1146 = vmatprep.mubr.f32.mxu0 0.0
    %1147 = vmatmul.mubr.f32.gmra.mrb[0].mxu0 %v1074
    %v1148 = vpop.f32.mrb[0].mxu0
    %v1149 = vadd.f32 0.0, %v1148
    %v1150 = vpop.f32.mrb[0].mxu0
    %v1151 = vadd.f32 0.0, %v1150
    %1152 = vdwg.mxu0
    %v1153 = vadd.f32 %v1063, %v1149
    %v1154 = vadd.f32 %v1064, %v1151
    %v1155 = vld [vmem:[%s9 + $0xe] sm:$0x3]
    %s1156 = scalar_lea.vmem %s3, 336
    %v1157 = vld [vmem:[%s1156] sm:$0xff]
    %v1158 = vld [vmem:[%s1156 + $0x8] sm:$0xff]
    %v1159 = vld [vmem:[%s1156 + $0x10] sm:$0xff]
    %v1160 = vld [vmem:[%s1156 + $0x18] sm:$0xff]
    %v1161 = vld [vmem:[%s1156 + $0x20] sm:$0xf]
    %v1162 = vld [vmem:[%s1156 + $0x28] sm:$0xf]
    %v1164 = vsel %vm524, %v1155, 0
    %v1167 = vsel %vm547, %v1161, 0
    %v1170 = vsel %vm547, %v1162, 0
    %1172 = vmatprep.subr.mxu0 %v1158
    %1173 = vmatpush1.msra.mxu0 %v1157
    %1174 = vmatprep.subr.mxu0 %v1160
    %1175 = vmatpush1.msra.mxu0 %v1159
    %1176 = vmatprep.subr.mxu0 %v1170
    %1177 = vmatpush1.msra.mxu0 %v1167
    %1178 = vmatprep.subr.mxu0 0.0
    %1179 = vmatpush1.msra.mxu0 0.0
    %1180 = vmatprep.subr.mxu0 0.0
    %1181 = vmatpush1.msra.mxu0 0.0
    %1182 = vmatprep.subr.mxu0 0.0
    %1183 = vmatpush1.msra.mxu0 0.0
    %1184 = vmatprep.subr.mxu0 0.0
    %1185 = vmatpush1.msra.mxu0 0.0
    %1186 = vmatprep.subr.mxu0 0.0
    %1187 = vmatpush1.msra.mxu0 0.0
    %1188 = vmatprep.subr.mxu0 0.0
    %1189 = vmatpush1.msra.mxu0 0.0
    %1190 = vmatprep.subr.mxu0 0.0
    %1191 = vmatpush1.msra.mxu0 0.0
    %1192 = vmatprep.subr.mxu0 0.0
    %1193 = vmatpush1.msra.mxu0 0.0
    %1194 = vmatprep.subr.mxu0 0.0
    %1195 = vmatpush1.msra.mxu0 0.0
    %1196 = vmatprep.subr.mxu0 0.0
    %1197 = vmatpush1.msra.mxu0 0.0
    %1198 = vmatprep.subr.mxu0 0.0
    %1199 = vmatpush1.msra.mxu0 0.0
    %1200 = vmatprep.subr.mxu0 0.0
    %1201 = vmatpush1.msra.mxu0 0.0
    %1202 = vmatprep.subr.mxu0 0.0
    %1203 = vmatpush1.msra.mxu0 0.0
    %1204 = vmatprep.subr.mxu0 0.0
    %1205 = vmatpush1.msra.mxu0 0.0
    %1206 = vmatprep.subr.mxu0 0.0
    %1207 = vmatpush1.msra.mxu0 0.0
    %1208 = vmatprep.subr.mxu0 0.0
    %1209 = vmatpush1.msra.mxu0 0.0
    %1210 = vmatprep.subr.mxu0 0.0
    %1211 = vmatpush1.msra.mxu0 0.0
    %1212 = vmatprep.subr.mxu0 0.0
    %1213 = vmatpush1.msra.mxu0 0.0
    %1214 = vmatprep.subr.mxu0 0.0
    %1215 = vmatpush1.msra.mxu0 0.0
    %1216 = vmatprep.subr.mxu0 0.0
    %1217 = vmatpush1.msra.mxu0 0.0
    %1218 = vmatprep.subr.mxu0 0.0
    %1219 = vmatpush1.msra.mxu0 0.0
    %1220 = vmatprep.subr.mxu0 0.0
    %1221 = vmatpush1.msra.mxu0 0.0
    %1222 = vmatprep.subr.mxu0 0.0
    %1223 = vmatpush1.msra.mxu0 0.0
    %1224 = vmatprep.subr.mxu0 0.0
    %1225 = vmatpush1.msra.mxu0 0.0
    %1226 = vmatprep.subr.mxu0 0.0
    %1227 = vmatpush1.msra.mxu0 0.0
    %1228 = vmatprep.subr.mxu0 0.0
    %1229 = vmatpush1.msra.mxu0 0.0
    %1230 = vmatprep.subr.mxu0 0.0
    %1231 = vmatpush1.msra.mxu0 0.0
    %1232 = vmatprep.subr.mxu0 0.0
    %1233 = vmatpush1.msra.mxu0 0.0
    %1234 = vmatprep.subr.mxu0 0.0
    %1235 = vmatpush1.msra.mxu0 0.0
    %1236 = vmatprep.mubr.f32.mxu0 0.0
    %1237 = vmatmul.mubr.f32.gmra.mrb[0].mxu0 %v1164
    %v1238 = vpop.f32.mrb[0].mxu0
    %v1239 = vadd.f32 0.0, %v1238
    %v1240 = vpop.f32.mrb[0].mxu0
    %v1241 = vadd.f32 0.0, %v1240
    %1242 = vdwg.mxu0
    %v1243 = vadd.f32 %v1153, %v1239
    %v1244 = vadd.f32 %v1154, %v1241
    %v1245 = vld [vmem:[%s9 + $0x10] sm:$0x3]
    %s1246 = scalar_lea.vmem %s3, 384
    %v1247 = vld [vmem:[%s1246] sm:$0xff]
    %v1248 = vld [vmem:[%s1246 + $0x8] sm:$0xff]
    %v1249 = vld [vmem:[%s1246 + $0x10] sm:$0xff]
    %v1250 = vld [vmem:[%s1246 + $0x18] sm:$0xff]
    %v1251 = vld [vmem:[%s1246 + $0x20] sm:$0xf]
    %v1252 = vld [vmem:[%s1246 + $0x28] sm:$0xf]
    %v1254 = vsel %vm524, %v1245, 0
    %v1257 = vsel %vm547, %v1251, 0
    %v1260 = vsel %vm547, %v1252, 0
    %1262 = vmatprep.subr.mxu0 %v1248
    %1263 = vmatpush1.msra.mxu0 %v1247
    %1264 = vmatprep.subr.mxu0 %v1250
    %1265 = vmatpush1.msra.mxu0 %v1249
    %1266 = vmatprep.subr.mxu0 %v1260
    %1267 = vmatpush1.msra.mxu0 %v1257
    %1268 = vmatprep.subr.mxu0 0.0
    %1269 = vmatpush1.msra.mxu0 0.0
    %1270 = vmatprep.subr.mxu0 0.0
    %1271 = vmatpush1.msra.mxu0 0.0
    %1272 = vmatprep.subr.mxu0 0.0
    %1273 = vmatpush1.msra.mxu0 0.0
    %1274 = vmatprep.subr.mxu0 0.0
    %1275 = vmatpush1.msra.mxu0 0.0
    %1276 = vmatprep.subr.mxu0 0.0
    %1277 = vmatpush1.msra.mxu0 0.0
    %1278 = vmatprep.subr.mxu0 0.0
    %1279 = vmatpush1.msra.mxu0 0.0
    %1280 = vmatprep.subr.mxu0 0.0
    %1281 = vmatpush1.msra.mxu0 0.0
    %1282 = vmatprep.subr.mxu0 0.0
    %1283 = vmatpush1.msra.mxu0 0.0
    %1284 = vmatprep.subr.mxu0 0.0
    %1285 = vmatpush1.msra.mxu0 0.0
    %1286 = vmatprep.subr.mxu0 0.0
    %1287 = vmatpush1.msra.mxu0 0.0
    %1288 = vmatprep.subr.mxu0 0.0
    %1289 = vmatpush1.msra.mxu0 0.0
    %1290 = vmatprep.subr.mxu0 0.0
    %1291 = vmatpush1.msra.mxu0 0.0
    %1292 = vmatprep.subr.mxu0 0.0
    %1293 = vmatpush1.msra.mxu0 0.0
    %1294 = vmatprep.subr.mxu0 0.0
    %1295 = vmatpush1.msra.mxu0 0.0
    %1296 = vmatprep.subr.mxu0 0.0
    %1297 = vmatpush1.msra.mxu0 0.0
    %1298 = vmatprep.subr.mxu0 0.0
    %1299 = vmatpush1.msra.mxu0 0.0
    %1300 = vmatprep.subr.mxu0 0.0
    %1301 = vmatpush1.msra.mxu0 0.0
    %1302 = vmatprep.subr.mxu0 0.0
    %1303 = vmatpush1.msra.mxu0 0.0
    %1304 = vmatprep.subr.mxu0 0.0
    %1305 = vmatpush1.msra.mxu0 0.0
    %1306 = vmatprep.subr.mxu0 0.0
    %1307 = vmatpush1.msra.mxu0 0.0
    %1308 = vmatprep.subr.mxu0 0.0
    %1309 = vmatpush1.msra.mxu0 0.0
    %1310 = vmatprep.subr.mxu0 0.0
    %1311 = vmatpush1.msra.mxu0 0.0
    %1312 = vmatprep.subr.mxu0 0.0
    %1313 = vmatpush1.msra.mxu0 0.0
    %1314 = vmatprep.subr.mxu0 0.0
    %1315 = vmatpush1.msra.mxu0 0.0
    %1316 = vmatprep.subr.mxu0 0.0
    %1317 = vmatpush1.msra.mxu0 0.0
    %1318 = vmatprep.subr.mxu0 0.0
    %1319 = vmatpush1.msra.mxu0 0.0
    %1320 = vmatprep.subr.mxu0 0.0
    %1321 = vmatpush1.msra.mxu0 0.0
    %1322 = vmatprep.subr.mxu0 0.0
    %1323 = vmatpush1.msra.mxu0 0.0
    %1324 = vmatprep.subr.mxu0 0.0
    %1325 = vmatpush1.msra.mxu0 0.0
    %1326 = vmatprep.mubr.f32.mxu0 0.0
    %1327 = vmatmul.mubr.f32.gmra.mrb[0].mxu0 %v1254
    %v1328 = vpop.f32.mrb[0].mxu0
    %v1329 = vadd.f32 0.0, %v1328
    %v1330 = vpop.f32.mrb[0].mxu0
    %v1331 = vadd.f32 0.0, %v1330
    %1332 = vdwg.mxu0
    %v1333 = vadd.f32 %v1243, %v1329
    %v1334 = vadd.f32 %v1244, %v1331
    %v1335 = vld [vmem:[%s9 + $0x12] sm:$0x3]
    %s1336 = scalar_lea.vmem %s3, 432
    %v1337 = vld [vmem:[%s1336] sm:$0xff]
    %v1338 = vld [vmem:[%s1336 + $0x8] sm:$0xff]
    %v1339 = vld [vmem:[%s1336 + $0x10] sm:$0xff]
    %v1340 = vld [vmem:[%s1336 + $0x18] sm:$0xff]
    %v1341 = vld [vmem:[%s1336 + $0x20] sm:$0xf]
    %v1342 = vld [vmem:[%s1336 + $0x28] sm:$0xf]
    %v1344 = vsel %vm524, %v1335, 0
    %v1347 = vsel %vm547, %v1341, 0
    %v1350 = vsel %vm547, %v1342, 0
    %1352 = vmatprep.subr.mxu0 %v1338
    %1353 = vmatpush1.msra.mxu0 %v1337
    %1354 = vmatprep.subr.mxu0 %v1340
    %1355 = vmatpush1.msra.mxu0 %v1339
    %1356 = vmatprep.subr.mxu0 %v1350
    %1357 = vmatpush1.msra.mxu0 %v1347
    %1358 = vmatprep.subr.mxu0 0.0
    %1359 = vmatpush1.msra.mxu0 0.0
    %1360 = vmatprep.subr.mxu0 0.0
    %1361 = vmatpush1.msra.mxu0 0.0
    %1362 = vmatprep.subr.mxu0 0.0
    %1363 = vmatpush1.msra.mxu0 0.0
    %1364 = vmatprep.subr.mxu0 0.0
    %1365 = vmatpush1.msra.mxu0 0.0
    %1366 = vmatprep.subr.mxu0 0.0
    %1367 = vmatpush1.msra.mxu0 0.0
    %1368 = vmatprep.subr.mxu0 0.0
    %1369 = vmatpush1.msra.mxu0 0.0
    %1370 = vmatprep.subr.mxu0 0.0
    %1371 = vmatpush1.msra.mxu0 0.0
    %1372 = vmatprep.subr.mxu0 0.0
    %1373 = vmatpush1.msra.mxu0 0.0
    %1374 = vmatprep.subr.mxu0 0.0
    %1375 = vmatpush1.msra.mxu0 0.0
    %1376 = vmatprep.subr.mxu0 0.0
    %1377 = vmatpush1.msra.mxu0 0.0
    %1378 = vmatprep.subr.mxu0 0.0
    %1379 = vmatpush1.msra.mxu0 0.0
    %1380 = vmatprep.subr.mxu0 0.0
    %1381 = vmatpush1.msra.mxu0 0.0
    %1382 = vmatprep.subr.mxu0 0.0
    %1383 = vmatpush1.msra.mxu0 0.0
    %1384 = vmatprep.subr.mxu0 0.0
    %1385 = vmatpush1.msra.mxu0 0.0
    %1386 = vmatprep.subr.mxu0 0.0
    %1387 = vmatpush1.msra.mxu0 0.0
    %1388 = vmatprep.subr.mxu0 0.0
    %1389 = vmatpush1.msra.mxu0 0.0
    %1390 = vmatprep.subr.mxu0 0.0
    %1391 = vmatpush1.msra.mxu0 0.0
    %1392 = vmatprep.subr.mxu0 0.0
    %1393 = vmatpush1.msra.mxu0 0.0
    %1394 = vmatprep.subr.mxu0 0.0
    %1395 = vmatpush1.msra.mxu0 0.0
    %1396 = vmatprep.subr.mxu0 0.0
    %1397 = vmatpush1.msra.mxu0 0.0
    %1398 = vmatprep.subr.mxu0 0.0
    %1399 = vmatpush1.msra.mxu0 0.0
    %1400 = vmatprep.subr.mxu0 0.0
    %1401 = vmatpush1.msra.mxu0 0.0
    %1402 = vmatprep.subr.mxu0 0.0
    %1403 = vmatpush1.msra.mxu0 0.0
    %1404 = vmatprep.subr.mxu0 0.0
    %1405 = vmatpush1.msra.mxu0 0.0
    %1406 = vmatprep.subr.mxu0 0.0
    %1407 = vmatpush1.msra.mxu0 0.0
    %1408 = vmatprep.subr.mxu0 0.0
    %1409 = vmatpush1.msra.mxu0 0.0
    %1410 = vmatprep.subr.mxu0 0.0
    %1411 = vmatpush1.msra.mxu0 0.0
    %1412 = vmatprep.subr.mxu0 0.0
    %1413 = vmatpush1.msra.mxu0 0.0
    %1414 = vmatprep.subr.mxu0 0.0
    %1415 = vmatpush1.msra.mxu0 0.0
    %1416 = vmatprep.mubr.f32.mxu0 0.0
    %1417 = vmatmul.mubr.f32.gmra.mrb[0].mxu0 %v1344
    %v1418 = vpop.f32.mrb[0].mxu0
    %v1419 = vadd.f32 0.0, %v1418
    %v1420 = vpop.f32.mrb[0].mxu0
    %v1421 = vadd.f32 0.0, %v1420
    %1422 = vdwg.mxu0
    %v1423 = vadd.f32 %v1333, %v1419
    %v1424 = vadd.f32 %v1334, %v1421
    %v1425 = vld [vmem:[%s9 + $0x14] sm:$0x3]
    %s1426 = scalar_lea.vmem %s3, 480
    %v1427 = vld [vmem:[%s1426] sm:$0xff]
    %v1428 = vld [vmem:[%s1426 + $0x8] sm:$0xff]
    %v1429 = vld [vmem:[%s1426 + $0x10] sm:$0xff]
    %v1430 = vld [vmem:[%s1426 + $0x18] sm:$0xff]
    %v1431 = vld [vmem:[%s1426 + $0x20] sm:$0xf]
    %v1432 = vld [vmem:[%s1426 + $0x28] sm:$0xf]
    %v1434 = vsel %vm524, %v1425, 0
    %v1437 = vsel %vm547, %v1431, 0
    %v1440 = vsel %vm547, %v1432, 0
    %1442 = vmatprep.subr.mxu0 %v1428
    %1443 = vmatpush1.msra.mxu0 %v1427
    %1444 = vmatprep.subr.mxu0 %v1430
    %1445 = vmatpush1.msra.mxu0 %v1429
    %1446 = vmatprep.subr.mxu0 %v1440
    %1447 = vmatpush1.msra.mxu0 %v1437
    %1448 = vmatprep.subr.mxu0 0.0
    %1449 = vmatpush1.msra.mxu0 0.0
    %1450 = vmatprep.subr.mxu0 0.0
    %1451 = vmatpush1.msra.mxu0 0.0
    %1452 = vmatprep.subr.mxu0 0.0
    %1453 = vmatpush1.msra.mxu0 0.0
    %1454 = vmatprep.subr.mxu0 0.0
    %1455 = vmatpush1.msra.mxu0 0.0
    %1456 = vmatprep.subr.mxu0 0.0
    %1457 = vmatpush1.msra.mxu0 0.0
    %1458 = vmatprep.subr.mxu0 0.0
    %1459 = vmatpush1.msra.mxu0 0.0
    %1460 = vmatprep.subr.mxu0 0.0
    %1461 = vmatpush1.msra.mxu0 0.0
    %1462 = vmatprep.subr.mxu0 0.0
    %1463 = vmatpush1.msra.mxu0 0.0
    %1464 = vmatprep.subr.mxu0 0.0
    %1465 = vmatpush1.msra.mxu0 0.0
    %1466 = vmatprep.subr.mxu0 0.0
    %1467 = vmatpush1.msra.mxu0 0.0
    %1468 = vmatprep.subr.mxu0 0.0
    %1469 = vmatpush1.msra.mxu0 0.0
    %1470 = vmatprep.subr.mxu0 0.0
    %1471 = vmatpush1.msra.mxu0 0.0
    %1472 = vmatprep.subr.mxu0 0.0
    %1473 = vmatpush1.msra.mxu0 0.0
    %1474 = vmatprep.subr.mxu0 0.0
    %1475 = vmatpush1.msra.mxu0 0.0
    %1476 = vmatprep.subr.mxu0 0.0
    %1477 = vmatpush1.msra.mxu0 0.0
    %1478 = vmatprep.subr.mxu0 0.0
    %1479 = vmatpush1.msra.mxu0 0.0
    %1480 = vmatprep.subr.mxu0 0.0
    %1481 = vmatpush1.msra.mxu0 0.0
    %1482 = vmatprep.subr.mxu0 0.0
    %1483 = vmatpush1.msra.mxu0 0.0
    %1484 = vmatprep.subr.mxu0 0.0
    %1485 = vmatpush1.msra.mxu0 0.0
    %1486 = vmatprep.subr.mxu0 0.0
    %1487 = vmatpush1.msra.mxu0 0.0
    %1488 = vmatprep.subr.mxu0 0.0
    %1489 = vmatpush1.msra.mxu0 0.0
    %1490 = vmatprep.subr.mxu0 0.0
    %1491 = vmatpush1.msra.mxu0 0.0
    %1492 = vmatprep.subr.mxu0 0.0
    %1493 = vmatpush1.msra.mxu0 0.0
    %1494 = vmatprep.subr.mxu0 0.0
    %1495 = vmatpush1.msra.mxu0 0.0
    %1496 = vmatprep.subr.mxu0 0.0
    %1497 = vmatpush1.msra.mxu0 0.0
    %1498 = vmatprep.subr.mxu0 0.0
    %1499 = vmatpush1.msra.mxu0 0.0
    %1500 = vmatprep.subr.mxu0 0.0
    %1501 = vmatpush1.msra.mxu0 0.0
    %1502 = vmatprep.subr.mxu0 0.0
    %1503 = vmatpush1.msra.mxu0 0.0
    %1504 = vmatprep.subr.mxu0 0.0
    %1505 = vmatpush1.msra.mxu0 0.0
    %1506 = vmatprep.mubr.f32.mxu0 0.0
    %1507 = vmatmul.mubr.f32.gmra.mrb[0].mxu0 %v1434
    %v1508 = vpop.f32.mrb[0].mxu0
    %v1509 = vadd.f32 0.0, %v1508
    %v1510 = vpop.f32.mrb[0].mxu0
    %v1511 = vadd.f32 0.0, %v1510
    %1512 = vdwg.mxu0
    %v1513 = vadd.f32 %v1423, %v1509
    %v1514 = vadd.f32 %v1424, %v1511
    %v1515 = vld [vmem:[%s9 + $0x16] sm:$0x3]
    %s1516 = scalar_lea.vmem %s3, 528
    %v1517 = vld [vmem:[%s1516] sm:$0xff]
    %v1518 = vld [vmem:[%s1516 + $0x8] sm:$0xff]
    %v1519 = vld [vmem:[%s1516 + $0x10] sm:$0xff]
    %v1520 = vld [vmem:[%s1516 + $0x18] sm:$0xff]
    %v1521 = vld [vmem:[%s1516 + $0x20] sm:$0xf]
    %v1522 = vld [vmem:[%s1516 + $0x28] sm:$0xf]
    %v1524 = vsel %vm524, %v1515, 0
    %v1527 = vsel %vm547, %v1521, 0
    %v1530 = vsel %vm547, %v1522, 0
    %1532 = vmatprep.subr.mxu0 %v1518
    %1533 = vmatpush1.msra.mxu0 %v1517
    %1534 = vmatprep.subr.mxu0 %v1520
    %1535 = vmatpush1.msra.mxu0 %v1519
    %1536 = vmatprep.subr.mxu0 %v1530
    %1537 = vmatpush1.msra.mxu0 %v1527
    %1538 = vmatprep.subr.mxu0 0.0
    %1539 = vmatpush1.msra.mxu0 0.0
    %1540 = vmatprep.subr.mxu0 0.0
    %1541 = vmatpush1.msra.mxu0 0.0
    %1542 = vmatprep.subr.mxu0 0.0
    %1543 = vmatpush1.msra.mxu0 0.0
    %1544 = vmatprep.subr.mxu0 0.0
    %1545 = vmatpush1.msra.mxu0 0.0
    %1546 = vmatprep.subr.mxu0 0.0
    %1547 = vmatpush1.msra.mxu0 0.0
    %1548 = vmatprep.subr.mxu0 0.0
    %1549 = vmatpush1.msra.mxu0 0.0
    %1550 = vmatprep.subr.mxu0 0.0
    %1551 = vmatpush1.msra.mxu0 0.0
    %1552 = vmatprep.subr.mxu0 0.0
    %1553 = vmatpush1.msra.mxu0 0.0
    %1554 = vmatprep.subr.mxu0 0.0
    %1555 = vmatpush1.msra.mxu0 0.0
    %1556 = vmatprep.subr.mxu0 0.0
    %1557 = vmatpush1.msra.mxu0 0.0
    %1558 = vmatprep.subr.mxu0 0.0
    %1559 = vmatpush1.msra.mxu0 0.0
    %1560 = vmatprep.subr.mxu0 0.0
    %1561 = vmatpush1.msra.mxu0 0.0
    %1562 = vmatprep.subr.mxu0 0.0
    %1563 = vmatpush1.msra.mxu0 0.0
    %1564 = vmatprep.subr.mxu0 0.0
    %1565 = vmatpush1.msra.mxu0 0.0
    %1566 = vmatprep.subr.mxu0 0.0
    %1567 = vmatpush1.msra.mxu0 0.0
    %1568 = vmatprep.subr.mxu0 0.0
    %1569 = vmatpush1.msra.mxu0 0.0
    %1570 = vmatprep.subr.mxu0 0.0
    %1571 = vmatpush1.msra.mxu0 0.0
    %1572 = vmatprep.subr.mxu0 0.0
    %1573 = vmatpush1.msra.mxu0 0.0
    %1574 = vmatprep.subr.mxu0 0.0
    %1575 = vmatpush1.msra.mxu0 0.0
    %1576 = vmatprep.subr.mxu0 0.0
    %1577 = vmatpush1.msra.mxu0 0.0
    %1578 = vmatprep.subr.mxu0 0.0
    %1579 = vmatpush1.msra.mxu0 0.0
    %1580 = vmatprep.subr.mxu0 0.0
    %1581 = vmatpush1.msra.mxu0 0.0
    %1582 = vmatprep.subr.mxu0 0.0
    %1583 = vmatpush1.msra.mxu0 0.0
    %1584 = vmatprep.subr.mxu0 0.0
    %1585 = vmatpush1.msra.mxu0 0.0
    %1586 = vmatprep.subr.mxu0 0.0
    %1587 = vmatpush1.msra.mxu0 0.0
    %1588 = vmatprep.subr.mxu0 0.0
    %1589 = vmatpush1.msra.mxu0 0.0
    %1590 = vmatprep.subr.mxu0 0.0
    %1591 = vmatpush1.msra.mxu0 0.0
    %1592 = vmatprep.subr.mxu0 0.0
    %1593 = vmatpush1.msra.mxu0 0.0
    %1594 = vmatprep.subr.mxu0 0.0
    %1595 = vmatpush1.msra.mxu0 0.0
    %1596 = vmatprep.mubr.f32.mxu0 0.0
    %1597 = vmatmul.mubr.f32.gmra.mrb[0].mxu0 %v1524
    %v1598 = vpop.f32.mrb[0].mxu0
    %v1599 = vadd.f32 0.0, %v1598
    %v1600 = vpop.f32.mrb[0].mxu0
    %v1601 = vadd.f32 0.0, %v1600
    %1602 = vdwg.mxu0
    %v1603 = vadd.f32 %v1513, %v1599
    %v1604 = vadd.f32 %v1514, %v1601
    %v1605 = vld [vmem:[%s9 + $0x18] sm:$0x3]
    %s1606 = scalar_lea.vmem %s3, 576
    %v1607 = vld [vmem:[%s1606] sm:$0xff]
    %v1608 = vld [vmem:[%s1606 + $0x8] sm:$0xff]
    %v1609 = vld [vmem:[%s1606 + $0x10] sm:$0xff]
    %v1610 = vld [vmem:[%s1606 + $0x18] sm:$0xff]
    %v1611 = vld [vmem:[%s1606 + $0x20] sm:$0xf]
    %v1612 = vld [vmem:[%s1606 + $0x28] sm:$0xf]
    %v1614 = vsel %vm524, %v1605, 0
    %v1617 = vsel %vm547, %v1611, 0
    %v1620 = vsel %vm547, %v1612, 0
    %1622 = vmatprep.subr.mxu0 %v1608
    %1623 = vmatpush1.msra.mxu0 %v1607
    %1624 = vmatprep.subr.mxu0 %v1610
    %1625 = vmatpush1.msra.mxu0 %v1609
    %1626 = vmatprep.subr.mxu0 %v1620
    %1627 = vmatpush1.msra.mxu0 %v1617
    %1628 = vmatprep.subr.mxu0 0.0
    %1629 = vmatpush1.msra.mxu0 0.0
    %1630 = vmatprep.subr.mxu0 0.0
    %1631 = vmatpush1.msra.mxu0 0.0
    %1632 = vmatprep.subr.mxu0 0.0
    %1633 = vmatpush1.msra.mxu0 0.0
    %1634 = vmatprep.subr.mxu0 0.0
    %1635 = vmatpush1.msra.mxu0 0.0
    %1636 = vmatprep.subr.mxu0 0.0
    %1637 = vmatpush1.msra.mxu0 0.0
    %1638 = vmatprep.subr.mxu0 0.0
    %1639 = vmatpush1.msra.mxu0 0.0
    %1640 = vmatprep.subr.mxu0 0.0
    %1641 = vmatpush1.msra.mxu0 0.0
    %1642 = vmatprep.subr.mxu0 0.0
    %1643 = vmatpush1.msra.mxu0 0.0
    %1644 = vmatprep.subr.mxu0 0.0
    %1645 = vmatpush1.msra.mxu0 0.0
    %1646 = vmatprep.subr.mxu0 0.0
    %1647 = vmatpush1.msra.mxu0 0.0
    %1648 = vmatprep.subr.mxu0 0.0
    %1649 = vmatpush1.msra.mxu0 0.0
    %1650 = vmatprep.subr.mxu0 0.0
    %1651 = vmatpush1.msra.mxu0 0.0
    %1652 = vmatprep.subr.mxu0 0.0
    %1653 = vmatpush1.msra.mxu0 0.0
    %1654 = vmatprep.subr.mxu0 0.0
    %1655 = vmatpush1.msra.mxu0 0.0
    %1656 = vmatprep.subr.mxu0 0.0
    %1657 = vmatpush1.msra.mxu0 0.0
    %1658 = vmatprep.subr.mxu0 0.0
    %1659 = vmatpush1.msra.mxu0 0.0
    %1660 = vmatprep.subr.mxu0 0.0
    %1661 = vmatpush1.msra.mxu0 0.0
    %1662 = vmatprep.subr.mxu0 0.0
    %1663 = vmatpush1.msra.mxu0 0.0
    %1664 = vmatprep.subr.mxu0 0.0
    %1665 = vmatpush1.msra.mxu0 0.0
    %1666 = vmatprep.subr.mxu0 0.0
    %1667 = vmatpush1.msra.mxu0 0.0
    %1668 = vmatprep.subr.mxu0 0.0
    %1669 = vmatpush1.msra.mxu0 0.0
    %1670 = vmatprep.subr.mxu0 0.0
    %1671 = vmatpush1.msra.mxu0 0.0
    %1672 = vmatprep.subr.mxu0 0.0
    %1673 = vmatpush1.msra.mxu0 0.0
    %1674 = vmatprep.subr.mxu0 0.0
    %1675 = vmatpush1.msra.mxu0 0.0
    %1676 = vmatprep.subr.mxu0 0.0
    %1677 = vmatpush1.msra.mxu0 0.0
    %1678 = vmatprep.subr.mxu0 0.0
    %1679 = vmatpush1.msra.mxu0 0.0
    %1680 = vmatprep.subr.mxu0 0.0
    %1681 = vmatpush1.msra.mxu0 0.0
    %1682 = vmatprep.subr.mxu0 0.0
    %1683 = vmatpush1.msra.mxu0 0.0
    %1684 = vmatprep.subr.mxu0 0.0
    %1685 = vmatpush1.msra.mxu0 0.0
    %1686 = vmatprep.mubr.f32.mxu0 0.0
    %1687 = vmatmul.mubr.f32.gmra.mrb[0].mxu0 %v1614
    %v1688 = vpop.f32.mrb[0].mxu0
    %v1689 = vadd.f32 0.0, %v1688
    %v1690 = vpop.f32.mrb[0].mxu0
    %v1691 = vadd.f32 0.0, %v1690
    %1692 = vdwg.mxu0
    %v1693 = vadd.f32 %v1603, %v1689
    %v1694 = vadd.f32 %v1604, %v1691
    %v1695 = vld [vmem:[%s9 + $0x1a] sm:$0x3]
    %s1696 = scalar_lea.vmem %s3, 624
    %v1697 = vld [vmem:[%s1696] sm:$0xff]
    %v1698 = vld [vmem:[%s1696 + $0x8] sm:$0xff]
    %v1699 = vld [vmem:[%s1696 + $0x10] sm:$0xff]
    %v1700 = vld [vmem:[%s1696 + $0x18] sm:$0xff]
    %v1701 = vld [vmem:[%s1696 + $0x20] sm:$0xf]
    %v1702 = vld [vmem:[%s1696 + $0x28] sm:$0xf]
    %v1704 = vsel %vm524, %v1695, 0
    %v1707 = vsel %vm547, %v1701, 0
    %v1710 = vsel %vm547, %v1702, 0
    %1712 = vmatprep.subr.mxu0 %v1698
    %1713 = vmatpush1.msra.mxu0 %v1697
    %1714 = vmatprep.subr.mxu0 %v1700
    %1715 = vmatpush1.msra.mxu0 %v1699
    %1716 = vmatprep.subr.mxu0 %v1710
    %1717 = vmatpush1.msra.mxu0 %v1707
    %1718 = vmatprep.subr.mxu0 0.0
    %1719 = vmatpush1.msra.mxu0 0.0
    %1720 = vmatprep.subr.mxu0 0.0
    %1721 = vmatpush1.msra.mxu0 0.0
    %1722 = vmatprep.subr.mxu0 0.0
    %1723 = vmatpush1.msra.mxu0 0.0
    %1724 = vmatprep.subr.mxu0 0.0
    %1725 = vmatpush1.msra.mxu0 0.0
    %1726 = vmatprep.subr.mxu0 0.0
    %1727 = vmatpush1.msra.mxu0 0.0
    %1728 = vmatprep.subr.mxu0 0.0
    %1729 = vmatpush1.msra.mxu0 0.0
    %1730 = vmatprep.subr.mxu0 0.0
    %1731 = vmatpush1.msra.mxu0 0.0
    %1732 = vmatprep.subr.mxu0 0.0
    %1733 = vmatpush1.msra.mxu0 0.0
    %1734 = vmatprep.subr.mxu0 0.0
    %1735 = vmatpush1.msra.mxu0 0.0
    %1736 = vmatprep.subr.mxu0 0.0
    %1737 = vmatpush1.msra.mxu0 0.0
    %1738 = vmatprep.subr.mxu0 0.0
    %1739 = vmatpush1.msra.mxu0 0.0
    %1740 = vmatprep.subr.mxu0 0.0
    %1741 = vmatpush1.msra.mxu0 0.0
    %1742 = vmatprep.subr.mxu0 0.0
    %1743 = vmatpush1.msra.mxu0 0.0
    %1744 = vmatprep.subr.mxu0 0.0
    %1745 = vmatpush1.msra.mxu0 0.0
    %1746 = vmatprep.subr.mxu0 0.0
    %1747 = vmatpush1.msra.mxu0 0.0
    %1748 = vmatprep.subr.mxu0 0.0
    %1749 = vmatpush1.msra.mxu0 0.0
    %1750 = vmatprep.subr.mxu0 0.0
    %1751 = vmatpush1.msra.mxu0 0.0
    %1752 = vmatprep.subr.mxu0 0.0
    %1753 = vmatpush1.msra.mxu0 0.0
    %1754 = vmatprep.subr.mxu0 0.0
    %1755 = vmatpush1.msra.mxu0 0.0
    %1756 = vmatprep.subr.mxu0 0.0
    %1757 = vmatpush1.msra.mxu0 0.0
    %1758 = vmatprep.subr.mxu0 0.0
    %1759 = vmatpush1.msra.mxu0 0.0
    %1760 = vmatprep.subr.mxu0 0.0
    %1761 = vmatpush1.msra.mxu0 0.0
    %1762 = vmatprep.subr.mxu0 0.0
    %1763 = vmatpush1.msra.mxu0 0.0
    %1764 = vmatprep.subr.mxu0 0.0
    %1765 = vmatpush1.msra.mxu0 0.0
    %1766 = vmatprep.subr.mxu0 0.0
    %1767 = vmatpush1.msra.mxu0 0.0
    %1768 = vmatprep.subr.mxu0 0.0
    %1769 = vmatpush1.msra.mxu0 0.0
    %1770 = vmatprep.subr.mxu0 0.0
    %1771 = vmatpush1.msra.mxu0 0.0
    %1772 = vmatprep.subr.mxu0 0.0
    %1773 = vmatpush1.msra.mxu0 0.0
    %1774 = vmatprep.subr.mxu0 0.0
    %1775 = vmatpush1.msra.mxu0 0.0
    %1776 = vmatprep.mubr.f32.mxu0 0.0
    %1777 = vmatmul.mubr.f32.gmra.mrb[0].mxu0 %v1704
    %v1778 = vpop.f32.mrb[0].mxu0
    %v1779 = vadd.f32 0.0, %v1778
    %v1780 = vpop.f32.mrb[0].mxu0
    %v1781 = vadd.f32 0.0, %v1780
    %1782 = vdwg.mxu0
    %v1783 = vadd.f32 %v1693, %v1779
    %v1784 = vadd.f32 %v1694, %v1781
    %v1785 = vld [vmem:[%s9 + $0x1c] sm:$0x3]
    %s1786 = scalar_lea.vmem %s3, 672
    %v1787 = vld [vmem:[%s1786] sm:$0xff]
    %v1788 = vld [vmem:[%s1786 + $0x8] sm:$0xff]
    %v1789 = vld [vmem:[%s1786 + $0x10] sm:$0xff]
    %v1790 = vld [vmem:[%s1786 + $0x18] sm:$0xff]
    %v1791 = vld [vmem:[%s1786 + $0x20] sm:$0xf]
    %v1792 = vld [vmem:[%s1786 + $0x28] sm:$0xf]
    %v1794 = vsel %vm524, %v1785, 0
    %v1797 = vsel %vm547, %v1791, 0
    %v1800 = vsel %vm547, %v1792, 0
    %1802 = vmatprep.subr.mxu0 %v1788
    %1803 = vmatpush1.msra.mxu0 %v1787
    %1804 = vmatprep.subr.mxu0 %v1790
    %1805 = vmatpush1.msra.mxu0 %v1789
    %1806 = vmatprep.subr.mxu0 %v1800
    %1807 = vmatpush1.msra.mxu0 %v1797
    %1808 = vmatprep.subr.mxu0 0.0
    %1809 = vmatpush1.msra.mxu0 0.0
    %1810 = vmatprep.subr.mxu0 0.0
    %1811 = vmatpush1.msra.mxu0 0.0
    %1812 = vmatprep.subr.mxu0 0.0
    %1813 = vmatpush1.msra.mxu0 0.0
    %1814 = vmatprep.subr.mxu0 0.0
    %1815 = vmatpush1.msra.mxu0 0.0
    %1816 = vmatprep.subr.mxu0 0.0
    %1817 = vmatpush1.msra.mxu0 0.0
    %1818 = vmatprep.subr.mxu0 0.0
    %1819 = vmatpush1.msra.mxu0 0.0
    %1820 = vmatprep.subr.mxu0 0.0
    %1821 = vmatpush1.msra.mxu0 0.0
    %1822 = vmatprep.subr.mxu0 0.0
    %1823 = vmatpush1.msra.mxu0 0.0
    %1824 = vmatprep.subr.mxu0 0.0
    %1825 = vmatpush1.msra.mxu0 0.0
    %1826 = vmatprep.subr.mxu0 0.0
    %1827 = vmatpush1.msra.mxu0 0.0
    %1828 = vmatprep.subr.mxu0 0.0
    %1829 = vmatpush1.msra.mxu0 0.0
    %1830 = vmatprep.subr.mxu0 0.0
    %1831 = vmatpush1.msra.mxu0 0.0
    %1832 = vmatprep.subr.mxu0 0.0
    %1833 = vmatpush1.msra.mxu0 0.0
    %1834 = vmatprep.subr.mxu0 0.0
    %1835 = vmatpush1.msra.mxu0 0.0
    %1836 = vmatprep.subr.mxu0 0.0
    %1837 = vmatpush1.msra.mxu0 0.0
    %1838 = vmatprep.subr.mxu0 0.0
    %1839 = vmatpush1.msra.mxu0 0.0
    %1840 = vmatprep.subr.mxu0 0.0
    %1841 = vmatpush1.msra.mxu0 0.0
    %1842 = vmatprep.subr.mxu0 0.0
    %1843 = vmatpush1.msra.mxu0 0.0
    %1844 = vmatprep.subr.mxu0 0.0
    %1845 = vmatpush1.msra.mxu0 0.0
    %1846 = vmatprep.subr.mxu0 0.0
    %1847 = vmatpush1.msra.mxu0 0.0
    %1848 = vmatprep.subr.mxu0 0.0
    %1849 = vmatpush1.msra.mxu0 0.0
    %1850 = vmatprep.subr.mxu0 0.0
    %1851 = vmatpush1.msra.mxu0 0.0
    %1852 = vmatprep.subr.mxu0 0.0
    %1853 = vmatpush1.msra.mxu0 0.0
    %1854 = vmatprep.subr.mxu0 0.0
    %1855 = vmatpush1.msra.mxu0 0.0
    %1856 = vmatprep.subr.mxu0 0.0
    %1857 = vmatpush1.msra.mxu0 0.0
    %1858 = vmatprep.subr.mxu0 0.0
    %1859 = vmatpush1.msra.mxu0 0.0
    %1860 = vmatprep.subr.mxu0 0.0
    %1861 = vmatpush1.msra.mxu0 0.0
    %1862 = vmatprep.subr.mxu0 0.0
    %1863 = vmatpush1.msra.mxu0 0.0
    %1864 = vmatprep.subr.mxu0 0.0
    %1865 = vmatpush1.msra.mxu0 0.0
    %1866 = vmatprep.mubr.f32.mxu0 0.0
    %1867 = vmatmul.mubr.f32.gmra.mrb[0].mxu0 %v1794
    %v1868 = vpop.f32.mrb[0].mxu0
    %v1869 = vadd.f32 0.0, %v1868
    %v1870 = vpop.f32.mrb[0].mxu0
    %v1871 = vadd.f32 0.0, %v1870
    %1872 = vdwg.mxu0
    %v1873 = vadd.f32 %v1783, %v1869
    %v1874 = vadd.f32 %v1784, %v1871
    %v1875 = vld [vmem:[%s9 + $0x1e] sm:$0x3]
    %s1876 = scalar_lea.vmem %s3, 720
    %v1877 = vld [vmem:[%s1876] sm:$0xff]
    %v1878 = vld [vmem:[%s1876 + $0x8] sm:$0xff]
    %v1879 = vld [vmem:[%s1876 + $0x10] sm:$0xff]
    %v1880 = vld [vmem:[%s1876 + $0x18] sm:$0xff]
    %v1881 = vld [vmem:[%s1876 + $0x20] sm:$0xf]
    %v1882 = vld [vmem:[%s1876 + $0x28] sm:$0xf]
    %v1884 = vsel %vm524, %v1875, 0
    %v1887 = vsel %vm547, %v1881, 0
    %v1890 = vsel %vm547, %v1882, 0
    %1892 = vmatprep.subr.mxu0 %v1878
    %1893 = vmatpush1.msra.mxu0 %v1877
    %1894 = vmatprep.subr.mxu0 %v1880
    %1895 = vmatpush1.msra.mxu0 %v1879
    %1896 = vmatprep.subr.mxu0 %v1890
    %1897 = vmatpush1.msra.mxu0 %v1887
    %1898 = vmatprep.subr.mxu0 0.0
    %1899 = vmatpush1.msra.mxu0 0.0
    %1900 = vmatprep.subr.mxu0 0.0
    %1901 = vmatpush1.msra.mxu0 0.0
    %1902 = vmatprep.subr.mxu0 0.0
    %1903 = vmatpush1.msra.mxu0 0.0
    %1904 = vmatprep.subr.mxu0 0.0
    %1905 = vmatpush1.msra.mxu0 0.0
    %1906 = vmatprep.subr.mxu0 0.0
    %1907 = vmatpush1.msra.mxu0 0.0
    %1908 = vmatprep.subr.mxu0 0.0
    %1909 = vmatpush1.msra.mxu0 0.0
    %1910 = vmatprep.subr.mxu0 0.0
    %1911 = vmatpush1.msra.mxu0 0.0
    %1912 = vmatprep.subr.mxu0 0.0
    %1913 = vmatpush1.msra.mxu0 0.0
    %1914 = vmatprep.subr.mxu0 0.0
    %1915 = vmatpush1.msra.mxu0 0.0
    %1916 = vmatprep.subr.mxu0 0.0
    %1917 = vmatpush1.msra.mxu0 0.0
    %1918 = vmatprep.subr.mxu0 0.0
    %1919 = vmatpush1.msra.mxu0 0.0
    %1920 = vmatprep.subr.mxu0 0.0
    %1921 = vmatpush1.msra.mxu0 0.0
    %1922 = vmatprep.subr.mxu0 0.0
    %1923 = vmatpush1.msra.mxu0 0.0
    %1924 = vmatprep.subr.mxu0 0.0
    %1925 = vmatpush1.msra.mxu0 0.0
    %1926 = vmatprep.subr.mxu0 0.0
    %1927 = vmatpush1.msra.mxu0 0.0
    %1928 = vmatprep.subr.mxu0 0.0
    %1929 = vmatpush1.msra.mxu0 0.0
    %1930 = vmatprep.subr.mxu0 0.0
    %1931 = vmatpush1.msra.mxu0 0.0
    %1932 = vmatprep.subr.mxu0 0.0
    %1933 = vmatpush1.msra.mxu0 0.0
    %1934 = vmatprep.subr.mxu0 0.0
    %1935 = vmatpush1.msra.mxu0 0.0
    %1936 = vmatprep.subr.mxu0 0.0
    %1937 = vmatpush1.msra.mxu0 0.0
    %1938 = vmatprep.subr.mxu0 0.0
    %1939 = vmatpush1.msra.mxu0 0.0
    %1940 = vmatprep.subr.mxu0 0.0
    %1941 = vmatpush1.msra.mxu0 0.0
    %1942 = vmatprep.subr.mxu0 0.0
    %1943 = vmatpush1.msra.mxu0 0.0
    %1944 = vmatprep.subr.mxu0 0.0
    %1945 = vmatpush1.msra.mxu0 0.0
    %1946 = vmatprep.subr.mxu0 0.0
    %1947 = vmatpush1.msra.mxu0 0.0
    %1948 = vmatprep.subr.mxu0 0.0
    %1949 = vmatpush1.msra.mxu0 0.0
    %1950 = vmatprep.subr.mxu0 0.0
    %1951 = vmatpush1.msra.mxu0 0.0
    %1952 = vmatprep.subr.mxu0 0.0
    %1953 = vmatpush1.msra.mxu0 0.0
    %1954 = vmatprep.subr.mxu0 0.0
    %1955 = vmatpush1.msra.mxu0 0.0
    %1956 = vmatprep.mubr.f32.mxu0 0.0
    %1957 = vmatmul.mubr.f32.gmra.mrb[0].mxu0 %v1884
    %v1958 = vpop.f32.mrb[0].mxu0
    %v1959 = vadd.f32 0.0, %v1958
    %v1960 = vpop.f32.mrb[0].mxu0
    %v1961 = vadd.f32 0.0, %v1960
    %1962 = vdwg.mxu0
    %v1963 = vadd.f32 %v1873, %v1959
    %v1964 = vadd.f32 %v1874, %v1961
    %v1965 = vld [vmem:[%s4] sm:$0x3]
    %v1967 = vlaneseq
    %v1968 = vshrl.u32 %v1967, 7
    %v1969 = vsub.s32 0, %v1968
    %v1970 = vrot.slane %v1965, %v1969
    %v1971 = vlaneseq
    %v1972 = vshrl.u32 %v1971, 7
    %v1973 = vsub.s32 1, %v1972
    %v1974 = vrot.slane %v1965, %v1973
    %v1977 = vadd.f32 %v1963, %v1970
    %v1978 = vadd.f32 %v1964, %v1974
    %v1979 = vmax.f32 %v1977, 0.0
    %v1980 = vmax.f32 %v1978, 0.0
    %v1981 = vld [vmem:[%s5] sm:$0xff]
    %v1982 = vld [vmem:[%s5 + $0x8] sm:$0xff]
    %v1983 = vld [vmem:[%s5 + $0x10] sm:$0xff]
    %v1984 = vld [vmem:[%s5 + $0x18] sm:$0xff]
    %v1985 = vld [vmem:[%s5 + $0x20] sm:$0xff]
    %v1986 = vld [vmem:[%s5 + $0x28] sm:$0xff]
    %v1987 = vld [vmem:[%s5 + $0x30] sm:$0xff]
    %v1988 = vld [vmem:[%s5 + $0x38] sm:$0xff]
    %v1989 = vld [vmem:[%s5 + $0x40] sm:$0xff]
    %v1990 = vld [vmem:[%s5 + $0x48] sm:$0xff]
    %v1991 = vld [vmem:[%s5 + $0x50] sm:$0xff]
    %v1992 = vld [vmem:[%s5 + $0x58] sm:$0xff]
    %v1993 = vld [vmem:[%s5 + $0x60] sm:$0xff]
    %v1994 = vld [vmem:[%s5 + $0x68] sm:$0xff]
    %v1995 = vld [vmem:[%s5 + $0x70] sm:$0xff]
    %v1996 = vld [vmem:[%s5 + $0x78] sm:$0xff]
    %v1997 = vld [vmem:[%s5 + $0x80] sm:$0xff]
    %v1998 = vld [vmem:[%s5 + $0x88] sm:$0xff]
    %v1999 = vld [vmem:[%s5 + $0x90] sm:$0xff]
    %v2000 = vld [vmem:[%s5 + $0x98] sm:$0xff]
    %v2001 = vld [vmem:[%s5 + $0xa0] sm:$0xff]
    %v2002 = vld [vmem:[%s5 + $0xa8] sm:$0xff]
    %v2003 = vld [vmem:[%s5 + $0xb0] sm:$0xff]
    %v2004 = vld [vmem:[%s5 + $0xb8] sm:$0xff]
    %v2005 = vld [vmem:[%s5 + $0xc0] sm:$0xff]
    %v2006 = vld [vmem:[%s5 + $0xc8] sm:$0xff]
    %v2007 = vld [vmem:[%s5 + $0xd0] sm:$0xff]
    %v2008 = vld [vmem:[%s5 + $0xd8] sm:$0xff]
    %v2009 = vld [vmem:[%s5 + $0xe0] sm:$0xff]
    %v2010 = vld [vmem:[%s5 + $0xe8] sm:$0xff]
    %v2011 = vld [vmem:[%s5 + $0xf0] sm:$0xff]
    %v2012 = vld [vmem:[%s5 + $0xf8] sm:$0xff]
    %v2013 = vld [vmem:[%s6] sm:$0x1]
    %v2015 = vlaneseq
    %v2016 = vshrl.u32 %v2015, 7
    %v2017 = vsub.s32 0, %v2016
    %v2018 = vrot.slane %v2013, %v2017
    %2020 = vmatprep.subr.mxu0 0.0
    %2021 = vmatpush1.msra.mxu0 %v1981
    %2022 = vmatprep.subr.mxu0 0.0
    %2023 = vmatpush1.msra.mxu0 %v1982
    %2024 = vmatprep.subr.mxu0 0.0
    %2025 = vmatpush1.msra.mxu0 %v1983
    %2026 = vmatprep.subr.mxu0 0.0
    %2027 = vmatpush1.msra.mxu0 %v1984
    %2028 = vmatprep.subr.mxu0 0.0
    %2029 = vmatpush1.msra.mxu0 %v1985
    %2030 = vmatprep.subr.mxu0 0.0
    %2031 = vmatpush1.msra.mxu0 %v1986
    %2032 = vmatprep.subr.mxu0 0.0
    %2033 = vmatpush1.msra.mxu0 %v1987
    %2034 = vmatprep.subr.mxu0 0.0
    %2035 = vmatpush1.msra.mxu0 %v1988
    %2036 = vmatprep.subr.mxu0 0.0
    %2037 = vmatpush1.msra.mxu0 %v1989
    %2038 = vmatprep.subr.mxu0 0.0
    %2039 = vmatpush1.msra.mxu0 %v1990
    %2040 = vmatprep.subr.mxu0 0.0
    %2041 = vmatpush1.msra.mxu0 %v1991
    %2042 = vmatprep.subr.mxu0 0.0
    %2043 = vmatpush1.msra.mxu0 %v1992
    %2044 = vmatprep.subr.mxu0 0.0
    %2045 = vmatpush1.msra.mxu0 %v1993
    %2046 = vmatprep.subr.mxu0 0.0
    %2047 = vmatpush1.msra.mxu0 %v1994
    %2048 = vmatprep.subr.mxu0 0.0
    %2049 = vmatpush1.msra.mxu0 %v1995
    %2050 = vmatprep.subr.mxu0 0.0
    %2051 = vmatpush1.msra.mxu0 %v1996
    %2052 = vmatprep.subr.mxu0 0.0
    %2053 = vmatpush1.msra.mxu0 %v1997
    %2054 = vmatprep.subr.mxu0 0.0
    %2055 = vmatpush1.msra.mxu0 %v1998
    %2056 = vmatprep.subr.mxu0 0.0
    %2057 = vmatpush1.msra.mxu0 %v1999
    %2058 = vmatprep.subr.mxu0 0.0
    %2059 = vmatpush1.msra.mxu0 %v2000
    %2060 = vmatprep.subr.mxu0 0.0
    %2061 = vmatpush1.msra.mxu0 %v2001
    %2062 = vmatprep.subr.mxu0 0.0
    %2063 = vmatpush1.msra.mxu0 %v2002
    %2064 = vmatprep.subr.mxu0 0.0
    %2065 = vmatpush1.msra.mxu0 %v2003
    %2066 = vmatprep.subr.mxu0 0.0
    %2067 = vmatpush1.msra.mxu0 %v2004
    %2068 = vmatprep.subr.mxu0 0.0
    %2069 = vmatpush1.msra.mxu0 %v2005
    %2070 = vmatprep.subr.mxu0 0.0
    %2071 = vmatpush1.msra.mxu0 %v2006
    %2072 = vmatprep.subr.mxu0 0.0
    %2073 = vmatpush1.msra.mxu0 %v2007
    %2074 = vmatprep.subr.mxu0 0.0
    %2075 = vmatpush1.msra.mxu0 %v2008
    %2076 = vmatprep.subr.mxu0 0.0
    %2077 = vmatpush1.msra.mxu0 %v2009
    %2078 = vmatprep.subr.mxu0 0.0
    %2079 = vmatpush1.msra.mxu0 %v2010
    %2080 = vmatprep.subr.mxu0 0.0
    %2081 = vmatpush1.msra.mxu0 %v2011
    %2082 = vmatprep.subr.mxu0 0.0
    %2083 = vmatpush1.msra.mxu0 %v2012
    %2084 = vmatprep.mubr.f32.mxu0 %v1980
    %2085 = vmatmul.mubr.f32.gmra.mrb[0].mxu0 %v1979
    %v2086 = vpop.f32.mrb[0].mxu0
    %v2087 = vadd.f32 %v2018, %v2086
    %v2088 = vpop.f32.mrb[0].mxu0
    %2089 = vdwg.mxu0
    %2090 = vst [vmem:[#allocation2] sm:$0x3] %v2087
    %v2091 = vld [vmem:[%s7] sm:$0xff]
    %v2092 = vld [vmem:[%s7 + $0x8] sm:$0xff]
    %v2093 = vld [vmem:[%s7 + $0x10] sm:$0xff]
    %v2094 = vld [vmem:[%s7 + $0x18] sm:$0xff]
    %v2095 = vld [vmem:[%s7 + $0x20] sm:$0xff]
    %v2096 = vld [vmem:[%s7 + $0x28] sm:$0xff]
    %v2097 = vld [vmem:[%s7 + $0x30] sm:$0xff]
    %v2098 = vld [vmem:[%s7 + $0x38] sm:$0xff]
    %v2099 = vld [vmem:[%s7 + $0x40] sm:$0xff]
    %v2100 = vld [vmem:[%s7 + $0x48] sm:$0xff]
    %v2101 = vld [vmem:[%s7 + $0x50] sm:$0xff]
    %v2102 = vld [vmem:[%s7 + $0x58] sm:$0xff]
    %v2103 = vld [vmem:[%s7 + $0x60] sm:$0xff]
    %v2104 = vld [vmem:[%s7 + $0x68] sm:$0xff]
    %v2105 = vld [vmem:[%s7 + $0x70] sm:$0xff]
    %v2106 = vld [vmem:[%s7 + $0x78] sm:$0xff]
    %v2107 = vld [vmem:[%s8] sm:$0x1]
    %v2109 = vlaneseq
    %v2110 = vshrl.u32 %v2109, 7
    %v2111 = vsub.s32 0, %v2110
    %v2112 = vrot.slane %v2107, %v2111
    %2114 = vmatprep.subr.mxu0 0.0
    %2115 = vmatpush1.msra.mxu0 %v2091
    %2116 = vmatprep.subr.mxu0 0.0
    %2117 = vmatpush1.msra.mxu0 %v2092
    %2118 = vmatprep.subr.mxu0 0.0
    %2119 = vmatpush1.msra.mxu0 %v2093
    %2120 = vmatprep.subr.mxu0 0.0
    %2121 = vmatpush1.msra.mxu0 %v2094
    %2122 = vmatprep.subr.mxu0 0.0
    %2123 = vmatpush1.msra.mxu0 %v2095
    %2124 = vmatprep.subr.mxu0 0.0
    %2125 = vmatpush1.msra.mxu0 %v2096
    %2126 = vmatprep.subr.mxu0 0.0
    %2127 = vmatpush1.msra.mxu0 %v2097
    %2128 = vmatprep.subr.mxu0 0.0
    %2129 = vmatpush1.msra.mxu0 %v2098
    %2130 = vmatprep.subr.mxu0 0.0
    %2131 = vmatpush1.msra.mxu0 %v2099
    %2132 = vmatprep.subr.mxu0 0.0
    %2133 = vmatpush1.msra.mxu0 %v2100
    %2134 = vmatprep.subr.mxu0 0.0
    %2135 = vmatpush1.msra.mxu0 %v2101
    %2136 = vmatprep.subr.mxu0 0.0
    %2137 = vmatpush1.msra.mxu0 %v2102
    %2138 = vmatprep.subr.mxu0 0.0
    %2139 = vmatpush1.msra.mxu0 %v2103
    %2140 = vmatprep.subr.mxu0 0.0
    %2141 = vmatpush1.msra.mxu0 %v2104
    %2142 = vmatprep.subr.mxu0 0.0
    %2143 = vmatpush1.msra.mxu0 %v2105
    %2144 = vmatprep.subr.mxu0 0.0
    %2145 = vmatpush1.msra.mxu0 %v2106
    %2146 = vmatprep.subr.mxu0 0.0
    %2147 = vmatpush1.msra.mxu0 0.0
    %2148 = vmatprep.subr.mxu0 0.0
    %2149 = vmatpush1.msra.mxu0 0.0
    %2150 = vmatprep.subr.mxu0 0.0
    %2151 = vmatpush1.msra.mxu0 0.0
    %2152 = vmatprep.subr.mxu0 0.0
    %2153 = vmatpush1.msra.mxu0 0.0
    %2154 = vmatprep.subr.mxu0 0.0
    %2155 = vmatpush1.msra.mxu0 0.0
    %2156 = vmatprep.subr.mxu0 0.0
    %2157 = vmatpush1.msra.mxu0 0.0
    %2158 = vmatprep.subr.mxu0 0.0
    %2159 = vmatpush1.msra.mxu0 0.0
    %2160 = vmatprep.subr.mxu0 0.0
    %2161 = vmatpush1.msra.mxu0 0.0
    %2162 = vmatprep.subr.mxu0 0.0
    %2163 = vmatpush1.msra.mxu0 0.0
    %2164 = vmatprep.subr.mxu0 0.0
    %2165 = vmatpush1.msra.mxu0 0.0
    %2166 = vmatprep.subr.mxu0 0.0
    %2167 = vmatpush1.msra.mxu0 0.0
    %2168 = vmatprep.subr.mxu0 0.0
    %2169 = vmatpush1.msra.mxu0 0.0
    %2170 = vmatprep.subr.mxu0 0.0
    %2171 = vmatpush1.msra.mxu0 0.0
    %2172 = vmatprep.subr.mxu0 0.0
    %2173 = vmatpush1.msra.mxu0 0.0
    %2174 = vmatprep.subr.mxu0 0.0
    %2175 = vmatpush1.msra.mxu0 0.0
    %2176 = vmatprep.subr.mxu0 0.0
    %2177 = vmatpush1.msra.mxu0 0.0
    %2178 = vmatprep.mubr.f32.mxu0 0.0
    %2179 = vmatmul.mubr.f32.gmra.mrb[0].mxu0 %v2087
    %v2180 = vpop.f32.mrb[0].mxu0
    %v2181 = vadd.f32 %v2112, %v2180
    %v2182 = vpop.f32.mrb[0].mxu0
    %2183 = vdwg.mxu0
    %2184 = vst [vmem:[#allocation4] sm:$0x3] %v2181
    // Predicated region
    $region38: #{cnn_mnist_forward.3} parent=1 // pred_check
      _
    $region39: #{cnn_mnist_forward.3} parent=1 // pred_check_branch
      %2186 = sbr.rel (0) target = $region41
    $region40: #{cnn_mnist_forward.3} parent=1 // pred_region
      _
    $region41: #{cnn_mnist_forward.3} parent=1 // pred_fallthru
      _
    // Predicated region
    $region42: #{cnn_mnist_forward.3} parent=1 // pred_check
      _
    $region43: #{cnn_mnist_forward.3} parent=1 // pred_check_branch
      %2188 = sbr.rel (0) target = $region45
    $region44: #{cnn_mnist_forward.3} parent=1 // pred_region
      %s2190 = ssub.s32 32, 32
      %2191 = vsyncadd [#allocation3], %s2190
      %s2193 = sshll.u32 [#allocation2], 4
      %s2194 = int_to_ptr.vmem [resolvable:$true] %s2193
      %2196 = dma.vmem_to_hbm [thread:$0]  %s2194, 32, %s10, [#allocation3]
    $region45: #{cnn_mnist_forward.3} parent=1 // pred_fallthru
      _
    // Predicated region
    $region46: #{cnn_mnist_forward.3} parent=1 // pred_check
      _
    $region47: #{cnn_mnist_forward.3} parent=1 // pred_check_branch
      %2198 = sbr.rel (0) target = $region49
    $region48: #{cnn_mnist_forward.3} parent=1 // pred_region
      %s2200 = ssub.s32 32, 32
      %2201 = vsyncadd [#allocation5], %s2200
      %s2203 = sshll.u32 [#allocation4], 4
      %s2204 = int_to_ptr.vmem [resolvable:$true] %s2203
      %2206 = dma.vmem_to_hbm [thread:$0]  %s2204, 32, %s11, [#allocation5]
    $region49: #{cnn_mnist_forward.3} parent=1 // pred_fallthru
      _
    // Predicated region
    $region50: #{cnn_mnist_forward.3} parent=1 // pred_check
      _
    $region51: #{cnn_mnist_forward.3} parent=1 // pred_check_branch
      %2208 = sbr.rel (0) target = $region53
    $region52: #{cnn_mnist_forward.3} parent=1 // pred_region
      _
    $region53: #{cnn_mnist_forward.3} parent=1 // pred_fallthru
      _
    // Predicated region
    $region54: #{cnn_mnist_forward.3} parent=1 // pred_check
      _
    $region55: #{cnn_mnist_forward.3} parent=1 // pred_check_branch
      %2210 = sbr.rel (0) target = $region57
    $region56: #{cnn_mnist_forward.3} parent=1 // pred_region
      %2211 = dma.done [#allocation3], 32
    $region57: #{cnn_mnist_forward.3} parent=1 // pred_fallthru
      _
    // Predicated region
    $region58: #{cnn_mnist_forward.3} parent=1 // pred_check
      _
    $region59: #{cnn_mnist_forward.3} parent=1 // pred_check_branch
      %2213 = sbr.rel (0) target = $region61
    $region60: #{cnn_mnist_forward.3} parent=1 // pred_region
      %2214 = dma.done [#allocation5], 32
    $region61: #{cnn_mnist_forward.3} parent=1 // pred_fallthru
      _
    %2215 = vsyncpa [#allocation3], 1
    %2216 = vsyncpa [#allocation5], 1

</llo_original>
